<compile_context>
chip_gen: v5e
topology: v5e:2x2
jax: 0.10.0
libtpu: 0.0.40
codegen_flags: <defaults>
</compile_context>

<pallas_src>
import jax
import jax.numpy as jnp
import numpy as np
from jax import lax
from jax.experimental import pallas as pl
from jax.experimental.pallas import tpu as pltpu

# ---------------- small, TPU-friendly config ----------------
B = 2                  # batch
DEPTH = 5              # depth_dim
QST = 3                # qst_dim
H = W = 8              # spatialDim
F = H * W              # featuresize = 64
D = DEPTH + 2 + QST    # input_size = depth+2+qst = 10
I = 32                 # interactions_dim
NMOD = 2               # nbrModule (attention heads)
C = NMOD * I           # concat-over-heads channels = 64
U = 64                 # units_per_MLP_layer
OUT = 16               # output_dim
N = B * F              # flattened entities = 128
LN_EPS = 1e-5


# ---------------- fused Pallas kernel ----------------
def _fused_kernel(augx_ref, wqkv_ref, fp_w0_ref, fp_w1_ref, fp_w2_ref,
                  ln_w_ref, ln_b_ref, fl_w0_ref, fl_w1_ref, out_ref, z_scr):
    # ---- entity-major layout (N, D) built in-kernel (no XLA transpose op) ----
    x_flat = jnp.concatenate([augx_ref[b].T for b in range(B)], axis=0)       # (N, D)

    # ---- single packed QKV projection: one wide MXU pass instead of six ----
    qkv = jnp.dot(x_flat, wqkv_ref[...], preferred_element_type=jnp.float32)  # (N, 3C)

    # ---- per-head attention over all N = B*F entities (cross-batch softmax,
    #      exactly as applyMHDPA_batched); each head's output feeds straight
    #      into the first finalParallelLayer matmul, so the head-concat is
    #      never materialized:  concat @ W0 == sum_h head_h @ W0[h*I:(h+1)*I].
    pre0 = jnp.zeros((N, U), jnp.float32)
    for h in range(NMOD):
        q = qkv[:, h * I:(h + 1) * I]
        k = qkv[:, C + h * I:C + (h + 1) * I]
        v = qkv[:, 2 * C + h * I:2 * C + (h + 1) * I]
        # q @ k^T without materializing k.T (contract dim 1 of both operands).
        logits = lax.dot_general(q, k, (((1,), (1,)), ((), ())),
                                 preferred_element_type=jnp.float32)          # (N, N)
        m = jnp.max(logits, axis=-1, keepdims=True)
        e = jnp.exp(logits - m)
        s = jnp.sum(e, axis=-1, keepdims=True)
        ev = jnp.dot(e, v, preferred_element_type=jnp.float32)                # (N, I)
        # Fold softmax denominator and the /interactions_dim scale into one
        # (N, 1) reciprocal applied to the (N, I) output (not the (N, N) map).
        head = ev * pl.reciprocal(s * float(I), approx=False)
        pre0 = pre0 + jnp.dot(head, fp_w0_ref[pl.ds(h * I, I), :],
                              preferred_element_type=jnp.float32)
    h0 = jnp.maximum(pre0, 0.0)                                               # (N, U)
    h1 = jnp.maximum(jnp.dot(h0, fp_w1_ref[...],
                             preferred_element_type=jnp.float32), 0.0)        # (N, U)

    fl_w1 = fl_w1_ref[...]
    ln_w = ln_w_ref[...]
    ln_b = ln_b_ref[...]
    for b in range(B):
        # finalParallelLayer last linear, produced directly in (D, F)
        # orientation (fp_w2 kept in PyTorch (out,in)=(D,U) layout, trans_b).
        h1_b = h1[b * F:(b + 1) * F, :]                                       # (F, U)
        y_t = lax.dot_general(fp_w2_ref[...], h1_b, (((1,), (1,)), ((), ())),
                              preferred_element_type=jnp.float32)             # (D, F)
        zb = y_t + augx_ref[b]                                                # residual
        mean = jnp.mean(zb, axis=-1, keepdims=True)
        var = jnp.mean((zb - mean) ** 2, axis=-1, keepdims=True)
        zb = (zb - mean) * lax.rsqrt(var + LN_EPS)
        z_scr[...] = zb * ln_w + ln_b                                         # LayerNorm(F)

        # finalLayer: Linear(D*F, U) over the d-major flatten of (D, F),
        # decomposed over d (reads rows from VMEM scratch) to avoid an
        # in-kernel (D, F) -> (1, D*F) lane-flatten relayout.
        rb = jnp.zeros((1, U), jnp.float32)
        for d in range(D):
            rb = rb + jnp.dot(z_scr[pl.ds(d, 1), :], fl_w0_ref[d],
                              preferred_element_type=jnp.float32)             # (1, U)
        hb = jnp.maximum(rb, 0.0)
        ob = jnp.dot(hb, fl_w1, preferred_element_type=jnp.float32)           # (1, OUT)
        out_ref[pl.ds(b, 1), :] = ob.astype(out_ref.dtype)


# ---------------- glue (plain JAX) ----------------
def add_xy_features(x):
    # x: (B, depth, H, W) -> (B, depth+2, H*W)   (matches addXYfeatures)
    b, depth, h, w = x.shape
    step_x = 2.0 / h
    step_y = 2.0 / w
    fx = -1.0 + 0.5 * step_x + step_x * jnp.arange(h, dtype=x.dtype)   # along axis 2
    fy = -1.0 + 0.5 * step_y + step_y * jnp.arange(w, dtype=x.dtype)   # along axis 3
    fxy = jnp.broadcast_to(fx[:, None], (h, w))
    fyx = jnp.broadcast_to(fy[None, :], (h, w))
    f_xy = jnp.broadcast_to(jnp.stack([fxy, fyx], axis=0)[None], (b, 2, h, w))
    out = jnp.concatenate([x, f_xy], axis=1)
    return out.reshape(b, depth + 2, h * w)


def init_params(key):
    ks = jax.random.split(key, 8)

    def lin(k, shape, fan_in):
        bound = 1.0 / np.sqrt(fan_in)
        return jax.random.uniform(k, shape, jnp.float32, -bound, bound)

    return {
        # Packed QKV generators (bias=False): columns [0:C]=Q | [C:2C]=K | [2C:3C]=V,
        # head h occupies columns [h*I:(h+1)*I] inside each block.
        "w_qkv": jnp.concatenate([lin(ks[0], (D, C), D),
                                  lin(ks[1], (D, C), D),
                                  lin(ks[2], (D, C), D)], axis=1),     # (D, 3C)
        # finalParallelLayer (3 bias-free Linears + ReLU); first two stored
        # (in, out), the last kept in PyTorch (out, in) = (D, U) layout so the
        # kernel can emit its result directly in (D, F).
        "fp_w0": lin(ks[3], (C, U), C),
        "fp_w1": lin(ks[4], (U, U), U),
        "fp_w2": lin(ks[5], (D, U), U),
        # AttentionalBlockFinalLayer: LayerNorm(F) default affine init.
        "ln_w": jnp.ones((1, F), jnp.float32),
        "ln_b": jnp.zeros((1, F), jnp.float32),
        # finalLayer (2 bias-free Linears + ReLU); first weight stored as the
        # d-major (D, F, U) reshape of the (D*F, U) matrix.
        "fl_w0": lin(ks[6], (D, F, U), D * F),
        "fl_w1": lin(ks[7], (U, OUT), U),
    }


@jax.jit
def forward(params, x, qst):
    # addXYfeatures + question broadcast + channel concat (tiny XLA glue);
    # everything downstream runs in ONE fused pallas_call.
    augx = add_xy_features(x)                                   # (B, depth+2, F)
    qst_rep = jnp.broadcast_to(qst[:, :, None], (B, QST, F))
    augx_full = jnp.concatenate([augx, qst_rep], axis=1)        # (B, D, F)
    # TODO(synk): F.dropout with kwargs['dropout_prob'] != 0 omitted (0.0 here).
    return pl.pallas_call(
        _fused_kernel,
        out_shape=jax.ShapeDtypeStruct((B, OUT), jnp.float32),
        scratch_shapes=[pltpu.VMEM((D, F), jnp.float32)],
    )(augx_full, params["w_qkv"], params["fp_w0"], params["fp_w1"],
      params["fp_w2"], params["ln_w"], params["ln_b"],
      params["fl_w0"], params["fl_w1"])


# ---------------- pure-JAX reference (for verification) ----------------
def reference_forward(params, x, qst):
    augx = add_xy_features(x)
    qst_rep = jnp.broadcast_to(qst[:, :, None], (B, QST, F))
    cur = jnp.concatenate([augx, qst_rep], axis=1)              # (B, D, F)
    x_flat = jnp.transpose(cur, (0, 2, 1)).reshape(N, D)
    wqkv = params["w_qkv"]
    outs = []
    for h in range(NMOD):
        q = x_flat @ wqkv[:, h * I:(h + 1) * I]
        k = x_flat @ wqkv[:, C + h * I:C + (h + 1) * I]
        v = x_flat @ wqkv[:, 2 * C + h * I:2 * C + (h + 1) * I]
        w_att = jax.nn.softmax(q @ k.T, axis=1)
        outs.append((w_att @ v) / float(I))
    concat = jnp.concatenate(outs, axis=1).reshape(B, F, C)
    fl_w0_2d = params["fl_w0"].reshape(D * F, U)
    res = []
    for b in range(B):
        hh = jnp.maximum(concat[b] @ params["fp_w0"], 0.0)
        hh = jnp.maximum(hh @ params["fp_w1"], 0.0)
        y = hh @ params["fp_w2"].T                              # (F, D)
        z = y.T + cur[b]
        mean = jnp.mean(z, axis=-1, keepdims=True)
        var = jnp.mean((z - mean) ** 2, axis=-1, keepdims=True)
        zn = (z - mean) / jnp.sqrt(var + LN_EPS)
        res.append(zn * params["ln_w"] + params["ln_b"])
    cur_out = jnp.stack(res, axis=0)
    inter = cur_out.reshape(B, D * F)
    hh = jnp.maximum(inter @ fl_w0_2d, 0.0)
    return hh @ params["fl_w1"]


if __name__ == "__main__":
    key = jax.random.PRNGKey(0)
    kx, kq, kp = jax.random.split(key, 3)
    x = jax.random.normal(kx, (B, DEPTH, H, W), jnp.float32)
    qst = jax.random.normal(kq, (B, QST), jnp.float32)
    params = init_params(kp)

    out = forward(params, x, qst)
    out = jax.block_until_ready(out)
    assert out.shape == (B, OUT), out.shape

    ref = reference_forward(params, x, qst)
    np.testing.assert_allclose(np.asarray(out), np.asarray(ref), rtol=1e-4, atol=1e-4)
    print("KERNEL_OK")
</pallas_src>

<mosaic_0001>
module attributes {stable_mosaic.version = 11 : i64} {
  func.func @_fused_kernel(%arg0: memref<2x10x64xf32, #tpu.memory_space<vmem>>, %arg1: memref<10x192xf32, #tpu.memory_space<vmem>>, %arg2: memref<64x64xf32, #tpu.memory_space<vmem>>, %arg3: memref<64x64xf32, #tpu.memory_space<vmem>>, %arg4: memref<10x64xf32, #tpu.memory_space<vmem>>, %arg5: memref<1x64xf32, #tpu.memory_space<vmem>>, %arg6: memref<1x64xf32, #tpu.memory_space<vmem>>, %arg7: memref<10x64x64xf32, #tpu.memory_space<vmem>>, %arg8: memref<64x16xf32, #tpu.memory_space<vmem>>, %arg9: memref<2x16xf32, #tpu.memory_space<vmem>>, %arg10: memref<10x64xf32, #tpu.memory_space<vmem>>) attributes {dimension_semantics = [], scalar_prefetch = 0 : i64, scratch_operands = 1 : i64, tpu.core_type = #tpu.core_type<tc>} {
    %c0 = arith.constant 0 : index
    %c0_0 = arith.constant 0 : index
    %c0_1 = arith.constant 0 : index
    %0 = vector.load %arg0[%c0, %c0_0, %c0_1] : memref<2x10x64xf32, #tpu.memory_space<vmem>>, vector<1x10x64xf32>
    %1 = vector.shape_cast %0 : vector<1x10x64xf32> to vector<10x64xf32>
    %2 = tpu.transpose %1, [1, 0] : vector<10x64xf32> -> vector<64x10xf32>
    %c1 = arith.constant 1 : index
    %c0_2 = arith.constant 0 : index
    %c0_3 = arith.constant 0 : index
    %3 = vector.load %arg0[%c1, %c0_2, %c0_3] : memref<2x10x64xf32, #tpu.memory_space<vmem>>, vector<1x10x64xf32>
    %4 = vector.shape_cast %3 : vector<1x10x64xf32> to vector<10x64xf32>
    %5 = tpu.transpose %4, [1, 0] : vector<10x64xf32> -> vector<64x10xf32>
    %6 = tpu.concatenate %2, %5 in 0 : vector<64x10xf32>, vector<64x10xf32> -> vector<128x10xf32>
    %c0_4 = arith.constant 0 : index
    %c0_5 = arith.constant 0 : index
    %7 = vector.load %arg1[%c0_4, %c0_5] : memref<10x192xf32, #tpu.memory_space<vmem>>, vector<10x192xf32>
    %cst = arith.constant dense<0.000000e+00> : vector<128x192xf32>
    %8 = tpu.matmul %6, %7, %cst {dimension_numbers = #tpu.dot_dimension_numbers<[1], [0], [0], [1], [0, 0, 1, 1], [], []>} : vector<128x10xf32>, vector<10x192xf32>, vector<128x192xf32> -> vector<128x192xf32>
    %cst_6 = arith.constant 0.000000e+00 : f32
    %9 = vector.broadcast %cst_6 : f32 to vector<128x64xf32>
    %10 = vector.extract_strided_slice %8 {offsets = [0, 0], sizes = [128, 32], strides = [1, 1]} : vector<128x192xf32> to vector<128x32xf32>
    %11 = vector.extract_strided_slice %8 {offsets = [0, 64], sizes = [128, 32], strides = [1, 1]} : vector<128x192xf32> to vector<128x32xf32>
    %12 = vector.extract_strided_slice %8 {offsets = [0, 128], sizes = [128, 32], strides = [1, 1]} : vector<128x192xf32> to vector<128x32xf32>
    %cst_7 = arith.constant dense<0.000000e+00> : vector<128x128xf32>
    %13 = tpu.matmul %10, %11, %cst_7 {dimension_numbers = #tpu.dot_dimension_numbers<[1], [1], [0], [0], [0, 0, 1, 0], [], []>} : vector<128x32xf32>, vector<128x32xf32>, vector<128x128xf32> -> vector<128x128xf32>
    %cst_8 = arith.constant dense<0xFF800000> : vector<128xf32>
    %14 = vector.multi_reduction <maximumf>, %13, %cst_8 [1] : vector<128x128xf32> to vector<128xf32>
    %15 = vector.shape_cast %14 : vector<128xf32> to vector<128x1xf32>
    %16 = vector.broadcast %15 : vector<128x1xf32> to vector<128x128xf32>
    %17 = arith.subf %13, %16 : vector<128x128xf32>
    %18 = math.exp %17 : vector<128x128xf32>
    %cst_9 = arith.constant dense<0.000000e+00> : vector<128xf32>
    %19 = vector.multi_reduction <add>, %18, %cst_9 [1] : vector<128x128xf32> to vector<128xf32>
    %20 = vector.shape_cast %19 : vector<128xf32> to vector<128x1xf32>
    %cst_10 = arith.constant dense<0.000000e+00> : vector<128x32xf32>
    %21 = tpu.matmul %18, %12, %cst_10 {dimension_numbers = #tpu.dot_dimension_numbers<[1], [0], [0], [1], [0, 0, 1, 1], [], []>} : vector<128x128xf32>, vector<128x32xf32>, vector<128x32xf32> -> vector<128x32xf32>
    %cst_11 = arith.constant 3.200000e+01 : f32
    %22 = vector.broadcast %cst_11 : f32 to vector<128x1xf32>
    %23 = arith.mulf %20, %22 : vector<128x1xf32>
    %24 = tpu.reciprocal %23 : vector<128x1xf32> -> vector<128x1xf32>
    %25 = vector.broadcast %24 : vector<128x1xf32> to vector<128x32xf32>
    %26 = arith.mulf %21, %25 : vector<128x32xf32>
    %c0_12 = arith.constant 0 : index
    %c0_13 = arith.constant 0 : index
    %27 = vector.load %arg2[%c0_12, %c0_13] : memref<64x64xf32, #tpu.memory_space<vmem>>, vector<32x64xf32>
    %cst_14 = arith.constant dense<0.000000e+00> : vector<128x64xf32>
    %28 = tpu.matmul %26, %27, %cst_14 {dimension_numbers = #tpu.dot_dimension_numbers<[1], [0], [0], [1], [0, 0, 1, 1], [], []>} : vector<128x32xf32>, vector<32x64xf32>, vector<128x64xf32> -> vector<128x64xf32>
    %29 = arith.addf %9, %28 : vector<128x64xf32>
    %30 = vector.extract_strided_slice %8 {offsets = [0, 32], sizes = [128, 32], strides = [1, 1]} : vector<128x192xf32> to vector<128x32xf32>
    %31 = vector.extract_strided_slice %8 {offsets = [0, 96], sizes = [128, 32], strides = [1, 1]} : vector<128x192xf32> to vector<128x32xf32>
    %32 = vector.extract_strided_slice %8 {offsets = [0, 160], sizes = [128, 32], strides = [1, 1]} : vector<128x192xf32> to vector<128x32xf32>
    %cst_15 = arith.constant dense<0.000000e+00> : vector<128x128xf32>
    %33 = tpu.matmul %30, %31, %cst_15 {dimension_numbers = #tpu.dot_dimension_numbers<[1], [1], [0], [0], [0, 0, 1, 0], [], []>} : vector<128x32xf32>, vector<128x32xf32>, vector<128x128xf32> -> vector<128x128xf32>
    %cst_16 = arith.constant dense<0xFF800000> : vector<128xf32>
    %34 = vector.multi_reduction <maximumf>, %33, %cst_16 [1] : vector<128x128xf32> to vector<128xf32>
    %35 = vector.shape_cast %34 : vector<128xf32> to vector<128x1xf32>
    %36 = vector.broadcast %35 : vector<128x1xf32> to vector<128x128xf32>
    %37 = arith.subf %33, %36 : vector<128x128xf32>
    %38 = math.exp %37 : vector<128x128xf32>
    %cst_17 = arith.constant dense<0.000000e+00> : vector<128xf32>
    %39 = vector.multi_reduction <add>, %38, %cst_17 [1] : vector<128x128xf32> to vector<128xf32>
    %40 = vector.shape_cast %39 : vector<128xf32> to vector<128x1xf32>
    %cst_18 = arith.constant dense<0.000000e+00> : vector<128x32xf32>
    %41 = tpu.matmul %38, %32, %cst_18 {dimension_numbers = #tpu.dot_dimension_numbers<[1], [0], [0], [1], [0, 0, 1, 1], [], []>} : vector<128x128xf32>, vector<128x32xf32>, vector<128x32xf32> -> vector<128x32xf32>
    %cst_19 = arith.constant 3.200000e+01 : f32
    %42 = vector.broadcast %cst_19 : f32 to vector<128x1xf32>
    %43 = arith.mulf %40, %42 : vector<128x1xf32>
    %44 = tpu.reciprocal %43 : vector<128x1xf32> -> vector<128x1xf32>
    %45 = vector.broadcast %44 : vector<128x1xf32> to vector<128x32xf32>
    %46 = arith.mulf %41, %45 : vector<128x32xf32>
    %c32 = arith.constant 32 : index
    %c0_20 = arith.constant 0 : index
    %47 = vector.load %arg2[%c32, %c0_20] : memref<64x64xf32, #tpu.memory_space<vmem>>, vector<32x64xf32>
    %cst_21 = arith.constant dense<0.000000e+00> : vector<128x64xf32>
    %48 = tpu.matmul %46, %47, %cst_21 {dimension_numbers = #tpu.dot_dimension_numbers<[1], [0], [0], [1], [0, 0, 1, 1], [], []>} : vector<128x32xf32>, vector<32x64xf32>, vector<128x64xf32> -> vector<128x64xf32>
    %49 = arith.addf %29, %48 : vector<128x64xf32>
    %cst_22 = arith.constant 0.000000e+00 : f32
    %50 = vector.broadcast %cst_22 : f32 to vector<128x64xf32>
    %51 = arith.maximumf %49, %50 : vector<128x64xf32>
    %c0_23 = arith.constant 0 : index
    %c0_24 = arith.constant 0 : index
    %52 = vector.load %arg3[%c0_23, %c0_24] : memref<64x64xf32, #tpu.memory_space<vmem>>, vector<64x64xf32>
    %cst_25 = arith.constant dense<0.000000e+00> : vector<128x64xf32>
    %53 = tpu.matmul %51, %52, %cst_25 {dimension_numbers = #tpu.dot_dimension_numbers<[1], [0], [0], [1], [0, 0, 1, 1], [], []>} : vector<128x64xf32>, vector<64x64xf32>, vector<128x64xf32> -> vector<128x64xf32>
    %cst_26 = arith.constant 0.000000e+00 : f32
    %54 = vector.broadcast %cst_26 : f32 to vector<128x64xf32>
    %55 = arith.maximumf %53, %54 : vector<128x64xf32>
    %c0_27 = arith.constant 0 : index
    %c0_28 = arith.constant 0 : index
    %56 = vector.load %arg8[%c0_27, %c0_28] : memref<64x16xf32, #tpu.memory_space<vmem>>, vector<64x16xf32>
    %c0_29 = arith.constant 0 : index
    %c0_30 = arith.constant 0 : index
    %57 = vector.load %arg5[%c0_29, %c0_30] : memref<1x64xf32, #tpu.memory_space<vmem>>, vector<1x64xf32>
    %c0_31 = arith.constant 0 : index
    %c0_32 = arith.constant 0 : index
    %58 = vector.load %arg6[%c0_31, %c0_32] : memref<1x64xf32, #tpu.memory_space<vmem>>, vector<1x64xf32>
    %59 = vector.extract_strided_slice %55 {offsets = [0, 0], sizes = [64, 64], strides = [1, 1]} : vector<128x64xf32> to vector<64x64xf32>
    %c0_33 = arith.constant 0 : index
    %c0_34 = arith.constant 0 : index
    %60 = vector.load %arg4[%c0_33, %c0_34] : memref<10x64xf32, #tpu.memory_space<vmem>>, vector<10x64xf32>
    %cst_35 = arith.constant dense<0.000000e+00> : vector<10x64xf32>
    %61 = tpu.matmul %60, %59, %cst_35 {dimension_numbers = #tpu.dot_dimension_numbers<[1], [1], [0], [0], [0, 0, 1, 0], [], []>} : vector<10x64xf32>, vector<64x64xf32>, vector<10x64xf32> -> vector<10x64xf32>
    %c0_36 = arith.constant 0 : index
    %c0_37 = arith.constant 0 : index
    %c0_38 = arith.constant 0 : index
    %62 = vector.load %arg0[%c0_36, %c0_37, %c0_38] : memref<2x10x64xf32, #tpu.memory_space<vmem>>, vector<1x10x64xf32>
    %63 = vector.shape_cast %62 : vector<1x10x64xf32> to vector<10x64xf32>
    %64 = arith.addf %61, %63 : vector<10x64xf32>
    %cst_39 = arith.constant dense<0.000000e+00> : vector<10xf32>
    %65 = vector.multi_reduction <add>, %64, %cst_39 [1] : vector<10x64xf32> to vector<10xf32>
    %66 = vector.shape_cast %65 : vector<10xf32> to vector<10x1xf32>
    %cst_40 = arith.constant 6.400000e+01 : f32
    %67 = vector.broadcast %cst_40 : f32 to vector<10x1xf32>
    %68 = arith.divf %66, %67 : vector<10x1xf32>
    %69 = vector.broadcast %68 : vector<10x1xf32> to vector<10x64xf32>
    %70 = arith.subf %64, %69 : vector<10x64xf32>
    %71 = arith.mulf %70, %70 : vector<10x64xf32>
    %cst_41 = arith.constant dense<0.000000e+00> : vector<10xf32>
    %72 = vector.multi_reduction <add>, %71, %cst_41 [1] : vector<10x64xf32> to vector<10xf32>
    %73 = vector.shape_cast %72 : vector<10xf32> to vector<10x1xf32>
    %cst_42 = arith.constant 6.400000e+01 : f32
    %74 = vector.broadcast %cst_42 : f32 to vector<10x1xf32>
    %75 = arith.divf %73, %74 : vector<10x1xf32>
    %76 = vector.broadcast %68 : vector<10x1xf32> to vector<10x64xf32>
    %77 = arith.subf %64, %76 : vector<10x64xf32>
    %cst_43 = arith.constant 9.99999974E-6 : f32
    %78 = vector.broadcast %cst_43 : f32 to vector<10x1xf32>
    %79 = arith.addf %75, %78 : vector<10x1xf32>
    %80 = math.rsqrt %79 : vector<10x1xf32>
    %81 = vector.broadcast %80 : vector<10x1xf32> to vector<10x64xf32>
    %82 = arith.mulf %77, %81 : vector<10x64xf32>
    %83 = vector.broadcast %57 : vector<1x64xf32> to vector<10x64xf32>
    %84 = arith.mulf %82, %83 : vector<10x64xf32>
    %85 = vector.broadcast %58 : vector<1x64xf32> to vector<10x64xf32>
    %86 = arith.addf %84, %85 : vector<10x64xf32>
    %c0_44 = arith.constant 0 : index
    %c0_45 = arith.constant 0 : index
    %87 = vector.load %arg10[%c0_44, %c0_45] : memref<10x64xf32, #tpu.memory_space<vmem>>, vector<10x64xf32>
    tpu.vector_store %arg10[%c0_44, %c0_45], %86 {strides = array<i32>} : memref<10x64xf32, #tpu.memory_space<vmem>>, vector<10x64xf32>,
    %cst_46 = arith.constant 0.000000e+00 : f32
    %88 = vector.broadcast %cst_46 : f32 to vector<1x64xf32>
    %c0_47 = arith.constant 0 : index
    %c0_48 = arith.constant 0 : index
    %89 = vector.load %arg10[%c0_47, %c0_48] : memref<10x64xf32, #tpu.memory_space<vmem>>, vector<1x64xf32>
    %c0_49 = arith.constant 0 : index
    %c0_50 = arith.constant 0 : index
    %c0_51 = arith.constant 0 : index
    %90 = vector.load %arg7[%c0_49, %c0_50, %c0_51] : memref<10x64x64xf32, #tpu.memory_space<vmem>>, vector<1x64x64xf32>
    %91 = vector.shape_cast %90 : vector<1x64x64xf32> to vector<64x64xf32>
    %cst_52 = arith.constant dense<0.000000e+00> : vector<1x64xf32>
    %92 = tpu.matmul %89, %91, %cst_52 {dimension_numbers = #tpu.dot_dimension_numbers<[1], [0], [0], [1], [0, 0, 1, 1], [], []>} : vector<1x64xf32>, vector<64x64xf32>, vector<1x64xf32> -> vector<1x64xf32>
    %93 = arith.addf %88, %92 : vector<1x64xf32>
    %c1_53 = arith.constant 1 : index
    %c0_54 = arith.constant 0 : index
    %94 = vector.load %arg10[%c1_53, %c0_54] : memref<10x64xf32, #tpu.memory_space<vmem>>, vector<1x64xf32>
    %c1_55 = arith.constant 1 : index
    %c0_56 = arith.constant 0 : index
    %c0_57 = arith.constant 0 : index
    %95 = vector.load %arg7[%c1_55, %c0_56, %c0_57] : memref<10x64x64xf32, #tpu.memory_space<vmem>>, vector<1x64x64xf32>
    %96 = vector.shape_cast %95 : vector<1x64x64xf32> to vector<64x64xf32>
    %cst_58 = arith.constant dense<0.000000e+00> : vector<1x64xf32>
    %97 = tpu.matmul %94, %96, %cst_58 {dimension_numbers = #tpu.dot_dimension_numbers<[1], [0], [0], [1], [0, 0, 1, 1], [], []>} : vector<1x64xf32>, vector<64x64xf32>, vector<1x64xf32> -> vector<1x64xf32>
    %98 = arith.addf %93, %97 : vector<1x64xf32>
    %c2 = arith.constant 2 : index
    %c0_59 = arith.constant 0 : index
    %99 = vector.load %arg10[%c2, %c0_59] : memref<10x64xf32, #tpu.memory_space<vmem>>, vector<1x64xf32>
    %c2_60 = arith.constant 2 : index
    %c0_61 = arith.constant 0 : index
    %c0_62 = arith.constant 0 : index
    %100 = vector.load %arg7[%c2_60, %c0_61, %c0_62] : memref<10x64x64xf32, #tpu.memory_space<vmem>>, vector<1x64x64xf32>
    %101 = vector.shape_cast %100 : vector<1x64x64xf32> to vector<64x64xf32>
    %cst_63 = arith.constant dense<0.000000e+00> : vector<1x64xf32>
    %102 = tpu.matmul %99, %101, %cst_63 {dimension_numbers = #tpu.dot_dimension_numbers<[1], [0], [0], [1], [0, 0, 1, 1], [], []>} : vector<1x64xf32>, vector<64x64xf32>, vector<1x64xf32> -> vector<1x64xf32>
    %103 = arith.addf %98, %102 : vector<1x64xf32>
    %c3 = arith.constant 3 : index
    %c0_64 = arith.constant 0 : index
    %104 = vector.load %arg10[%c3, %c0_64] : memref<10x64xf32, #tpu.memory_space<vmem>>, vector<1x64xf32>
    %c3_65 = arith.constant 3 : index
    %c0_66 = arith.constant 0 : index
    %c0_67 = arith.constant 0 : index
    %105 = vector.load %arg7[%c3_65, %c0_66, %c0_67] : memref<10x64x64xf32, #tpu.memory_space<vmem>>, vector<1x64x64xf32>
    %106 = vector.shape_cast %105 : vector<1x64x64xf32> to vector<64x64xf32>
    %cst_68 = arith.constant dense<0.000000e+00> : vector<1x64xf32>
    %107 = tpu.matmul %104, %106, %cst_68 {dimension_numbers = #tpu.dot_dimension_numbers<[1], [0], [0], [1], [0, 0, 1, 1], [], []>} : vector<1x64xf32>, vector<64x64xf32>, vector<1x64xf32> -> vector<1x64xf32>
    %108 = arith.addf %103, %107 : vector<1x64xf32>
    %c4 = arith.constant 4 : index
    %c0_69 = arith.constant 0 : index
    %109 = vector.load %arg10[%c4, %c0_69] : memref<10x64xf32, #tpu.memory_space<vmem>>, vector<1x64xf32>
    %c4_70 = arith.constant 4 : index
    %c0_71 = arith.constant 0 : index
    %c0_72 = arith.constant 0 : index
    %110 = vector.load %arg7[%c4_70, %c0_71, %c0_72] : memref<10x64x64xf32, #tpu.memory_space<vmem>>, vector<1x64x64xf32>
    %111 = vector.shape_cast %110 : vector<1x64x64xf32> to vector<64x64xf32>
    %cst_73 = arith.constant dense<0.000000e+00> : vector<1x64xf32>
    %112 = tpu.matmul %109, %111, %cst_73 {dimension_numbers = #tpu.dot_dimension_numbers<[1], [0], [0], [1], [0, 0, 1, 1], [], []>} : vector<1x64xf32>, vector<64x64xf32>, vector<1x64xf32> -> vector<1x64xf32>
    %113 = arith.addf %108, %112 : vector<1x64xf32>
    %c5 = arith.constant 5 : index
    %c0_74 = arith.constant 0 : index
    %114 = vector.load %arg10[%c5, %c0_74] : memref<10x64xf32, #tpu.memory_space<vmem>>, vector<1x64xf32>
    %c5_75 = arith.constant 5 : index
    %c0_76 = arith.constant 0 : index
    %c0_77 = arith.constant 0 : index
    %115 = vector.load %arg7[%c5_75, %c0_76, %c0_77] : memref<10x64x64xf32, #tpu.memory_space<vmem>>, vector<1x64x64xf32>
    %116 = vector.shape_cast %115 : vector<1x64x64xf32> to vector<64x64xf32>
    %cst_78 = arith.constant dense<0.000000e+00> : vector<1x64xf32>
    %117 = tpu.matmul %114, %116, %cst_78 {dimension_numbers = #tpu.dot_dimension_numbers<[1], [0], [0], [1], [0, 0, 1, 1], [], []>} : vector<1x64xf32>, vector<64x64xf32>, vector<1x64xf32> -> vector<1x64xf32>
    %118 = arith.addf %113, %117 : vector<1x64xf32>
    %c6 = arith.constant 6 : index
    %c0_79 = arith.constant 0 : index
    %119 = vector.load %arg10[%c6, %c0_79] : memref<10x64xf32, #tpu.memory_space<vmem>>, vector<1x64xf32>
    %c6_80 = arith.constant 6 : index
    %c0_81 = arith.constant 0 : index
    %c0_82 = arith.constant 0 : index
    %120 = vector.load %arg7[%c6_80, %c0_81, %c0_82] : memref<10x64x64xf32, #tpu.memory_space<vmem>>, vector<1x64x64xf32>
    %121 = vector.shape_cast %120 : vector<1x64x64xf32> to vector<64x64xf32>
    %cst_83 = arith.constant dense<0.000000e+00> : vector<1x64xf32>
    %122 = tpu.matmul %119, %121, %cst_83 {dimension_numbers = #tpu.dot_dimension_numbers<[1], [0], [0], [1], [0, 0, 1, 1], [], []>} : vector<1x64xf32>, vector<64x64xf32>, vector<1x64xf32> -> vector<1x64xf32>
    %123 = arith.addf %118, %122 : vector<1x64xf32>
    %c7 = arith.constant 7 : index
    %c0_84 = arith.constant 0 : index
    %124 = vector.load %arg10[%c7, %c0_84] : memref<10x64xf32, #tpu.memory_space<vmem>>, vector<1x64xf32>
    %c7_85 = arith.constant 7 : index
    %c0_86 = arith.constant 0 : index
    %c0_87 = arith.constant 0 : index
    %125 = vector.load %arg7[%c7_85, %c0_86, %c0_87] : memref<10x64x64xf32, #tpu.memory_space<vmem>>, vector<1x64x64xf32>
    %126 = vector.shape_cast %125 : vector<1x64x64xf32> to vector<64x64xf32>
    %cst_88 = arith.constant dense<0.000000e+00> : vector<1x64xf32>
    %127 = tpu.matmul %124, %126, %cst_88 {dimension_numbers = #tpu.dot_dimension_numbers<[1], [0], [0], [1], [0, 0, 1, 1], [], []>} : vector<1x64xf32>, vector<64x64xf32>, vector<1x64xf32> -> vector<1x64xf32>
    %128 = arith.addf %123, %127 : vector<1x64xf32>
    %c8 = arith.constant 8 : index
    %c0_89 = arith.constant 0 : index
    %129 = vector.load %arg10[%c8, %c0_89] : memref<10x64xf32, #tpu.memory_space<vmem>>, vector<1x64xf32>
    %c8_90 = arith.constant 8 : index
    %c0_91 = arith.constant 0 : index
    %c0_92 = arith.constant 0 : index
    %130 = vector.load %arg7[%c8_90, %c0_91, %c0_92] : memref<10x64x64xf32, #tpu.memory_space<vmem>>, vector<1x64x64xf32>
    %131 = vector.shape_cast %130 : vector<1x64x64xf32> to vector<64x64xf32>
    %cst_93 = arith.constant dense<0.000000e+00> : vector<1x64xf32>
    %132 = tpu.matmul %129, %131, %cst_93 {dimension_numbers = #tpu.dot_dimension_numbers<[1], [0], [0], [1], [0, 0, 1, 1], [], []>} : vector<1x64xf32>, vector<64x64xf32>, vector<1x64xf32> -> vector<1x64xf32>
    %133 = arith.addf %128, %132 : vector<1x64xf32>
    %c9 = arith.constant 9 : index
    %c0_94 = arith.constant 0 : index
    %134 = vector.load %arg10[%c9, %c0_94] : memref<10x64xf32, #tpu.memory_space<vmem>>, vector<1x64xf32>
    %c9_95 = arith.constant 9 : index
    %c0_96 = arith.constant 0 : index
    %c0_97 = arith.constant 0 : index
    %135 = vector.load %arg7[%c9_95, %c0_96, %c0_97] : memref<10x64x64xf32, #tpu.memory_space<vmem>>, vector<1x64x64xf32>
    %136 = vector.shape_cast %135 : vector<1x64x64xf32> to vector<64x64xf32>
    %cst_98 = arith.constant dense<0.000000e+00> : vector<1x64xf32>
    %137 = tpu.matmul %134, %136, %cst_98 {dimension_numbers = #tpu.dot_dimension_numbers<[1], [0], [0], [1], [0, 0, 1, 1], [], []>} : vector<1x64xf32>, vector<64x64xf32>, vector<1x64xf32> -> vector<1x64xf32>
    %138 = arith.addf %133, %137 : vector<1x64xf32>
    %cst_99 = arith.constant 0.000000e+00 : f32
    %139 = vector.broadcast %cst_99 : f32 to vector<1x64xf32>
    %140 = arith.maximumf %138, %139 : vector<1x64xf32>
    %cst_100 = arith.constant dense<0.000000e+00> : vector<1x16xf32>
    %141 = tpu.matmul %140, %56, %cst_100 {dimension_numbers = #tpu.dot_dimension_numbers<[1], [0], [0], [1], [0, 0, 1, 1], [], []>} : vector<1x64xf32>, vector<64x16xf32>, vector<1x16xf32> -> vector<1x16xf32>
    %c0_101 = arith.constant 0 : index
    %c0_102 = arith.constant 0 : index
    %142 = vector.load %arg9[%c0_101, %c0_102] : memref<2x16xf32, #tpu.memory_space<vmem>>, vector<1x16xf32>
    tpu.vector_store %arg9[%c0_101, %c0_102], %141 {strides = array<i32>} : memref<2x16xf32, #tpu.memory_space<vmem>>, vector<1x16xf32>,
    %143 = vector.extract_strided_slice %55 {offsets = [64, 0], sizes = [64, 64], strides = [1, 1]} : vector<128x64xf32> to vector<64x64xf32>
    %c0_103 = arith.constant 0 : index
    %c0_104 = arith.constant 0 : index
    %144 = vector.load %arg4[%c0_103, %c0_104] : memref<10x64xf32, #tpu.memory_space<vmem>>, vector<10x64xf32>
    %cst_105 = arith.constant dense<0.000000e+00> : vector<10x64xf32>
    %145 = tpu.matmul %144, %143, %cst_105 {dimension_numbers = #tpu.dot_dimension_numbers<[1], [1], [0], [0], [0, 0, 1, 0], [], []>} : vector<10x64xf32>, vector<64x64xf32>, vector<10x64xf32> -> vector<10x64xf32>
    %c1_106 = arith.constant 1 : index
    %c0_107 = arith.constant 0 : index
    %c0_108 = arith.constant 0 : index
    %146 = vector.load %arg0[%c1_106, %c0_107, %c0_108] : memref<2x10x64xf32, #tpu.memory_space<vmem>>, vector<1x10x64xf32>
    %147 = vector.shape_cast %146 : vector<1x10x64xf32> to vector<10x64xf32>
    %148 = arith.addf %145, %147 : vector<10x64xf32>
    %cst_109 = arith.constant dense<0.000000e+00> : vector<10xf32>
    %149 = vector.multi_reduction <add>, %148, %cst_109 [1] : vector<10x64xf32> to vector<10xf32>
    %150 = vector.shape_cast %149 : vector<10xf32> to vector<10x1xf32>
    %cst_110 = arith.constant 6.400000e+01 : f32
    %151 = vector.broadcast %cst_110 : f32 to vector<10x1xf32>
    %152 = arith.divf %150, %151 : vector<10x1xf32>
    %153 = vector.broadcast %152 : vector<10x1xf32> to vector<10x64xf32>
    %154 = arith.subf %148, %153 : vector<10x64xf32>
    %155 = arith.mulf %154, %154 : vector<10x64xf32>
    %cst_111 = arith.constant dense<0.000000e+00> : vector<10xf32>
    %156 = vector.multi_reduction <add>, %155, %cst_111 [1] : vector<10x64xf32> to vector<10xf32>
    %157 = vector.shape_cast %156 : vector<10xf32> to vector<10x1xf32>
    %cst_112 = arith.constant 6.400000e+01 : f32
    %158 = vector.broadcast %cst_112 : f32 to vector<10x1xf32>
    %159 = arith.divf %157, %158 : vector<10x1xf32>
    %160 = vector.broadcast %152 : vector<10x1xf32> to vector<10x64xf32>
    %161 = arith.subf %148, %160 : vector<10x64xf32>
    %cst_113 = arith.constant 9.99999974E-6 : f32
    %162 = vector.broadcast %cst_113 : f32 to vector<10x1xf32>
    %163 = arith.addf %159, %162 : vector<10x1xf32>
    %164 = math.rsqrt %163 : vector<10x1xf32>
    %165 = vector.broadcast %164 : vector<10x1xf32> to vector<10x64xf32>
    %166 = arith.mulf %161, %165 : vector<10x64xf32>
    %167 = vector.broadcast %57 : vector<1x64xf32> to vector<10x64xf32>
    %168 = arith.mulf %166, %167 : vector<10x64xf32>
    %169 = vector.broadcast %58 : vector<1x64xf32> to vector<10x64xf32>
    %170 = arith.addf %168, %169 : vector<10x64xf32>
    %c0_114 = arith.constant 0 : index
    %c0_115 = arith.constant 0 : index
    %171 = vector.load %arg10[%c0_114, %c0_115] : memref<10x64xf32, #tpu.memory_space<vmem>>, vector<10x64xf32>
    tpu.vector_store %arg10[%c0_114, %c0_115], %170 {strides = array<i32>} : memref<10x64xf32, #tpu.memory_space<vmem>>, vector<10x64xf32>,
    %cst_116 = arith.constant 0.000000e+00 : f32
    %172 = vector.broadcast %cst_116 : f32 to vector<1x64xf32>
    %c0_117 = arith.constant 0 : index
    %c0_118 = arith.constant 0 : index
    %173 = vector.load %arg10[%c0_117, %c0_118] : memref<10x64xf32, #tpu.memory_space<vmem>>, vector<1x64xf32>
    %c0_119 = arith.constant 0 : index
    %c0_120 = arith.constant 0 : index
    %c0_121 = arith.constant 0 : index
    %174 = vector.load %arg7[%c0_119, %c0_120, %c0_121] : memref<10x64x64xf32, #tpu.memory_space<vmem>>, vector<1x64x64xf32>
    %175 = vector.shape_cast %174 : vector<1x64x64xf32> to vector<64x64xf32>
    %cst_122 = arith.constant dense<0.000000e+00> : vector<1x64xf32>
    %176 = tpu.matmul %173, %175, %cst_122 {dimension_numbers = #tpu.dot_dimension_numbers<[1], [0], [0], [1], [0, 0, 1, 1], [], []>} : vector<1x64xf32>, vector<64x64xf32>, vector<1x64xf32> -> vector<1x64xf32>
    %177 = arith.addf %172, %176 : vector<1x64xf32>
    %c1_123 = arith.constant 1 : index
    %c0_124 = arith.constant 0 : index
    %178 = vector.load %arg10[%c1_123, %c0_124] : memref<10x64xf32, #tpu.memory_space<vmem>>, vector<1x64xf32>
    %c1_125 = arith.constant 1 : index
    %c0_126 = arith.constant 0 : index
    %c0_127 = arith.constant 0 : index
    %179 = vector.load %arg7[%c1_125, %c0_126, %c0_127] : memref<10x64x64xf32, #tpu.memory_space<vmem>>, vector<1x64x64xf32>
    %180 = vector.shape_cast %179 : vector<1x64x64xf32> to vector<64x64xf32>
    %cst_128 = arith.constant dense<0.000000e+00> : vector<1x64xf32>
    %181 = tpu.matmul %178, %180, %cst_128 {dimension_numbers = #tpu.dot_dimension_numbers<[1], [0], [0], [1], [0, 0, 1, 1], [], []>} : vector<1x64xf32>, vector<64x64xf32>, vector<1x64xf32> -> vector<1x64xf32>
    %182 = arith.addf %177, %181 : vector<1x64xf32>
    %c2_129 = arith.constant 2 : index
    %c0_130 = arith.constant 0 : index
    %183 = vector.load %arg10[%c2_129, %c0_130] : memref<10x64xf32, #tpu.memory_space<vmem>>, vector<1x64xf32>
    %c2_131 = arith.constant 2 : index
    %c0_132 = arith.constant 0 : index
    %c0_133 = arith.constant 0 : index
    %184 = vector.load %arg7[%c2_131, %c0_132, %c0_133] : memref<10x64x64xf32, #tpu.memory_space<vmem>>, vector<1x64x64xf32>
    %185 = vector.shape_cast %184 : vector<1x64x64xf32> to vector<64x64xf32>
    %cst_134 = arith.constant dense<0.000000e+00> : vector<1x64xf32>
    %186 = tpu.matmul %183, %185, %cst_134 {dimension_numbers = #tpu.dot_dimension_numbers<[1], [0], [0], [1], [0, 0, 1, 1], [], []>} : vector<1x64xf32>, vector<64x64xf32>, vector<1x64xf32> -> vector<1x64xf32>
    %187 = arith.addf %182, %186 : vector<1x64xf32>
    %c3_135 = arith.constant 3 : index
    %c0_136 = arith.constant 0 : index
    %188 = vector.load %arg10[%c3_135, %c0_136] : memref<10x64xf32, #tpu.memory_space<vmem>>, vector<1x64xf32>
    %c3_137 = arith.constant 3 : index
    %c0_138 = arith.constant 0 : index
    %c0_139 = arith.constant 0 : index
    %189 = vector.load %arg7[%c3_137, %c0_138, %c0_139] : memref<10x64x64xf32, #tpu.memory_space<vmem>>, vector<1x64x64xf32>
    %190 = vector.shape_cast %189 : vector<1x64x64xf32> to vector<64x64xf32>
    %cst_140 = arith.constant dense<0.000000e+00> : vector<1x64xf32>
    %191 = tpu.matmul %188, %190, %cst_140 {dimension_numbers = #tpu.dot_dimension_numbers<[1], [0], [0], [1], [0, 0, 1, 1], [], []>} : vector<1x64xf32>, vector<64x64xf32>, vector<1x64xf32> -> vector<1x64xf32>
    %192 = arith.addf %187, %191 : vector<1x64xf32>
    %c4_141 = arith.constant 4 : index
    %c0_142 = arith.constant 0 : index
    %193 = vector.load %arg10[%c4_141, %c0_142] : memref<10x64xf32, #tpu.memory_space<vmem>>, vector<1x64xf32>
    %c4_143 = arith.constant 4 : index
    %c0_144 = arith.constant 0 : index
    %c0_145 = arith.constant 0 : index
    %194 = vector.load %arg7[%c4_143, %c0_144, %c0_145] : memref<10x64x64xf32, #tpu.memory_space<vmem>>, vector<1x64x64xf32>
    %195 = vector.shape_cast %194 : vector<1x64x64xf32> to vector<64x64xf32>
    %cst_146 = arith.constant dense<0.000000e+00> : vector<1x64xf32>
    %196 = tpu.matmul %193, %195, %cst_146 {dimension_numbers = #tpu.dot_dimension_numbers<[1], [0], [0], [1], [0, 0, 1, 1], [], []>} : vector<1x64xf32>, vector<64x64xf32>, vector<1x64xf32> -> vector<1x64xf32>
    %197 = arith.addf %192, %196 : vector<1x64xf32>
    %c5_147 = arith.constant 5 : index
    %c0_148 = arith.constant 0 : index
    %198 = vector.load %arg10[%c5_147, %c0_148] : memref<10x64xf32, #tpu.memory_space<vmem>>, vector<1x64xf32>
    %c5_149 = arith.constant 5 : index
    %c0_150 = arith.constant 0 : index
    %c0_151 = arith.constant 0 : index
    %199 = vector.load %arg7[%c5_149, %c0_150, %c0_151] : memref<10x64x64xf32, #tpu.memory_space<vmem>>, vector<1x64x64xf32>
    %200 = vector.shape_cast %199 : vector<1x64x64xf32> to vector<64x64xf32>
    %cst_152 = arith.constant dense<0.000000e+00> : vector<1x64xf32>
    %201 = tpu.matmul %198, %200, %cst_152 {dimension_numbers = #tpu.dot_dimension_numbers<[1], [0], [0], [1], [0, 0, 1, 1], [], []>} : vector<1x64xf32>, vector<64x64xf32>, vector<1x64xf32> -> vector<1x64xf32>
    %202 = arith.addf %197, %201 : vector<1x64xf32>
    %c6_153 = arith.constant 6 : index
    %c0_154 = arith.constant 0 : index
    %203 = vector.load %arg10[%c6_153, %c0_154] : memref<10x64xf32, #tpu.memory_space<vmem>>, vector<1x64xf32>
    %c6_155 = arith.constant 6 : index
    %c0_156 = arith.constant 0 : index
    %c0_157 = arith.constant 0 : index
    %204 = vector.load %arg7[%c6_155, %c0_156, %c0_157] : memref<10x64x64xf32, #tpu.memory_space<vmem>>, vector<1x64x64xf32>
    %205 = vector.shape_cast %204 : vector<1x64x64xf32> to vector<64x64xf32>
    %cst_158 = arith.constant dense<0.000000e+00> : vector<1x64xf32>
    %206 = tpu.matmul %203, %205, %cst_158 {dimension_numbers = #tpu.dot_dimension_numbers<[1], [0], [0], [1], [0, 0, 1, 1], [], []>} : vector<1x64xf32>, vector<64x64xf32>, vector<1x64xf32> -> vector<1x64xf32>
    %207 = arith.addf %202, %206 : vector<1x64xf32>
    %c7_159 = arith.constant 7 : index
    %c0_160 = arith.constant 0 : index
    %208 = vector.load %arg10[%c7_159, %c0_160] : memref<10x64xf32, #tpu.memory_space<vmem>>, vector<1x64xf32>
    %c7_161 = arith.constant 7 : index
    %c0_162 = arith.constant 0 : index
    %c0_163 = arith.constant 0 : index
    %209 = vector.load %arg7[%c7_161, %c0_162, %c0_163] : memref<10x64x64xf32, #tpu.memory_space<vmem>>, vector<1x64x64xf32>
    %210 = vector.shape_cast %209 : vector<1x64x64xf32> to vector<64x64xf32>
    %cst_164 = arith.constant dense<0.000000e+00> : vector<1x64xf32>
    %211 = tpu.matmul %208, %210, %cst_164 {dimension_numbers = #tpu.dot_dimension_numbers<[1], [0], [0], [1], [0, 0, 1, 1], [], []>} : vector<1x64xf32>, vector<64x64xf32>, vector<1x64xf32> -> vector<1x64xf32>
    %212 = arith.addf %207, %211 : vector<1x64xf32>
    %c8_165 = arith.constant 8 : index
    %c0_166 = arith.constant 0 : index
    %213 = vector.load %arg10[%c8_165, %c0_166] : memref<10x64xf32, #tpu.memory_space<vmem>>, vector<1x64xf32>
    %c8_167 = arith.constant 8 : index
    %c0_168 = arith.constant 0 : index
    %c0_169 = arith.constant 0 : index
    %214 = vector.load %arg7[%c8_167, %c0_168, %c0_169] : memref<10x64x64xf32, #tpu.memory_space<vmem>>, vector<1x64x64xf32>
    %215 = vector.shape_cast %214 : vector<1x64x64xf32> to vector<64x64xf32>
    %cst_170 = arith.constant dense<0.000000e+00> : vector<1x64xf32>
    %216 = tpu.matmul %213, %215, %cst_170 {dimension_numbers = #tpu.dot_dimension_numbers<[1], [0], [0], [1], [0, 0, 1, 1], [], []>} : vector<1x64xf32>, vector<64x64xf32>, vector<1x64xf32> -> vector<1x64xf32>
    %217 = arith.addf %212, %216 : vector<1x64xf32>
    %c9_171 = arith.constant 9 : index
    %c0_172 = arith.constant 0 : index
    %218 = vector.load %arg10[%c9_171, %c0_172] : memref<10x64xf32, #tpu.memory_space<vmem>>, vector<1x64xf32>
    %c9_173 = arith.constant 9 : index
    %c0_174 = arith.constant 0 : index
    %c0_175 = arith.constant 0 : index
    %219 = vector.load %arg7[%c9_173, %c0_174, %c0_175] : memref<10x64x64xf32, #tpu.memory_space<vmem>>, vector<1x64x64xf32>
    %220 = vector.shape_cast %219 : vector<1x64x64xf32> to vector<64x64xf32>
    %cst_176 = arith.constant dense<0.000000e+00> : vector<1x64xf32>
    %221 = tpu.matmul %218, %220, %cst_176 {dimension_numbers = #tpu.dot_dimension_numbers<[1], [0], [0], [1], [0, 0, 1, 1], [], []>} : vector<1x64xf32>, vector<64x64xf32>, vector<1x64xf32> -> vector<1x64xf32>
    %222 = arith.addf %217, %221 : vector<1x64xf32>
    %cst_177 = arith.constant 0.000000e+00 : f32
    %223 = vector.broadcast %cst_177 : f32 to vector<1x64xf32>
    %224 = arith.maximumf %222, %223 : vector<1x64xf32>
    %cst_178 = arith.constant dense<0.000000e+00> : vector<1x16xf32>
    %225 = tpu.matmul %224, %56, %cst_178 {dimension_numbers = #tpu.dot_dimension_numbers<[1], [0], [0], [1], [0, 0, 1, 1], [], []>} : vector<1x64xf32>, vector<64x16xf32>, vector<1x16xf32> -> vector<1x16xf32>
    %c1_179 = arith.constant 1 : index
    %c0_180 = arith.constant 0 : index
    %226 = vector.load %arg9[%c1_179, %c0_180] : memref<2x16xf32, #tpu.memory_space<vmem>>, vector<1x16xf32>
    tpu.vector_store %arg9[%c1_179, %c0_180], %225 {strides = array<i32>} : memref<2x16xf32, #tpu.memory_space<vmem>>, vector<1x16xf32>,
    return
  }
}

</mosaic_0001>

<llo_original>
// kernel: forward.1
$region0: #{forward.1}
  #allocation0 [shape = 'u32[]', space=smem, size = 0x4, offset = 0x4, fixed_abs, tag = 'smem constant byte address 0x4 - core index']
  #allocation1 [shape = 'u32[72,128]{1,0:T(1,128)}', space=vmem, size = 0x9000, scoped, tag = 'internal scratch']
  #allocation2 [shape = 'f32[10,64]{1,0:T(8,128)}', space=vmem, size = 0x2000, scoped, tag = 'scratch operand']
  %s0 = inlined_call_operand.vmem [shape: f32[2,10,64], index: 0, kind: input, shape index: {}]
  %s1 = inlined_call_operand.vmem [shape: f32[10,192], index: 1, kind: input, shape index: {}]
  %s2 = inlined_call_operand.vmem [shape: f32[64,64], index: 2, kind: input, shape index: {}]
  %s3 = inlined_call_operand.vmem [shape: f32[64,64], index: 3, kind: input, shape index: {}]
  %s4 = inlined_call_operand.vmem [shape: f32[10,64], index: 4, kind: input, shape index: {}]
  %s5 = inlined_call_operand.vmem [shape: f32[1,64], index: 5, kind: input, shape index: {}]
  %s6 = inlined_call_operand.vmem [shape: f32[1,64], index: 6, kind: input, shape index: {}]
  %s7 = inlined_call_operand.hbm [shape: f32[10,64,64], index: 7, kind: input, shape index: {}]
  %s8 = inlined_call_operand.vmem [shape: f32[64,16], index: 8, kind: input, shape index: {}]
  %s9 = inlined_call_operand.hbm [shape: f32[2,16], index: 9, kind: output, shape index: {}]
  %s10 = sld [smem:[#allocation0]]
  $region50: #{forward.1} parent=0
    _
  %s12 = ssub.s32 1, %s10
  %s13 = scalar_select 0, %s12, %s10
  $region1: #{forward.1} parent=0
    #allocation3 [shape = 'u8[327680]{0}', space=vmem, size = 0x50000, scoped, tag = 'input window, operand 7, single buffered']
    #allocation4 [shape = 's32[1]{0}', space=sflag, size = 0x4, scoped, tag = 'scoped memory for forward.1']
    #allocation5 [shape = 's32[1]{0}', space=sflag, size = 0x4, scoped, tag = 'scoped memory for forward.1']
    #allocation6 [shape = 'u8[1024]{0}', space=vmem, size = 0x400, scoped, tag = 'output window, operand 0, single buffered']
    %14 = vsyncpa [#allocation4], 0
    %15 = vsyncpa [#allocation5], 0
    // Predicated region
    $region2: #{forward.1} parent=1 // pred_check
      _
    $region3: #{forward.1} parent=1 // pred_check_branch
      %17 = sbr.rel (0) target = $region5
    $region4: #{forward.1} parent=1 // pred_region
      _
    $region5: #{forward.1} parent=1 // pred_fallthru
      _
    // Predicated region
    $region6: #{forward.1} parent=1 // pred_check
      _
    $region7: #{forward.1} parent=1 // pred_check_branch
      %19 = sbr.rel (0) target = $region9
    $region8: #{forward.1} parent=1 // pred_region
      _
    $region9: #{forward.1} parent=1 // pred_fallthru
      _
    // Predicated region
    $region10: #{forward.1} parent=1 // pred_check
      _
    $region11: #{forward.1} parent=1 // pred_check_branch
      %21 = sbr.rel (0) target = $region13
    $region12: #{forward.1} parent=1 // pred_region
      _
    $region13: #{forward.1} parent=1 // pred_fallthru
      _
    // Predicated region
    $region14: #{forward.1} parent=1 // pred_check
      _
    $region15: #{forward.1} parent=1 // pred_check_branch
      %23 = sbr.rel (0) target = $region17
    $region16: #{forward.1} parent=1 // pred_region
      _
    $region17: #{forward.1} parent=1 // pred_fallthru
      _
    // Predicated region
    $region18: #{forward.1} parent=1 // pred_check
      _
    $region19: #{forward.1} parent=1 // pred_check_branch
      %25 = sbr.rel (0) target = $region21
    $region20: #{forward.1} parent=1 // pred_region
      _
    $region21: #{forward.1} parent=1 // pred_fallthru
      _
    // Predicated region
    $region22: #{forward.1} parent=1 // pred_check
      _
    $region23: #{forward.1} parent=1 // pred_check_branch
      %27 = sbr.rel (0) target = $region25
    $region24: #{forward.1} parent=1 // pred_region
      _
    $region25: #{forward.1} parent=1 // pred_fallthru
      _
    // Predicated region
    $region26: #{forward.1} parent=1 // pred_check
      _
    $region27: #{forward.1} parent=1 // pred_check_branch
      %29 = sbr.rel (0) target = $region29
    $region28: #{forward.1} parent=1 // pred_region
      _
    $region29: #{forward.1} parent=1 // pred_fallthru
      _
    // Predicated region
    $region30: #{forward.1} parent=1 // pred_check
      _
    $region31: #{forward.1} parent=1 // pred_check_branch
      %31 = sbr.rel (0) target = $region33
    $region32: #{forward.1} parent=1 // pred_region
      %33 = vsyncadd [#allocation4], 0
      %s34 = sshll.u32 %s7, 4
      %s35 = int_to_ptr.hbm [resolvable:$true] %s34
      %s36 = sshll.u32 [#allocation3], 4
      %s37 = int_to_ptr.vmem [resolvable:$true] %s36
      %42 = dma.hbm_to_vmem [thread:$0]  %s35, 10240, %s37, [#allocation4], 128, 128, 8
    $region33: #{forward.1} parent=1 // pred_fallthru
      _
    // Predicated region
    $region34: #{forward.1} parent=1 // pred_check
      _
    $region35: #{forward.1} parent=1 // pred_check_branch
      %44 = sbr.rel (0) target = $region37
    $region36: #{forward.1} parent=1 // pred_region
      _
    $region37: #{forward.1} parent=1 // pred_fallthru
      _
    // Predicated region
    $region38: #{forward.1} parent=1 // pred_check
      _
    $region39: #{forward.1} parent=1 // pred_check_branch
      %46 = sbr.rel (0) target = $region41
    $region40: #{forward.1} parent=1 // pred_region
      %48 = dma.done [#allocation4], 10240
    $region41: #{forward.1} parent=1 // pred_fallthru
      _
    %v49 = vld [vmem:[%s0] sm:$0xff]
    %v50 = vld [vmem:[%s0 + $0x8] sm:$0x3]
    %51 = vxpose.xlu0.b32.start [1/16] %v49, 128
    %52 = vxpose.xlu0.b32.cont [2/16] %v50, 128
    %53 = vxpose.xlu0.b32.cont [3/16] 0.0, 128
    %54 = vxpose.xlu0.b32.cont [4/16] 0.0, 128
    %55 = vxpose.xlu0.b32.cont [5/16] 0.0, 128
    %56 = vxpose.xlu0.b32.cont [6/16] 0.0, 128
    %57 = vxpose.xlu0.b32.cont [7/16] 0.0, 128
    %58 = vxpose.xlu0.b32.cont [8/16] 0.0, 128
    %59 = vxpose.xlu0.b32.cont [9/16] 0.0, 128
    %60 = vxpose.xlu0.b32.cont [10/16] 0.0, 128
    %61 = vxpose.xlu0.b32.cont [11/16] 0.0, 128
    %62 = vxpose.xlu0.b32.cont [12/16] 0.0, 128
    %63 = vxpose.xlu0.b32.cont [13/16] 0.0, 128
    %64 = vxpose.xlu0.b32.cont [14/16] 0.0, 128
    %65 = vxpose.xlu0.b32.cont [15/16] 0.0, 128
    %66 = vxpose.xlu0.b32.end [16/16] 0.0, 128
    %v67 = vpop.trf.xlu0
    %v68 = vpop.trf.xlu0
    %v69 = vpop.trf.xlu0
    %v70 = vpop.trf.xlu0
    %v71 = vpop.trf.xlu0
    %v72 = vpop.trf.xlu0
    %v73 = vpop.trf.xlu0
    %v74 = vpop.trf.xlu0
    %v75 = vpop.trf.xlu0
    %v76 = vpop.trf.xlu0
    %v77 = vpop.trf.xlu0
    %v78 = vpop.trf.xlu0
    %v79 = vpop.trf.xlu0
    %v80 = vpop.trf.xlu0
    %v81 = vpop.trf.xlu0
    %v82 = vpop.trf.xlu0
    %s83 = scalar_lea.vmem %s0, 16
    %v84 = vld [vmem:[%s83] sm:$0xff]
    %v85 = vld [vmem:[%s83 + $0x8] sm:$0x3]
    %86 = vxpose.xlu0.b32.start [1/16] %v84, 128
    %87 = vxpose.xlu0.b32.cont [2/16] %v85, 128
    %88 = vxpose.xlu0.b32.cont [3/16] 0.0, 128
    %89 = vxpose.xlu0.b32.cont [4/16] 0.0, 128
    %90 = vxpose.xlu0.b32.cont [5/16] 0.0, 128
    %91 = vxpose.xlu0.b32.cont [6/16] 0.0, 128
    %92 = vxpose.xlu0.b32.cont [7/16] 0.0, 128
    %93 = vxpose.xlu0.b32.cont [8/16] 0.0, 128
    %94 = vxpose.xlu0.b32.cont [9/16] 0.0, 128
    %95 = vxpose.xlu0.b32.cont [10/16] 0.0, 128
    %96 = vxpose.xlu0.b32.cont [11/16] 0.0, 128
    %97 = vxpose.xlu0.b32.cont [12/16] 0.0, 128
    %98 = vxpose.xlu0.b32.cont [13/16] 0.0, 128
    %99 = vxpose.xlu0.b32.cont [14/16] 0.0, 128
    %100 = vxpose.xlu0.b32.cont [15/16] 0.0, 128
    %101 = vxpose.xlu0.b32.end [16/16] 0.0, 128
    %v102 = vpop.trf.xlu0
    %v103 = vpop.trf.xlu0
    %v104 = vpop.trf.xlu0
    %v105 = vpop.trf.xlu0
    %v106 = vpop.trf.xlu0
    %v107 = vpop.trf.xlu0
    %v108 = vpop.trf.xlu0
    %v109 = vpop.trf.xlu0
    %v110 = vpop.trf.xlu0
    %v111 = vpop.trf.xlu0
    %v112 = vpop.trf.xlu0
    %v113 = vpop.trf.xlu0
    %v114 = vpop.trf.xlu0
    %v115 = vpop.trf.xlu0
    %v116 = vpop.trf.xlu0
    %v117 = vpop.trf.xlu0
    %v118 = vld [vmem:[%s1] sm:$0xff]
    %v119 = vld [vmem:[%s1 + $0x8] sm:$0xff]
    %v120 = vld [vmem:[%s1 + $0x10] sm:$0x3]
    %v121 = vld [vmem:[%s1 + $0x18] sm:$0x3]
    %vm122 = vcmask 80896
    %v124 = vsel %vm122, %v67, 0
    %v127 = vsel %vm122, %v68, 0
    %v130 = vsel %vm122, %v69, 0
    %v133 = vsel %vm122, %v70, 0
    %v136 = vsel %vm122, %v71, 0
    %v139 = vsel %vm122, %v72, 0
    %v142 = vsel %vm122, %v73, 0
    %v145 = vsel %vm122, %v74, 0
    %v148 = vsel %vm122, %v102, 0
    %v151 = vsel %vm122, %v103, 0
    %v154 = vsel %vm122, %v104, 0
    %v157 = vsel %vm122, %v105, 0
    %v160 = vsel %vm122, %v106, 0
    %v163 = vsel %vm122, %v107, 0
    %v166 = vsel %vm122, %v108, 0
    %v169 = vsel %vm122, %v109, 0
    %vm171 = vcmask 1041408
    %v173 = vsel %vm171, %v120, 0
    %v176 = vsel %vm171, %v121, 0
    %178 = vmatpush.msra.mxu0 0.0
    %179 = vmatpush.msra.mxu0 0.0
    %180 = vmatpush.msra.mxu0 0.0
    %181 = vmatpush.msra.mxu0 0.0
    %182 = vmatpush.msra.mxu0 0.0
    %183 = vmatpush.msra.mxu0 0.0
    %184 = vmatpush.msra.mxu0 0.0
    %185 = vmatpush.msra.mxu0 0.0
    %186 = vmatpush.msra.mxu0 0.0
    %187 = vmatpush.msra.mxu0 0.0
    %188 = vmatpush.msra.mxu0 0.0
    %189 = vmatpush.msra.mxu0 0.0
    %190 = vmatpush.msra.mxu0 0.0
    %191 = vmatpush.msra.mxu0 0.0
    %192 = vmatpush.msra.mxu0 %v173
    %193 = vmatpush.msra.mxu0 %v118
    %194 = vmatmul.f32.gmra.mxu0 %v124
    %v195 = vpop.f32.mrf.mxu0
    %v196 = vadd.f32 0.0, %v195
    %197 = vmatmul.f32.gmra.mxu0 %v127
    %v198 = vpop.f32.mrf.mxu0
    %v199 = vadd.f32 0.0, %v198
    %200 = vmatmul.f32.gmra.mxu0 %v130
    %v201 = vpop.f32.mrf.mxu0
    %v202 = vadd.f32 0.0, %v201
    %203 = vmatmul.f32.gmra.mxu0 %v133
    %v204 = vpop.f32.mrf.mxu0
    %v205 = vadd.f32 0.0, %v204
    %206 = vmatmul.f32.gmra.mxu0 %v136
    %v207 = vpop.f32.mrf.mxu0
    %v208 = vadd.f32 0.0, %v207
    %209 = vmatmul.f32.gmra.mxu0 %v139
    %v210 = vpop.f32.mrf.mxu0
    %v211 = vadd.f32 0.0, %v210
    %212 = vmatmul.f32.gmra.mxu0 %v142
    %v213 = vpop.f32.mrf.mxu0
    %v214 = vadd.f32 0.0, %v213
    %215 = vmatmul.f32.gmra.mxu0 %v145
    %v216 = vpop.f32.mrf.mxu0
    %v217 = vadd.f32 0.0, %v216
    %218 = vmatmul.f32.gmra.mxu0 %v148
    %v219 = vpop.f32.mrf.mxu0
    %v220 = vadd.f32 0.0, %v219
    %221 = vmatmul.f32.gmra.mxu0 %v151
    %v222 = vpop.f32.mrf.mxu0
    %v223 = vadd.f32 0.0, %v222
    %224 = vmatmul.f32.gmra.mxu0 %v154
    %v225 = vpop.f32.mrf.mxu0
    %v226 = vadd.f32 0.0, %v225
    %227 = vmatmul.f32.gmra.mxu0 %v157
    %v228 = vpop.f32.mrf.mxu0
    %v229 = vadd.f32 0.0, %v228
    %230 = vmatmul.f32.gmra.mxu0 %v160
    %v231 = vpop.f32.mrf.mxu0
    %v232 = vadd.f32 0.0, %v231
    %233 = vmatmul.f32.gmra.mxu0 %v163
    %v234 = vpop.f32.mrf.mxu0
    %v235 = vadd.f32 0.0, %v234
    %236 = vmatmul.f32.gmra.mxu0 %v166
    %v237 = vpop.f32.mrf.mxu0
    %v238 = vadd.f32 0.0, %v237
    %239 = vmatmul.f32.gmra.mxu0 %v169
    %v240 = vpop.f32.mrf.mxu0
    %v241 = vadd.f32 0.0, %v240
    %242 = vdwg.mxu0
    %243 = vmatpush.msra.mxu0 0.0
    %244 = vmatpush.msra.mxu0 0.0
    %245 = vmatpush.msra.mxu0 0.0
    %246 = vmatpush.msra.mxu0 0.0
    %247 = vmatpush.msra.mxu0 0.0
    %248 = vmatpush.msra.mxu0 0.0
    %249 = vmatpush.msra.mxu0 0.0
    %250 = vmatpush.msra.mxu0 0.0
    %251 = vmatpush.msra.mxu0 0.0
    %252 = vmatpush.msra.mxu0 0.0
    %253 = vmatpush.msra.mxu0 0.0
    %254 = vmatpush.msra.mxu0 0.0
    %255 = vmatpush.msra.mxu0 0.0
    %256 = vmatpush.msra.mxu0 0.0
    %257 = vmatpush.msra.mxu0 %v176
    %258 = vmatpush.msra.mxu0 %v119
    %259 = vmatmul.f32.gmra.mxu0 %v124
    %v260 = vpop.f32.mrf.mxu0
    %v261 = vadd.f32 0.0, %v260
    %262 = vmatmul.f32.gmra.mxu0 %v127
    %v263 = vpop.f32.mrf.mxu0
    %v264 = vadd.f32 0.0, %v263
    %265 = vmatmul.f32.gmra.mxu0 %v130
    %v266 = vpop.f32.mrf.mxu0
    %v267 = vadd.f32 0.0, %v266
    %268 = vmatmul.f32.gmra.mxu0 %v133
    %v269 = vpop.f32.mrf.mxu0
    %v270 = vadd.f32 0.0, %v269
    %271 = vmatmul.f32.gmra.mxu0 %v136
    %v272 = vpop.f32.mrf.mxu0
    %v273 = vadd.f32 0.0, %v272
    %274 = vmatmul.f32.gmra.mxu0 %v139
    %v275 = vpop.f32.mrf.mxu0
    %v276 = vadd.f32 0.0, %v275
    %277 = vmatmul.f32.gmra.mxu0 %v142
    %v278 = vpop.f32.mrf.mxu0
    %v279 = vadd.f32 0.0, %v278
    %280 = vmatmul.f32.gmra.mxu0 %v145
    %v281 = vpop.f32.mrf.mxu0
    %v282 = vadd.f32 0.0, %v281
    %283 = vmatmul.f32.gmra.mxu0 %v148
    %v284 = vpop.f32.mrf.mxu0
    %v285 = vadd.f32 0.0, %v284
    %286 = vmatmul.f32.gmra.mxu0 %v151
    %v287 = vpop.f32.mrf.mxu0
    %v288 = vadd.f32 0.0, %v287
    %289 = vmatmul.f32.gmra.mxu0 %v154
    %v290 = vpop.f32.mrf.mxu0
    %v291 = vadd.f32 0.0, %v290
    %292 = vmatmul.f32.gmra.mxu0 %v157
    %v293 = vpop.f32.mrf.mxu0
    %v294 = vadd.f32 0.0, %v293
    %295 = vmatmul.f32.gmra.mxu0 %v160
    %v296 = vpop.f32.mrf.mxu0
    %v297 = vadd.f32 0.0, %v296
    %298 = vmatmul.f32.gmra.mxu0 %v163
    %v299 = vpop.f32.mrf.mxu0
    %v300 = vadd.f32 0.0, %v299
    %301 = vmatmul.f32.gmra.mxu0 %v166
    %v302 = vpop.f32.mrf.mxu0
    %v303 = vadd.f32 0.0, %v302
    %304 = vmatmul.f32.gmra.mxu0 %v169
    %v305 = vpop.f32.mrf.mxu0
    %v306 = vadd.f32 0.0, %v305
    %307 = vdwg.mxu0
    %324 = vrot.lane.b32.xlu0 %v196, 64
    %v325 = vpop.permute.xlu0 %324
    %326 = vrot.lane.b32.xlu0 %v199, 64
    %v327 = vpop.permute.xlu0 %326
    %328 = vrot.lane.b32.xlu0 %v202, 64
    %v329 = vpop.permute.xlu0 %328
    %330 = vrot.lane.b32.xlu0 %v205, 64
    %v331 = vpop.permute.xlu0 %330
    %332 = vrot.lane.b32.xlu0 %v208, 64
    %v333 = vpop.permute.xlu0 %332
    %334 = vrot.lane.b32.xlu0 %v211, 64
    %v335 = vpop.permute.xlu0 %334
    %336 = vrot.lane.b32.xlu0 %v214, 64
    %v337 = vpop.permute.xlu0 %336
    %338 = vrot.lane.b32.xlu0 %v217, 64
    %v339 = vpop.permute.xlu0 %338
    %340 = vrot.lane.b32.xlu0 %v220, 64
    %v341 = vpop.permute.xlu0 %340
    %342 = vrot.lane.b32.xlu0 %v223, 64
    %v343 = vpop.permute.xlu0 %342
    %344 = vrot.lane.b32.xlu0 %v226, 64
    %v345 = vpop.permute.xlu0 %344
    %346 = vrot.lane.b32.xlu0 %v229, 64
    %v347 = vpop.permute.xlu0 %346
    %348 = vrot.lane.b32.xlu0 %v232, 64
    %v349 = vpop.permute.xlu0 %348
    %350 = vrot.lane.b32.xlu0 %v235, 64
    %v351 = vpop.permute.xlu0 %350
    %352 = vrot.lane.b32.xlu0 %v238, 64
    %v353 = vpop.permute.xlu0 %352
    %354 = vrot.lane.b32.xlu0 %v241, 64
    %v355 = vpop.permute.xlu0 %354
    %vm356 = vcmask 261120
    %v357 = vsel %vm356, %v196, 0
    %v359 = vsel %vm356, %v199, 0
    %v361 = vsel %vm356, %v202, 0
    %v363 = vsel %vm356, %v205, 0
    %v365 = vsel %vm356, %v208, 0
    %v367 = vsel %vm356, %v211, 0
    %v369 = vsel %vm356, %v214, 0
    %v371 = vsel %vm356, %v217, 0
    %v373 = vsel %vm356, %v220, 0
    %v375 = vsel %vm356, %v223, 0
    %v377 = vsel %vm356, %v226, 0
    %v379 = vsel %vm356, %v229, 0
    %v381 = vsel %vm356, %v232, 0
    %v383 = vsel %vm356, %v235, 0
    %v385 = vsel %vm356, %v238, 0
    %v387 = vsel %vm356, %v241, 0
    %v389 = vsel %vm356, %v325, 0
    %v391 = vsel %vm356, %v327, 0
    %v393 = vsel %vm356, %v329, 0
    %v395 = vsel %vm356, %v331, 0
    %v397 = vsel %vm356, %v333, 0
    %v399 = vsel %vm356, %v335, 0
    %v401 = vsel %vm356, %v337, 0
    %v403 = vsel %vm356, %v339, 0
    %v405 = vsel %vm356, %v341, 0
    %v407 = vsel %vm356, %v343, 0
    %v409 = vsel %vm356, %v345, 0
    %v411 = vsel %vm356, %v347, 0
    %v413 = vsel %vm356, %v349, 0
    %v415 = vsel %vm356, %v351, 0
    %v417 = vsel %vm356, %v353, 0
    %v419 = vsel %vm356, %v355, 0
    %421 = vmatpush.xpose.msra.mxu0 %v419
    %422 = vmatpush.xpose.msra.mxu0 %v417
    %423 = vmatpush.xpose.msra.mxu0 %v415
    %424 = vmatpush.xpose.msra.mxu0 %v413
    %425 = vmatpush.xpose.msra.mxu0 %v411
    %426 = vmatpush.xpose.msra.mxu0 %v409
    %427 = vmatpush.xpose.msra.mxu0 %v407
    %428 = vmatpush.xpose.msra.mxu0 %v405
    %429 = vmatpush.xpose.msra.mxu0 %v403
    %430 = vmatpush.xpose.msra.mxu0 %v401
    %431 = vmatpush.xpose.msra.mxu0 %v399
    %432 = vmatpush.xpose.msra.mxu0 %v397
    %433 = vmatpush.xpose.msra.mxu0 %v395
    %434 = vmatpush.xpose.msra.mxu0 %v393
    %435 = vmatpush.xpose.msra.mxu0 %v391
    %436 = vmatpush.xpose.msra.mxu0 %v389
    %437 = vmatmul.f32.gmra.mxu0 %v357
    %v438 = vpop.f32.mrf.mxu0
    %v439 = vadd.f32 0.0, %v438
    %440 = vmatmul.f32.gmra.mxu0 %v359
    %v441 = vpop.f32.mrf.mxu0
    %v442 = vadd.f32 0.0, %v441
    %443 = vmatmul.f32.gmra.mxu0 %v361
    %v444 = vpop.f32.mrf.mxu0
    %v445 = vadd.f32 0.0, %v444
    %446 = vmatmul.f32.gmra.mxu0 %v363
    %v447 = vpop.f32.mrf.mxu0
    %v448 = vadd.f32 0.0, %v447
    %449 = vmatmul.f32.gmra.mxu0 %v365
    %v450 = vpop.f32.mrf.mxu0
    %v451 = vadd.f32 0.0, %v450
    %452 = vmatmul.f32.gmra.mxu0 %v367
    %v453 = vpop.f32.mrf.mxu0
    %v454 = vadd.f32 0.0, %v453
    %455 = vmatmul.f32.gmra.mxu0 %v369
    %v456 = vpop.f32.mrf.mxu0
    %v457 = vadd.f32 0.0, %v456
    %458 = vmatmul.f32.gmra.mxu0 %v371
    %v459 = vpop.f32.mrf.mxu0
    %v460 = vadd.f32 0.0, %v459
    %461 = vmatmul.f32.gmra.mxu0 %v373
    %v462 = vpop.f32.mrf.mxu0
    %v463 = vadd.f32 0.0, %v462
    %464 = vmatmul.f32.gmra.mxu0 %v375
    %v465 = vpop.f32.mrf.mxu0
    %v466 = vadd.f32 0.0, %v465
    %467 = vmatmul.f32.gmra.mxu0 %v377
    %v468 = vpop.f32.mrf.mxu0
    %v469 = vadd.f32 0.0, %v468
    %470 = vmatmul.f32.gmra.mxu0 %v379
    %v471 = vpop.f32.mrf.mxu0
    %v472 = vadd.f32 0.0, %v471
    %473 = vmatmul.f32.gmra.mxu0 %v381
    %v474 = vpop.f32.mrf.mxu0
    %v475 = vadd.f32 0.0, %v474
    %476 = vmatmul.f32.gmra.mxu0 %v383
    %v477 = vpop.f32.mrf.mxu0
    %v478 = vadd.f32 0.0, %v477
    %479 = vmatmul.f32.gmra.mxu0 %v385
    %v480 = vpop.f32.mrf.mxu0
    %v481 = vadd.f32 0.0, %v480
    %482 = vmatmul.f32.gmra.mxu0 %v387
    %v483 = vpop.f32.mrf.mxu0
    %v484 = vadd.f32 0.0, %v483
    %485 = vdwg.mxu0
    %486 = vmax.xlane.f32.xlu0 %v439
    %v487 = vpop.xlane.xlu0 %486
    %488 = vmax.xlane.f32.xlu0 %v442
    %v489 = vpop.xlane.xlu0 %488
    %490 = vmax.xlane.f32.xlu0 %v445
    %v491 = vpop.xlane.xlu0 %490
    %492 = vmax.xlane.f32.xlu0 %v448
    %v493 = vpop.xlane.xlu0 %492
    %494 = vmax.xlane.f32.xlu0 %v451
    %v495 = vpop.xlane.xlu0 %494
    %496 = vmax.xlane.f32.xlu0 %v454
    %v497 = vpop.xlane.xlu0 %496
    %498 = vmax.xlane.f32.xlu0 %v457
    %v499 = vpop.xlane.xlu0 %498
    %500 = vmax.xlane.f32.xlu0 %v460
    %v501 = vpop.xlane.xlu0 %500
    %502 = vmax.xlane.f32.xlu0 %v463
    %v503 = vpop.xlane.xlu0 %502
    %504 = vmax.xlane.f32.xlu0 %v466
    %v505 = vpop.xlane.xlu0 %504
    %506 = vmax.xlane.f32.xlu0 %v469
    %v507 = vpop.xlane.xlu0 %506
    %508 = vmax.xlane.f32.xlu0 %v472
    %v509 = vpop.xlane.xlu0 %508
    %510 = vmax.xlane.f32.xlu0 %v475
    %v511 = vpop.xlane.xlu0 %510
    %512 = vmax.xlane.f32.xlu0 %v478
    %v513 = vpop.xlane.xlu0 %512
    %514 = vmax.xlane.f32.xlu0 %v481
    %v515 = vpop.xlane.xlu0 %514
    %516 = vmax.xlane.f32.xlu0 %v484
    %v517 = vpop.xlane.xlu0 %516
    %v518 = vsub.f32 %v439, %v487
    %v519 = vsub.f32 %v442, %v489
    %v520 = vsub.f32 %v445, %v491
    %v521 = vsub.f32 %v448, %v493
    %v522 = vsub.f32 %v451, %v495
    %v523 = vsub.f32 %v454, %v497
    %v524 = vsub.f32 %v457, %v499
    %v525 = vsub.f32 %v460, %v501
    %v526 = vsub.f32 %v463, %v503
    %v527 = vsub.f32 %v466, %v505
    %v528 = vsub.f32 %v469, %v507
    %v529 = vsub.f32 %v472, %v509
    %v530 = vsub.f32 %v475, %v511
    %v531 = vsub.f32 %v478, %v513
    %v532 = vsub.f32 %v481, %v515
    %v533 = vsub.f32 %v484, %v517
    %v534 = vmul.f32 %v518, 1.442695
    %v535 = vpow.pop %v534
    %v536 = vmul.f32 %v519, 1.442695
    %v537 = vpow.pop %v536
    %v538 = vmul.f32 %v520, 1.442695
    %v539 = vpow.pop %v538
    %v540 = vmul.f32 %v521, 1.442695
    %v541 = vpow.pop %v540
    %v542 = vmul.f32 %v522, 1.442695
    %v543 = vpow.pop %v542
    %v544 = vmul.f32 %v523, 1.442695
    %v545 = vpow.pop %v544
    %v546 = vmul.f32 %v524, 1.442695
    %v547 = vpow.pop %v546
    %v548 = vmul.f32 %v525, 1.442695
    %v549 = vpow.pop %v548
    %v550 = vmul.f32 %v526, 1.442695
    %v551 = vpow.pop %v550
    %v552 = vmul.f32 %v527, 1.442695
    %v553 = vpow.pop %v552
    %v554 = vmul.f32 %v528, 1.442695
    %v555 = vpow.pop %v554
    %v556 = vmul.f32 %v529, 1.442695
    %v557 = vpow.pop %v556
    %v558 = vmul.f32 %v530, 1.442695
    %v559 = vpow.pop %v558
    %v560 = vmul.f32 %v531, 1.442695
    %v561 = vpow.pop %v560
    %v562 = vmul.f32 %v532, 1.442695
    %v563 = vpow.pop %v562
    %v564 = vmul.f32 %v533, 1.442695
    %v565 = vpow.pop %v564
    %566 = vadd.xlane.f32.xlu0 %v535
    %v567 = vpop.xlane.xlu0 %566
    %568 = vadd.xlane.f32.xlu0 %v537
    %v569 = vpop.xlane.xlu0 %568
    %570 = vadd.xlane.f32.xlu0 %v539
    %v571 = vpop.xlane.xlu0 %570
    %572 = vadd.xlane.f32.xlu0 %v541
    %v573 = vpop.xlane.xlu0 %572
    %574 = vadd.xlane.f32.xlu0 %v543
    %v575 = vpop.xlane.xlu0 %574
    %576 = vadd.xlane.f32.xlu0 %v545
    %v577 = vpop.xlane.xlu0 %576
    %578 = vadd.xlane.f32.xlu0 %v547
    %v579 = vpop.xlane.xlu0 %578
    %580 = vadd.xlane.f32.xlu0 %v549
    %v581 = vpop.xlane.xlu0 %580
    %582 = vadd.xlane.f32.xlu0 %v551
    %v583 = vpop.xlane.xlu0 %582
    %584 = vadd.xlane.f32.xlu0 %v553
    %v585 = vpop.xlane.xlu0 %584
    %586 = vadd.xlane.f32.xlu0 %v555
    %v587 = vpop.xlane.xlu0 %586
    %588 = vadd.xlane.f32.xlu0 %v557
    %v589 = vpop.xlane.xlu0 %588
    %590 = vadd.xlane.f32.xlu0 %v559
    %v591 = vpop.xlane.xlu0 %590
    %592 = vadd.xlane.f32.xlu0 %v561
    %v593 = vpop.xlane.xlu0 %592
    %594 = vadd.xlane.f32.xlu0 %v563
    %v595 = vpop.xlane.xlu0 %594
    %596 = vadd.xlane.f32.xlu0 %v565
    %v597 = vpop.xlane.xlu0 %596
    %598 = vmatpush.msra.mxu0 %v306
    %599 = vmatpush.msra.mxu0 %v303
    %600 = vmatpush.msra.mxu0 %v300
    %601 = vmatpush.msra.mxu0 %v297
    %602 = vmatpush.msra.mxu0 %v294
    %603 = vmatpush.msra.mxu0 %v291
    %604 = vmatpush.msra.mxu0 %v288
    %605 = vmatpush.msra.mxu0 %v285
    %606 = vmatpush.msra.mxu0 %v282
    %607 = vmatpush.msra.mxu0 %v279
    %608 = vmatpush.msra.mxu0 %v276
    %609 = vmatpush.msra.mxu0 %v273
    %610 = vmatpush.msra.mxu0 %v270
    %611 = vmatpush.msra.mxu0 %v267
    %612 = vmatpush.msra.mxu0 %v264
    %613 = vmatpush.msra.mxu0 %v261
    %614 = vmatmul.f32.gmra.mxu0 %v535
    %v615 = vpop.f32.mrf.mxu0
    %v616 = vadd.f32 0.0, %v615
    %617 = vmatmul.f32.gmra.mxu0 %v537
    %v618 = vpop.f32.mrf.mxu0
    %v619 = vadd.f32 0.0, %v618
    %620 = vmatmul.f32.gmra.mxu0 %v539
    %v621 = vpop.f32.mrf.mxu0
    %v622 = vadd.f32 0.0, %v621
    %623 = vmatmul.f32.gmra.mxu0 %v541
    %v624 = vpop.f32.mrf.mxu0
    %v625 = vadd.f32 0.0, %v624
    %626 = vmatmul.f32.gmra.mxu0 %v543
    %v627 = vpop.f32.mrf.mxu0
    %v628 = vadd.f32 0.0, %v627
    %629 = vmatmul.f32.gmra.mxu0 %v545
    %v630 = vpop.f32.mrf.mxu0
    %v631 = vadd.f32 0.0, %v630
    %632 = vmatmul.f32.gmra.mxu0 %v547
    %v633 = vpop.f32.mrf.mxu0
    %v634 = vadd.f32 0.0, %v633
    %635 = vmatmul.f32.gmra.mxu0 %v549
    %v636 = vpop.f32.mrf.mxu0
    %v637 = vadd.f32 0.0, %v636
    %638 = vmatmul.f32.gmra.mxu0 %v551
    %v639 = vpop.f32.mrf.mxu0
    %v640 = vadd.f32 0.0, %v639
    %641 = vmatmul.f32.gmra.mxu0 %v553
    %v642 = vpop.f32.mrf.mxu0
    %v643 = vadd.f32 0.0, %v642
    %644 = vmatmul.f32.gmra.mxu0 %v555
    %v645 = vpop.f32.mrf.mxu0
    %v646 = vadd.f32 0.0, %v645
    %647 = vmatmul.f32.gmra.mxu0 %v557
    %v648 = vpop.f32.mrf.mxu0
    %v649 = vadd.f32 0.0, %v648
    %650 = vmatmul.f32.gmra.mxu0 %v559
    %v651 = vpop.f32.mrf.mxu0
    %v652 = vadd.f32 0.0, %v651
    %653 = vmatmul.f32.gmra.mxu0 %v561
    %v654 = vpop.f32.mrf.mxu0
    %v655 = vadd.f32 0.0, %v654
    %656 = vmatmul.f32.gmra.mxu0 %v563
    %v657 = vpop.f32.mrf.mxu0
    %v658 = vadd.f32 0.0, %v657
    %659 = vmatmul.f32.gmra.mxu0 %v565
    %v660 = vpop.f32.mrf.mxu0
    %v661 = vadd.f32 0.0, %v660
    %662 = vdwg.mxu0
    %v663 = vmul.f32 %v567, 32.0
    %v664 = vmul.f32 %v569, 32.0
    %v665 = vmul.f32 %v571, 32.0
    %v666 = vmul.f32 %v573, 32.0
    %v667 = vmul.f32 %v575, 32.0
    %v668 = vmul.f32 %v577, 32.0
    %v669 = vmul.f32 %v579, 32.0
    %v670 = vmul.f32 %v581, 32.0
    %v671 = vmul.f32 %v583, 32.0
    %v672 = vmul.f32 %v585, 32.0
    %v673 = vmul.f32 %v587, 32.0
    %v674 = vmul.f32 %v589, 32.0
    %v675 = vmul.f32 %v591, 32.0
    %v676 = vmul.f32 %v593, 32.0
    %v677 = vmul.f32 %v595, 32.0
    %v678 = vmul.f32 %v597, 32.0
    %v679 = vrcp.pop %v663
    %v680 = vmul.f32 %v663, %v679
    %v681 = vsub.f32 1.0, %v680
    %v682 = vmul.f32 %v679, %v681
    %v683 = vadd.f32 %v679, %v682
    %vm684 = vweird.f32 %v663
    %vm685 = vweird.f32 %v679
    %vm686 = vmor %vm684, %vm685
    %v687 = vsel %vm686, %v679, %v683
    %v688 = vand.u32 2147483647, %v663
    %vm689 = vcmp.eq.f32.partialorder %v688, 8.507059e+37
    %v690 = vand.u32 %v663, 2147483648
    %v691 = vor.u32 1.1754944e-38, %v690
    %v692 = vsel %vm689, %v691, %v687
    %v693 = vrcp.pop %v664
    %v694 = vmul.f32 %v664, %v693
    %v695 = vsub.f32 1.0, %v694
    %v696 = vmul.f32 %v693, %v695
    %v697 = vadd.f32 %v693, %v696
    %vm698 = vweird.f32 %v664
    %vm699 = vweird.f32 %v693
    %vm700 = vmor %vm698, %vm699
    %v701 = vsel %vm700, %v693, %v697
    %v702 = vand.u32 2147483647, %v664
    %vm703 = vcmp.eq.f32.partialorder %v702, 8.507059e+37
    %v704 = vand.u32 %v664, 2147483648
    %v705 = vor.u32 1.1754944e-38, %v704
    %v706 = vsel %vm703, %v705, %v701
    %v707 = vrcp.pop %v665
    %v708 = vmul.f32 %v665, %v707
    %v709 = vsub.f32 1.0, %v708
    %v710 = vmul.f32 %v707, %v709
    %v711 = vadd.f32 %v707, %v710
    %vm712 = vweird.f32 %v665
    %vm713 = vweird.f32 %v707
    %vm714 = vmor %vm712, %vm713
    %v715 = vsel %vm714, %v707, %v711
    %v716 = vand.u32 2147483647, %v665
    %vm717 = vcmp.eq.f32.partialorder %v716, 8.507059e+37
    %v718 = vand.u32 %v665, 2147483648
    %v719 = vor.u32 1.1754944e-38, %v718
    %v720 = vsel %vm717, %v719, %v715
    %v721 = vrcp.pop %v666
    %v722 = vmul.f32 %v666, %v721
    %v723 = vsub.f32 1.0, %v722
    %v724 = vmul.f32 %v721, %v723
    %v725 = vadd.f32 %v721, %v724
    %vm726 = vweird.f32 %v666
    %vm727 = vweird.f32 %v721
    %vm728 = vmor %vm726, %vm727
    %v729 = vsel %vm728, %v721, %v725
    %v730 = vand.u32 2147483647, %v666
    %vm731 = vcmp.eq.f32.partialorder %v730, 8.507059e+37
    %v732 = vand.u32 %v666, 2147483648
    %v733 = vor.u32 1.1754944e-38, %v732
    %v734 = vsel %vm731, %v733, %v729
    %v735 = vrcp.pop %v667
    %v736 = vmul.f32 %v667, %v735
    %v737 = vsub.f32 1.0, %v736
    %v738 = vmul.f32 %v735, %v737
    %v739 = vadd.f32 %v735, %v738
    %vm740 = vweird.f32 %v667
    %vm741 = vweird.f32 %v735
    %vm742 = vmor %vm740, %vm741
    %v743 = vsel %vm742, %v735, %v739
    %v744 = vand.u32 2147483647, %v667
    %vm745 = vcmp.eq.f32.partialorder %v744, 8.507059e+37
    %v746 = vand.u32 %v667, 2147483648
    %v747 = vor.u32 1.1754944e-38, %v746
    %v748 = vsel %vm745, %v747, %v743
    %v749 = vrcp.pop %v668
    %v750 = vmul.f32 %v668, %v749
    %v751 = vsub.f32 1.0, %v750
    %v752 = vmul.f32 %v749, %v751
    %v753 = vadd.f32 %v749, %v752
    %vm754 = vweird.f32 %v668
    %vm755 = vweird.f32 %v749
    %vm756 = vmor %vm754, %vm755
    %v757 = vsel %vm756, %v749, %v753
    %v758 = vand.u32 2147483647, %v668
    %vm759 = vcmp.eq.f32.partialorder %v758, 8.507059e+37
    %v760 = vand.u32 %v668, 2147483648
    %v761 = vor.u32 1.1754944e-38, %v760
    %v762 = vsel %vm759, %v761, %v757
    %v763 = vrcp.pop %v669
    %v764 = vmul.f32 %v669, %v763
    %v765 = vsub.f32 1.0, %v764
    %v766 = vmul.f32 %v763, %v765
    %v767 = vadd.f32 %v763, %v766
    %vm768 = vweird.f32 %v669
    %vm769 = vweird.f32 %v763
    %vm770 = vmor %vm768, %vm769
    %v771 = vsel %vm770, %v763, %v767
    %v772 = vand.u32 2147483647, %v669
    %vm773 = vcmp.eq.f32.partialorder %v772, 8.507059e+37
    %v774 = vand.u32 %v669, 2147483648
    %v775 = vor.u32 1.1754944e-38, %v774
    %v776 = vsel %vm773, %v775, %v771
    %v777 = vrcp.pop %v670
    %v778 = vmul.f32 %v670, %v777
    %v779 = vsub.f32 1.0, %v778
    %v780 = vmul.f32 %v777, %v779
    %v781 = vadd.f32 %v777, %v780
    %vm782 = vweird.f32 %v670
    %vm783 = vweird.f32 %v777
    %vm784 = vmor %vm782, %vm783
    %v785 = vsel %vm784, %v777, %v781
    %v786 = vand.u32 2147483647, %v670
    %vm787 = vcmp.eq.f32.partialorder %v786, 8.507059e+37
    %v788 = vand.u32 %v670, 2147483648
    %v789 = vor.u32 1.1754944e-38, %v788
    %v790 = vsel %vm787, %v789, %v785
    %v791 = vrcp.pop %v671
    %v792 = vmul.f32 %v671, %v791
    %v793 = vsub.f32 1.0, %v792
    %v794 = vmul.f32 %v791, %v793
    %v795 = vadd.f32 %v791, %v794
    %vm796 = vweird.f32 %v671
    %vm797 = vweird.f32 %v791
    %vm798 = vmor %vm796, %vm797
    %v799 = vsel %vm798, %v791, %v795
    %v800 = vand.u32 2147483647, %v671
    %vm801 = vcmp.eq.f32.partialorder %v800, 8.507059e+37
    %v802 = vand.u32 %v671, 2147483648
    %v803 = vor.u32 1.1754944e-38, %v802
    %v804 = vsel %vm801, %v803, %v799
    %v805 = vrcp.pop %v672
    %v806 = vmul.f32 %v672, %v805
    %v807 = vsub.f32 1.0, %v806
    %v808 = vmul.f32 %v805, %v807
    %v809 = vadd.f32 %v805, %v808
    %vm810 = vweird.f32 %v672
    %vm811 = vweird.f32 %v805
    %vm812 = vmor %vm810, %vm811
    %v813 = vsel %vm812, %v805, %v809
    %v814 = vand.u32 2147483647, %v672
    %vm815 = vcmp.eq.f32.partialorder %v814, 8.507059e+37
    %v816 = vand.u32 %v672, 2147483648
    %v817 = vor.u32 1.1754944e-38, %v816
    %v818 = vsel %vm815, %v817, %v813
    %v819 = vrcp.pop %v673
    %v820 = vmul.f32 %v673, %v819
    %v821 = vsub.f32 1.0, %v820
    %v822 = vmul.f32 %v819, %v821
    %v823 = vadd.f32 %v819, %v822
    %vm824 = vweird.f32 %v673
    %vm825 = vweird.f32 %v819
    %vm826 = vmor %vm824, %vm825
    %v827 = vsel %vm826, %v819, %v823
    %v828 = vand.u32 2147483647, %v673
    %vm829 = vcmp.eq.f32.partialorder %v828, 8.507059e+37
    %v830 = vand.u32 %v673, 2147483648
    %v831 = vor.u32 1.1754944e-38, %v830
    %v832 = vsel %vm829, %v831, %v827
    %v833 = vrcp.pop %v674
    %v834 = vmul.f32 %v674, %v833
    %v835 = vsub.f32 1.0, %v834
    %v836 = vmul.f32 %v833, %v835
    %v837 = vadd.f32 %v833, %v836
    %vm838 = vweird.f32 %v674
    %vm839 = vweird.f32 %v833
    %vm840 = vmor %vm838, %vm839
    %v841 = vsel %vm840, %v833, %v837
    %v842 = vand.u32 2147483647, %v674
    %vm843 = vcmp.eq.f32.partialorder %v842, 8.507059e+37
    %v844 = vand.u32 %v674, 2147483648
    %v845 = vor.u32 1.1754944e-38, %v844
    %v846 = vsel %vm843, %v845, %v841
    %v847 = vrcp.pop %v675
    %v848 = vmul.f32 %v675, %v847
    %v849 = vsub.f32 1.0, %v848
    %v850 = vmul.f32 %v847, %v849
    %v851 = vadd.f32 %v847, %v850
    %vm852 = vweird.f32 %v675
    %vm853 = vweird.f32 %v847
    %vm854 = vmor %vm852, %vm853
    %v855 = vsel %vm854, %v847, %v851
    %v856 = vand.u32 2147483647, %v675
    %vm857 = vcmp.eq.f32.partialorder %v856, 8.507059e+37
    %v858 = vand.u32 %v675, 2147483648
    %v859 = vor.u32 1.1754944e-38, %v858
    %v860 = vsel %vm857, %v859, %v855
    %v861 = vrcp.pop %v676
    %v862 = vmul.f32 %v676, %v861
    %v863 = vsub.f32 1.0, %v862
    %v864 = vmul.f32 %v861, %v863
    %v865 = vadd.f32 %v861, %v864
    %vm866 = vweird.f32 %v676
    %vm867 = vweird.f32 %v861
    %vm868 = vmor %vm866, %vm867
    %v869 = vsel %vm868, %v861, %v865
    %v870 = vand.u32 2147483647, %v676
    %vm871 = vcmp.eq.f32.partialorder %v870, 8.507059e+37
    %v872 = vand.u32 %v676, 2147483648
    %v873 = vor.u32 1.1754944e-38, %v872
    %v874 = vsel %vm871, %v873, %v869
    %v875 = vrcp.pop %v677
    %v876 = vmul.f32 %v677, %v875
    %v877 = vsub.f32 1.0, %v876
    %v878 = vmul.f32 %v875, %v877
    %v879 = vadd.f32 %v875, %v878
    %vm880 = vweird.f32 %v677
    %vm881 = vweird.f32 %v875
    %vm882 = vmor %vm880, %vm881
    %v883 = vsel %vm882, %v875, %v879
    %v884 = vand.u32 2147483647, %v677
    %vm885 = vcmp.eq.f32.partialorder %v884, 8.507059e+37
    %v886 = vand.u32 %v677, 2147483648
    %v887 = vor.u32 1.1754944e-38, %v886
    %v888 = vsel %vm885, %v887, %v883
    %v889 = vrcp.pop %v678
    %v890 = vmul.f32 %v678, %v889
    %v891 = vsub.f32 1.0, %v890
    %v892 = vmul.f32 %v889, %v891
    %v893 = vadd.f32 %v889, %v892
    %vm894 = vweird.f32 %v678
    %vm895 = vweird.f32 %v889
    %vm896 = vmor %vm894, %vm895
    %v897 = vsel %vm896, %v889, %v893
    %v898 = vand.u32 2147483647, %v678
    %vm899 = vcmp.eq.f32.partialorder %v898, 8.507059e+37
    %v900 = vand.u32 %v678, 2147483648
    %v901 = vor.u32 1.1754944e-38, %v900
    %v902 = vsel %vm899, %v901, %v897
    %v903 = vmul.f32 %v616, %v692
    %v904 = vmul.f32 %v619, %v706
    %v905 = vmul.f32 %v622, %v720
    %v906 = vmul.f32 %v625, %v734
    %v907 = vmul.f32 %v628, %v748
    %v908 = vmul.f32 %v631, %v762
    %v909 = vmul.f32 %v634, %v776
    %v910 = vmul.f32 %v637, %v790
    %v911 = vmul.f32 %v640, %v804
    %v912 = vmul.f32 %v643, %v818
    %v913 = vmul.f32 %v646, %v832
    %v914 = vmul.f32 %v649, %v846
    %v915 = vmul.f32 %v652, %v860
    %v916 = vmul.f32 %v655, %v874
    %v917 = vmul.f32 %v658, %v888
    %v918 = vmul.f32 %v661, %v902
    %v919 = vld [vmem:[%s2] sm:$0xff]
    %v920 = vld [vmem:[%s2 + $0x8] sm:$0xff]
    %v921 = vld [vmem:[%s2 + $0x10] sm:$0xff]
    %v922 = vld [vmem:[%s2 + $0x18] sm:$0xff]
    %923 = vrot.lane.b32.xlu0 %v196, 96
    %v924 = vpop.permute.xlu0 %923
    %925 = vrot.lane.b32.xlu0 %v199, 96
    %v926 = vpop.permute.xlu0 %925
    %927 = vrot.lane.b32.xlu0 %v202, 96
    %v928 = vpop.permute.xlu0 %927
    %929 = vrot.lane.b32.xlu0 %v205, 96
    %v930 = vpop.permute.xlu0 %929
    %931 = vrot.lane.b32.xlu0 %v208, 96
    %v932 = vpop.permute.xlu0 %931
    %933 = vrot.lane.b32.xlu0 %v211, 96
    %v934 = vpop.permute.xlu0 %933
    %935 = vrot.lane.b32.xlu0 %v214, 96
    %v936 = vpop.permute.xlu0 %935
    %937 = vrot.lane.b32.xlu0 %v217, 96
    %v938 = vpop.permute.xlu0 %937
    %939 = vrot.lane.b32.xlu0 %v220, 96
    %v940 = vpop.permute.xlu0 %939
    %941 = vrot.lane.b32.xlu0 %v223, 96
    %v942 = vpop.permute.xlu0 %941
    %943 = vrot.lane.b32.xlu0 %v226, 96
    %v944 = vpop.permute.xlu0 %943
    %945 = vrot.lane.b32.xlu0 %v229, 96
    %v946 = vpop.permute.xlu0 %945
    %947 = vrot.lane.b32.xlu0 %v232, 96
    %v948 = vpop.permute.xlu0 %947
    %949 = vrot.lane.b32.xlu0 %v235, 96
    %v950 = vpop.permute.xlu0 %949
    %951 = vrot.lane.b32.xlu0 %v238, 96
    %v952 = vpop.permute.xlu0 %951
    %953 = vrot.lane.b32.xlu0 %v241, 96
    %v954 = vpop.permute.xlu0 %953
    %955 = vrot.lane.b32.xlu0 %v196, 32
    %v956 = vpop.permute.xlu0 %955
    %957 = vrot.lane.b32.xlu0 %v199, 32
    %v958 = vpop.permute.xlu0 %957
    %959 = vrot.lane.b32.xlu0 %v202, 32
    %v960 = vpop.permute.xlu0 %959
    %961 = vrot.lane.b32.xlu0 %v205, 32
    %v962 = vpop.permute.xlu0 %961
    %963 = vrot.lane.b32.xlu0 %v208, 32
    %v964 = vpop.permute.xlu0 %963
    %965 = vrot.lane.b32.xlu0 %v211, 32
    %v966 = vpop.permute.xlu0 %965
    %967 = vrot.lane.b32.xlu0 %v214, 32
    %v968 = vpop.permute.xlu0 %967
    %969 = vrot.lane.b32.xlu0 %v217, 32
    %v970 = vpop.permute.xlu0 %969
    %971 = vrot.lane.b32.xlu0 %v220, 32
    %v972 = vpop.permute.xlu0 %971
    %973 = vrot.lane.b32.xlu0 %v223, 32
    %v974 = vpop.permute.xlu0 %973
    %975 = vrot.lane.b32.xlu0 %v226, 32
    %v976 = vpop.permute.xlu0 %975
    %977 = vrot.lane.b32.xlu0 %v229, 32
    %v978 = vpop.permute.xlu0 %977
    %979 = vrot.lane.b32.xlu0 %v232, 32
    %v980 = vpop.permute.xlu0 %979
    %981 = vrot.lane.b32.xlu0 %v235, 32
    %v982 = vpop.permute.xlu0 %981
    %983 = vrot.lane.b32.xlu0 %v238, 32
    %v984 = vpop.permute.xlu0 %983
    %985 = vrot.lane.b32.xlu0 %v241, 32
    %v986 = vpop.permute.xlu0 %985
    %v987 = vsel %vm356, %v924, 0
    %v989 = vsel %vm356, %v926, 0
    %v991 = vsel %vm356, %v928, 0
    %v993 = vsel %vm356, %v930, 0
    %v995 = vsel %vm356, %v932, 0
    %v997 = vsel %vm356, %v934, 0
    %v999 = vsel %vm356, %v936, 0
    %v1001 = vsel %vm356, %v938, 0
    %v1003 = vsel %vm356, %v940, 0
    %v1005 = vsel %vm356, %v942, 0
    %v1007 = vsel %vm356, %v944, 0
    %v1009 = vsel %vm356, %v946, 0
    %v1011 = vsel %vm356, %v948, 0
    %v1013 = vsel %vm356, %v950, 0
    %v1015 = vsel %vm356, %v952, 0
    %v1017 = vsel %vm356, %v954, 0
    %v1019 = vsel %vm356, %v956, 0
    %v1021 = vsel %vm356, %v958, 0
    %v1023 = vsel %vm356, %v960, 0
    %v1025 = vsel %vm356, %v962, 0
    %v1027 = vsel %vm356, %v964, 0
    %v1029 = vsel %vm356, %v966, 0
    %v1031 = vsel %vm356, %v968, 0
    %v1033 = vsel %vm356, %v970, 0
    %v1035 = vsel %vm356, %v972, 0
    %v1037 = vsel %vm356, %v974, 0
    %v1039 = vsel %vm356, %v976, 0
    %v1041 = vsel %vm356, %v978, 0
    %v1043 = vsel %vm356, %v980, 0
    %v1045 = vsel %vm356, %v982, 0
    %v1047 = vsel %vm356, %v984, 0
    %v1049 = vsel %vm356, %v986, 0
    %1051 = vmatpush.xpose.msra.mxu0 %v1049
    %1052 = vmatpush.xpose.msra.mxu0 %v1047
    %1053 = vmatpush.xpose.msra.mxu0 %v1045
    %1054 = vmatpush.xpose.msra.mxu0 %v1043
    %1055 = vmatpush.xpose.msra.mxu0 %v1041
    %1056 = vmatpush.xpose.msra.mxu0 %v1039
    %1057 = vmatpush.xpose.msra.mxu0 %v1037
    %1058 = vmatpush.xpose.msra.mxu0 %v1035
    %1059 = vmatpush.xpose.msra.mxu0 %v1033
    %1060 = vmatpush.xpose.msra.mxu0 %v1031
    %1061 = vmatpush.xpose.msra.mxu0 %v1029
    %1062 = vmatpush.xpose.msra.mxu0 %v1027
    %1063 = vmatpush.xpose.msra.mxu0 %v1025
    %1064 = vmatpush.xpose.msra.mxu0 %v1023
    %1065 = vmatpush.xpose.msra.mxu0 %v1021
    %1066 = vmatpush.xpose.msra.mxu0 %v1019
    %1067 = vmatmul.f32.gmra.mxu0 %v987
    %v1068 = vpop.f32.mrf.mxu0
    %v1069 = vadd.f32 0.0, %v1068
    %1070 = vmatmul.f32.gmra.mxu0 %v989
    %v1071 = vpop.f32.mrf.mxu0
    %v1072 = vadd.f32 0.0, %v1071
    %1073 = vmatmul.f32.gmra.mxu0 %v991
    %v1074 = vpop.f32.mrf.mxu0
    %v1075 = vadd.f32 0.0, %v1074
    %1076 = vmatmul.f32.gmra.mxu0 %v993
    %v1077 = vpop.f32.mrf.mxu0
    %v1078 = vadd.f32 0.0, %v1077
    %1079 = vmatmul.f32.gmra.mxu0 %v995
    %v1080 = vpop.f32.mrf.mxu0
    %v1081 = vadd.f32 0.0, %v1080
    %1082 = vmatmul.f32.gmra.mxu0 %v997
    %v1083 = vpop.f32.mrf.mxu0
    %v1084 = vadd.f32 0.0, %v1083
    %1085 = vmatmul.f32.gmra.mxu0 %v999
    %v1086 = vpop.f32.mrf.mxu0
    %v1087 = vadd.f32 0.0, %v1086
    %1088 = vmatmul.f32.gmra.mxu0 %v1001
    %v1089 = vpop.f32.mrf.mxu0
    %v1090 = vadd.f32 0.0, %v1089
    %1091 = vmatmul.f32.gmra.mxu0 %v1003
    %v1092 = vpop.f32.mrf.mxu0
    %v1093 = vadd.f32 0.0, %v1092
    %1094 = vmatmul.f32.gmra.mxu0 %v1005
    %v1095 = vpop.f32.mrf.mxu0
    %v1096 = vadd.f32 0.0, %v1095
    %1097 = vmatmul.f32.gmra.mxu0 %v1007
    %v1098 = vpop.f32.mrf.mxu0
    %v1099 = vadd.f32 0.0, %v1098
    %1100 = vmatmul.f32.gmra.mxu0 %v1009
    %v1101 = vpop.f32.mrf.mxu0
    %v1102 = vadd.f32 0.0, %v1101
    %1103 = vmatmul.f32.gmra.mxu0 %v1011
    %v1104 = vpop.f32.mrf.mxu0
    %v1105 = vadd.f32 0.0, %v1104
    %1106 = vmatmul.f32.gmra.mxu0 %v1013
    %v1107 = vpop.f32.mrf.mxu0
    %v1108 = vadd.f32 0.0, %v1107
    %1109 = vmatmul.f32.gmra.mxu0 %v1015
    %v1110 = vpop.f32.mrf.mxu0
    %v1111 = vadd.f32 0.0, %v1110
    %1112 = vmatmul.f32.gmra.mxu0 %v1017
    %v1113 = vpop.f32.mrf.mxu0
    %v1114 = vadd.f32 0.0, %v1113
    %1115 = vdwg.mxu0
    %1116 = vmax.xlane.f32.xlu0 %v1069
    %v1117 = vpop.xlane.xlu0 %1116
    %1118 = vmax.xlane.f32.xlu0 %v1072
    %v1119 = vpop.xlane.xlu0 %1118
    %1120 = vmax.xlane.f32.xlu0 %v1075
    %v1121 = vpop.xlane.xlu0 %1120
    %1122 = vmax.xlane.f32.xlu0 %v1078
    %v1123 = vpop.xlane.xlu0 %1122
    %1124 = vmax.xlane.f32.xlu0 %v1081
    %v1125 = vpop.xlane.xlu0 %1124
    %1126 = vmax.xlane.f32.xlu0 %v1084
    %v1127 = vpop.xlane.xlu0 %1126
    %1128 = vmax.xlane.f32.xlu0 %v1087
    %v1129 = vpop.xlane.xlu0 %1128
    %1130 = vmax.xlane.f32.xlu0 %v1090
    %v1131 = vpop.xlane.xlu0 %1130
    %1132 = vmax.xlane.f32.xlu0 %v1093
    %v1133 = vpop.xlane.xlu0 %1132
    %1134 = vmax.xlane.f32.xlu0 %v1096
    %v1135 = vpop.xlane.xlu0 %1134
    %1136 = vmax.xlane.f32.xlu0 %v1099
    %v1137 = vpop.xlane.xlu0 %1136
    %1138 = vmax.xlane.f32.xlu0 %v1102
    %v1139 = vpop.xlane.xlu0 %1138
    %1140 = vmax.xlane.f32.xlu0 %v1105
    %v1141 = vpop.xlane.xlu0 %1140
    %1142 = vmax.xlane.f32.xlu0 %v1108
    %v1143 = vpop.xlane.xlu0 %1142
    %1144 = vmax.xlane.f32.xlu0 %v1111
    %v1145 = vpop.xlane.xlu0 %1144
    %1146 = vmax.xlane.f32.xlu0 %v1114
    %v1147 = vpop.xlane.xlu0 %1146
    %v1148 = vsub.f32 %v1069, %v1117
    %v1149 = vsub.f32 %v1072, %v1119
    %v1150 = vsub.f32 %v1075, %v1121
    %v1151 = vsub.f32 %v1078, %v1123
    %v1152 = vsub.f32 %v1081, %v1125
    %v1153 = vsub.f32 %v1084, %v1127
    %v1154 = vsub.f32 %v1087, %v1129
    %v1155 = vsub.f32 %v1090, %v1131
    %v1156 = vsub.f32 %v1093, %v1133
    %v1157 = vsub.f32 %v1096, %v1135
    %v1158 = vsub.f32 %v1099, %v1137
    %v1159 = vsub.f32 %v1102, %v1139
    %v1160 = vsub.f32 %v1105, %v1141
    %v1161 = vsub.f32 %v1108, %v1143
    %v1162 = vsub.f32 %v1111, %v1145
    %v1163 = vsub.f32 %v1114, %v1147
    %v1164 = vmul.f32 %v1148, 1.442695
    %v1165 = vpow.pop %v1164
    %v1166 = vmul.f32 %v1149, 1.442695
    %v1167 = vpow.pop %v1166
    %v1168 = vmul.f32 %v1150, 1.442695
    %v1169 = vpow.pop %v1168
    %v1170 = vmul.f32 %v1151, 1.442695
    %v1171 = vpow.pop %v1170
    %v1172 = vmul.f32 %v1152, 1.442695
    %v1173 = vpow.pop %v1172
    %v1174 = vmul.f32 %v1153, 1.442695
    %v1175 = vpow.pop %v1174
    %v1176 = vmul.f32 %v1154, 1.442695
    %v1177 = vpow.pop %v1176
    %v1178 = vmul.f32 %v1155, 1.442695
    %v1179 = vpow.pop %v1178
    %v1180 = vmul.f32 %v1156, 1.442695
    %v1181 = vpow.pop %v1180
    %v1182 = vmul.f32 %v1157, 1.442695
    %v1183 = vpow.pop %v1182
    %v1184 = vmul.f32 %v1158, 1.442695
    %v1185 = vpow.pop %v1184
    %v1186 = vmul.f32 %v1159, 1.442695
    %v1187 = vpow.pop %v1186
    %v1188 = vmul.f32 %v1160, 1.442695
    %v1189 = vpow.pop %v1188
    %v1190 = vmul.f32 %v1161, 1.442695
    %v1191 = vpow.pop %v1190
    %v1192 = vmul.f32 %v1162, 1.442695
    %v1193 = vpow.pop %v1192
    %v1194 = vmul.f32 %v1163, 1.442695
    %v1195 = vpow.pop %v1194
    %1196 = vadd.xlane.f32.xlu0 %v1165
    %v1197 = vpop.xlane.xlu0 %1196
    %1198 = vadd.xlane.f32.xlu0 %v1167
    %v1199 = vpop.xlane.xlu0 %1198
    %1200 = vadd.xlane.f32.xlu0 %v1169
    %v1201 = vpop.xlane.xlu0 %1200
    %1202 = vadd.xlane.f32.xlu0 %v1171
    %v1203 = vpop.xlane.xlu0 %1202
    %1204 = vadd.xlane.f32.xlu0 %v1173
    %v1205 = vpop.xlane.xlu0 %1204
    %1206 = vadd.xlane.f32.xlu0 %v1175
    %v1207 = vpop.xlane.xlu0 %1206
    %1208 = vadd.xlane.f32.xlu0 %v1177
    %v1209 = vpop.xlane.xlu0 %1208
    %1210 = vadd.xlane.f32.xlu0 %v1179
    %v1211 = vpop.xlane.xlu0 %1210
    %1212 = vadd.xlane.f32.xlu0 %v1181
    %v1213 = vpop.xlane.xlu0 %1212
    %1214 = vadd.xlane.f32.xlu0 %v1183
    %v1215 = vpop.xlane.xlu0 %1214
    %1216 = vadd.xlane.f32.xlu0 %v1185
    %v1217 = vpop.xlane.xlu0 %1216
    %1218 = vadd.xlane.f32.xlu0 %v1187
    %v1219 = vpop.xlane.xlu0 %1218
    %1220 = vadd.xlane.f32.xlu0 %v1189
    %v1221 = vpop.xlane.xlu0 %1220
    %1222 = vadd.xlane.f32.xlu0 %v1191
    %v1223 = vpop.xlane.xlu0 %1222
    %1224 = vadd.xlane.f32.xlu0 %v1193
    %v1225 = vpop.xlane.xlu0 %1224
    %1226 = vadd.xlane.f32.xlu0 %v1195
    %v1227 = vpop.xlane.xlu0 %1226
    %1244 = vrot.lane.b32.xlu0 %v261, 96
    %v1245 = vpop.permute.xlu0 %1244
    %1246 = vrot.lane.b32.xlu0 %v264, 96
    %v1247 = vpop.permute.xlu0 %1246
    %1248 = vrot.lane.b32.xlu0 %v267, 96
    %v1249 = vpop.permute.xlu0 %1248
    %1250 = vrot.lane.b32.xlu0 %v270, 96
    %v1251 = vpop.permute.xlu0 %1250
    %1252 = vrot.lane.b32.xlu0 %v273, 96
    %v1253 = vpop.permute.xlu0 %1252
    %1254 = vrot.lane.b32.xlu0 %v276, 96
    %v1255 = vpop.permute.xlu0 %1254
    %1256 = vrot.lane.b32.xlu0 %v279, 96
    %v1257 = vpop.permute.xlu0 %1256
    %1258 = vrot.lane.b32.xlu0 %v282, 96
    %v1259 = vpop.permute.xlu0 %1258
    %1260 = vrot.lane.b32.xlu0 %v285, 96
    %v1261 = vpop.permute.xlu0 %1260
    %1262 = vrot.lane.b32.xlu0 %v288, 96
    %v1263 = vpop.permute.xlu0 %1262
    %1264 = vrot.lane.b32.xlu0 %v291, 96
    %v1265 = vpop.permute.xlu0 %1264
    %1266 = vrot.lane.b32.xlu0 %v294, 96
    %v1267 = vpop.permute.xlu0 %1266
    %1268 = vrot.lane.b32.xlu0 %v297, 96
    %v1269 = vpop.permute.xlu0 %1268
    %1270 = vrot.lane.b32.xlu0 %v300, 96
    %v1271 = vpop.permute.xlu0 %1270
    %1272 = vrot.lane.b32.xlu0 %v303, 96
    %v1273 = vpop.permute.xlu0 %1272
    %1274 = vrot.lane.b32.xlu0 %v306, 96
    %v1275 = vpop.permute.xlu0 %1274
    %1292 = vmatpush.msra.mxu0 %v1275
    %1293 = vmatpush.msra.mxu0 %v1273
    %1294 = vmatpush.msra.mxu0 %v1271
    %1295 = vmatpush.msra.mxu0 %v1269
    %1296 = vmatpush.msra.mxu0 %v1267
    %1297 = vmatpush.msra.mxu0 %v1265
    %1298 = vmatpush.msra.mxu0 %v1263
    %1299 = vmatpush.msra.mxu0 %v1261
    %1300 = vmatpush.msra.mxu0 %v1259
    %1301 = vmatpush.msra.mxu0 %v1257
    %1302 = vmatpush.msra.mxu0 %v1255
    %1303 = vmatpush.msra.mxu0 %v1253
    %1304 = vmatpush.msra.mxu0 %v1251
    %1305 = vmatpush.msra.mxu0 %v1249
    %1306 = vmatpush.msra.mxu0 %v1247
    %1307 = vmatpush.msra.mxu0 %v1245
    %1308 = vmatmul.f32.gmra.mxu0 %v1165
    %v1309 = vpop.f32.mrf.mxu0
    %v1310 = vadd.f32 0.0, %v1309
    %1311 = vmatmul.f32.gmra.mxu0 %v1167
    %v1312 = vpop.f32.mrf.mxu0
    %v1313 = vadd.f32 0.0, %v1312
    %1314 = vmatmul.f32.gmra.mxu0 %v1169
    %v1315 = vpop.f32.mrf.mxu0
    %v1316 = vadd.f32 0.0, %v1315
    %1317 = vmatmul.f32.gmra.mxu0 %v1171
    %v1318 = vpop.f32.mrf.mxu0
    %v1319 = vadd.f32 0.0, %v1318
    %1320 = vmatmul.f32.gmra.mxu0 %v1173
    %v1321 = vpop.f32.mrf.mxu0
    %v1322 = vadd.f32 0.0, %v1321
    %1323 = vmatmul.f32.gmra.mxu0 %v1175
    %v1324 = vpop.f32.mrf.mxu0
    %v1325 = vadd.f32 0.0, %v1324
    %1326 = vmatmul.f32.gmra.mxu0 %v1177
    %v1327 = vpop.f32.mrf.mxu0
    %v1328 = vadd.f32 0.0, %v1327
    %1329 = vmatmul.f32.gmra.mxu0 %v1179
    %v1330 = vpop.f32.mrf.mxu0
    %v1331 = vadd.f32 0.0, %v1330
    %1332 = vmatmul.f32.gmra.mxu0 %v1181
    %v1333 = vpop.f32.mrf.mxu0
    %v1334 = vadd.f32 0.0, %v1333
    %1335 = vmatmul.f32.gmra.mxu0 %v1183
    %v1336 = vpop.f32.mrf.mxu0
    %v1337 = vadd.f32 0.0, %v1336
    %1338 = vmatmul.f32.gmra.mxu0 %v1185
    %v1339 = vpop.f32.mrf.mxu0
    %v1340 = vadd.f32 0.0, %v1339
    %1341 = vmatmul.f32.gmra.mxu0 %v1187
    %v1342 = vpop.f32.mrf.mxu0
    %v1343 = vadd.f32 0.0, %v1342
    %1344 = vmatmul.f32.gmra.mxu0 %v1189
    %v1345 = vpop.f32.mrf.mxu0
    %v1346 = vadd.f32 0.0, %v1345
    %1347 = vmatmul.f32.gmra.mxu0 %v1191
    %v1348 = vpop.f32.mrf.mxu0
    %v1349 = vadd.f32 0.0, %v1348
    %1350 = vmatmul.f32.gmra.mxu0 %v1193
    %v1351 = vpop.f32.mrf.mxu0
    %v1352 = vadd.f32 0.0, %v1351
    %1353 = vmatmul.f32.gmra.mxu0 %v1195
    %v1354 = vpop.f32.mrf.mxu0
    %v1355 = vadd.f32 0.0, %v1354
    %1356 = vdwg.mxu0
    %v1357 = vmul.f32 %v1197, 32.0
    %v1358 = vmul.f32 %v1199, 32.0
    %v1359 = vmul.f32 %v1201, 32.0
    %v1360 = vmul.f32 %v1203, 32.0
    %v1361 = vmul.f32 %v1205, 32.0
    %v1362 = vmul.f32 %v1207, 32.0
    %v1363 = vmul.f32 %v1209, 32.0
    %v1364 = vmul.f32 %v1211, 32.0
    %v1365 = vmul.f32 %v1213, 32.0
    %v1366 = vmul.f32 %v1215, 32.0
    %v1367 = vmul.f32 %v1217, 32.0
    %v1368 = vmul.f32 %v1219, 32.0
    %v1369 = vmul.f32 %v1221, 32.0
    %v1370 = vmul.f32 %v1223, 32.0
    %v1371 = vmul.f32 %v1225, 32.0
    %v1372 = vmul.f32 %v1227, 32.0
    %v1373 = vrcp.pop %v1357
    %v1374 = vmul.f32 %v1357, %v1373
    %v1375 = vsub.f32 1.0, %v1374
    %v1376 = vmul.f32 %v1373, %v1375
    %v1377 = vadd.f32 %v1373, %v1376
    %vm1378 = vweird.f32 %v1357
    %vm1379 = vweird.f32 %v1373
    %vm1380 = vmor %vm1378, %vm1379
    %v1381 = vsel %vm1380, %v1373, %v1377
    %v1382 = vand.u32 2147483647, %v1357
    %vm1383 = vcmp.eq.f32.partialorder %v1382, 8.507059e+37
    %v1384 = vand.u32 %v1357, 2147483648
    %v1385 = vor.u32 1.1754944e-38, %v1384
    %v1386 = vsel %vm1383, %v1385, %v1381
    %v1387 = vrcp.pop %v1358
    %v1388 = vmul.f32 %v1358, %v1387
    %v1389 = vsub.f32 1.0, %v1388
    %v1390 = vmul.f32 %v1387, %v1389
    %v1391 = vadd.f32 %v1387, %v1390
    %vm1392 = vweird.f32 %v1358
    %vm1393 = vweird.f32 %v1387
    %vm1394 = vmor %vm1392, %vm1393
    %v1395 = vsel %vm1394, %v1387, %v1391
    %v1396 = vand.u32 2147483647, %v1358
    %vm1397 = vcmp.eq.f32.partialorder %v1396, 8.507059e+37
    %v1398 = vand.u32 %v1358, 2147483648
    %v1399 = vor.u32 1.1754944e-38, %v1398
    %v1400 = vsel %vm1397, %v1399, %v1395
    %v1401 = vrcp.pop %v1359
    %v1402 = vmul.f32 %v1359, %v1401
    %v1403 = vsub.f32 1.0, %v1402
    %v1404 = vmul.f32 %v1401, %v1403
    %v1405 = vadd.f32 %v1401, %v1404
    %vm1406 = vweird.f32 %v1359
    %vm1407 = vweird.f32 %v1401
    %vm1408 = vmor %vm1406, %vm1407
    %v1409 = vsel %vm1408, %v1401, %v1405
    %v1410 = vand.u32 2147483647, %v1359
    %vm1411 = vcmp.eq.f32.partialorder %v1410, 8.507059e+37
    %v1412 = vand.u32 %v1359, 2147483648
    %v1413 = vor.u32 1.1754944e-38, %v1412
    %v1414 = vsel %vm1411, %v1413, %v1409
    %v1415 = vrcp.pop %v1360
    %v1416 = vmul.f32 %v1360, %v1415
    %v1417 = vsub.f32 1.0, %v1416
    %v1418 = vmul.f32 %v1415, %v1417
    %v1419 = vadd.f32 %v1415, %v1418
    %vm1420 = vweird.f32 %v1360
    %vm1421 = vweird.f32 %v1415
    %vm1422 = vmor %vm1420, %vm1421
    %v1423 = vsel %vm1422, %v1415, %v1419
    %v1424 = vand.u32 2147483647, %v1360
    %vm1425 = vcmp.eq.f32.partialorder %v1424, 8.507059e+37
    %v1426 = vand.u32 %v1360, 2147483648
    %v1427 = vor.u32 1.1754944e-38, %v1426
    %v1428 = vsel %vm1425, %v1427, %v1423
    %v1429 = vrcp.pop %v1361
    %v1430 = vmul.f32 %v1361, %v1429
    %v1431 = vsub.f32 1.0, %v1430
    %v1432 = vmul.f32 %v1429, %v1431
    %v1433 = vadd.f32 %v1429, %v1432
    %vm1434 = vweird.f32 %v1361
    %vm1435 = vweird.f32 %v1429
    %vm1436 = vmor %vm1434, %vm1435
    %v1437 = vsel %vm1436, %v1429, %v1433
    %v1438 = vand.u32 2147483647, %v1361
    %vm1439 = vcmp.eq.f32.partialorder %v1438, 8.507059e+37
    %v1440 = vand.u32 %v1361, 2147483648
    %v1441 = vor.u32 1.1754944e-38, %v1440
    %v1442 = vsel %vm1439, %v1441, %v1437
    %v1443 = vrcp.pop %v1362
    %v1444 = vmul.f32 %v1362, %v1443
    %v1445 = vsub.f32 1.0, %v1444
    %v1446 = vmul.f32 %v1443, %v1445
    %v1447 = vadd.f32 %v1443, %v1446
    %vm1448 = vweird.f32 %v1362
    %vm1449 = vweird.f32 %v1443
    %vm1450 = vmor %vm1448, %vm1449
    %v1451 = vsel %vm1450, %v1443, %v1447
    %v1452 = vand.u32 2147483647, %v1362
    %vm1453 = vcmp.eq.f32.partialorder %v1452, 8.507059e+37
    %v1454 = vand.u32 %v1362, 2147483648
    %v1455 = vor.u32 1.1754944e-38, %v1454
    %v1456 = vsel %vm1453, %v1455, %v1451
    %v1457 = vrcp.pop %v1363
    %v1458 = vmul.f32 %v1363, %v1457
    %v1459 = vsub.f32 1.0, %v1458
    %v1460 = vmul.f32 %v1457, %v1459
    %v1461 = vadd.f32 %v1457, %v1460
    %vm1462 = vweird.f32 %v1363
    %vm1463 = vweird.f32 %v1457
    %vm1464 = vmor %vm1462, %vm1463
    %v1465 = vsel %vm1464, %v1457, %v1461
    %v1466 = vand.u32 2147483647, %v1363
    %vm1467 = vcmp.eq.f32.partialorder %v1466, 8.507059e+37
    %v1468 = vand.u32 %v1363, 2147483648
    %v1469 = vor.u32 1.1754944e-38, %v1468
    %v1470 = vsel %vm1467, %v1469, %v1465
    %v1471 = vrcp.pop %v1364
    %v1472 = vmul.f32 %v1364, %v1471
    %v1473 = vsub.f32 1.0, %v1472
    %v1474 = vmul.f32 %v1471, %v1473
    %v1475 = vadd.f32 %v1471, %v1474
    %vm1476 = vweird.f32 %v1364
    %vm1477 = vweird.f32 %v1471
    %vm1478 = vmor %vm1476, %vm1477
    %v1479 = vsel %vm1478, %v1471, %v1475
    %v1480 = vand.u32 2147483647, %v1364
    %vm1481 = vcmp.eq.f32.partialorder %v1480, 8.507059e+37
    %v1482 = vand.u32 %v1364, 2147483648
    %v1483 = vor.u32 1.1754944e-38, %v1482
    %v1484 = vsel %vm1481, %v1483, %v1479
    %v1485 = vrcp.pop %v1365
    %v1486 = vmul.f32 %v1365, %v1485
    %v1487 = vsub.f32 1.0, %v1486
    %v1488 = vmul.f32 %v1485, %v1487
    %v1489 = vadd.f32 %v1485, %v1488
    %vm1490 = vweird.f32 %v1365
    %vm1491 = vweird.f32 %v1485
    %vm1492 = vmor %vm1490, %vm1491
    %v1493 = vsel %vm1492, %v1485, %v1489
    %v1494 = vand.u32 2147483647, %v1365
    %vm1495 = vcmp.eq.f32.partialorder %v1494, 8.507059e+37
    %v1496 = vand.u32 %v1365, 2147483648
    %v1497 = vor.u32 1.1754944e-38, %v1496
    %v1498 = vsel %vm1495, %v1497, %v1493
    %v1499 = vrcp.pop %v1366
    %v1500 = vmul.f32 %v1366, %v1499
    %v1501 = vsub.f32 1.0, %v1500
    %v1502 = vmul.f32 %v1499, %v1501
    %v1503 = vadd.f32 %v1499, %v1502
    %vm1504 = vweird.f32 %v1366
    %vm1505 = vweird.f32 %v1499
    %vm1506 = vmor %vm1504, %vm1505
    %v1507 = vsel %vm1506, %v1499, %v1503
    %v1508 = vand.u32 2147483647, %v1366
    %vm1509 = vcmp.eq.f32.partialorder %v1508, 8.507059e+37
    %v1510 = vand.u32 %v1366, 2147483648
    %v1511 = vor.u32 1.1754944e-38, %v1510
    %v1512 = vsel %vm1509, %v1511, %v1507
    %v1513 = vrcp.pop %v1367
    %v1514 = vmul.f32 %v1367, %v1513
    %v1515 = vsub.f32 1.0, %v1514
    %v1516 = vmul.f32 %v1513, %v1515
    %v1517 = vadd.f32 %v1513, %v1516
    %vm1518 = vweird.f32 %v1367
    %vm1519 = vweird.f32 %v1513
    %vm1520 = vmor %vm1518, %vm1519
    %v1521 = vsel %vm1520, %v1513, %v1517
    %v1522 = vand.u32 2147483647, %v1367
    %vm1523 = vcmp.eq.f32.partialorder %v1522, 8.507059e+37
    %v1524 = vand.u32 %v1367, 2147483648
    %v1525 = vor.u32 1.1754944e-38, %v1524
    %v1526 = vsel %vm1523, %v1525, %v1521
    %v1527 = vrcp.pop %v1368
    %v1528 = vmul.f32 %v1368, %v1527
    %v1529 = vsub.f32 1.0, %v1528
    %v1530 = vmul.f32 %v1527, %v1529
    %v1531 = vadd.f32 %v1527, %v1530
    %vm1532 = vweird.f32 %v1368
    %vm1533 = vweird.f32 %v1527
    %vm1534 = vmor %vm1532, %vm1533
    %v1535 = vsel %vm1534, %v1527, %v1531
    %v1536 = vand.u32 2147483647, %v1368
    %vm1537 = vcmp.eq.f32.partialorder %v1536, 8.507059e+37
    %v1538 = vand.u32 %v1368, 2147483648
    %v1539 = vor.u32 1.1754944e-38, %v1538
    %v1540 = vsel %vm1537, %v1539, %v1535
    %v1541 = vrcp.pop %v1369
    %v1542 = vmul.f32 %v1369, %v1541
    %v1543 = vsub.f32 1.0, %v1542
    %v1544 = vmul.f32 %v1541, %v1543
    %v1545 = vadd.f32 %v1541, %v1544
    %vm1546 = vweird.f32 %v1369
    %vm1547 = vweird.f32 %v1541
    %vm1548 = vmor %vm1546, %vm1547
    %v1549 = vsel %vm1548, %v1541, %v1545
    %v1550 = vand.u32 2147483647, %v1369
    %vm1551 = vcmp.eq.f32.partialorder %v1550, 8.507059e+37
    %v1552 = vand.u32 %v1369, 2147483648
    %v1553 = vor.u32 1.1754944e-38, %v1552
    %v1554 = vsel %vm1551, %v1553, %v1549
    %v1555 = vrcp.pop %v1370
    %v1556 = vmul.f32 %v1370, %v1555
    %v1557 = vsub.f32 1.0, %v1556
    %v1558 = vmul.f32 %v1555, %v1557
    %v1559 = vadd.f32 %v1555, %v1558
    %vm1560 = vweird.f32 %v1370
    %vm1561 = vweird.f32 %v1555
    %vm1562 = vmor %vm1560, %vm1561
    %v1563 = vsel %vm1562, %v1555, %v1559
    %v1564 = vand.u32 2147483647, %v1370
    %vm1565 = vcmp.eq.f32.partialorder %v1564, 8.507059e+37
    %v1566 = vand.u32 %v1370, 2147483648
    %v1567 = vor.u32 1.1754944e-38, %v1566
    %v1568 = vsel %vm1565, %v1567, %v1563
    %v1569 = vrcp.pop %v1371
    %v1570 = vmul.f32 %v1371, %v1569
    %v1571 = vsub.f32 1.0, %v1570
    %v1572 = vmul.f32 %v1569, %v1571
    %v1573 = vadd.f32 %v1569, %v1572
    %vm1574 = vweird.f32 %v1371
    %vm1575 = vweird.f32 %v1569
    %vm1576 = vmor %vm1574, %vm1575
    %v1577 = vsel %vm1576, %v1569, %v1573
    %v1578 = vand.u32 2147483647, %v1371
    %vm1579 = vcmp.eq.f32.partialorder %v1578, 8.507059e+37
    %v1580 = vand.u32 %v1371, 2147483648
    %v1581 = vor.u32 1.1754944e-38, %v1580
    %v1582 = vsel %vm1579, %v1581, %v1577
    %v1583 = vrcp.pop %v1372
    %v1584 = vmul.f32 %v1372, %v1583
    %v1585 = vsub.f32 1.0, %v1584
    %v1586 = vmul.f32 %v1583, %v1585
    %v1587 = vadd.f32 %v1583, %v1586
    %vm1588 = vweird.f32 %v1372
    %vm1589 = vweird.f32 %v1583
    %vm1590 = vmor %vm1588, %vm1589
    %v1591 = vsel %vm1590, %v1583, %v1587
    %v1592 = vand.u32 2147483647, %v1372
    %vm1593 = vcmp.eq.f32.partialorder %v1592, 8.507059e+37
    %v1594 = vand.u32 %v1372, 2147483648
    %v1595 = vor.u32 1.1754944e-38, %v1594
    %v1596 = vsel %vm1593, %v1595, %v1591
    %v1597 = vmul.f32 %v1310, %v1386
    %v1598 = vmul.f32 %v1313, %v1400
    %v1599 = vmul.f32 %v1316, %v1414
    %v1600 = vmul.f32 %v1319, %v1428
    %v1601 = vmul.f32 %v1322, %v1442
    %v1602 = vmul.f32 %v1325, %v1456
    %v1603 = vmul.f32 %v1328, %v1470
    %v1604 = vmul.f32 %v1331, %v1484
    %v1605 = vmul.f32 %v1334, %v1498
    %v1606 = vmul.f32 %v1337, %v1512
    %v1607 = vmul.f32 %v1340, %v1526
    %v1608 = vmul.f32 %v1343, %v1540
    %v1609 = vmul.f32 %v1346, %v1554
    %v1610 = vmul.f32 %v1349, %v1568
    %v1611 = vmul.f32 %v1352, %v1582
    %v1612 = vmul.f32 %v1355, %v1596
    %v1613 = vld [vmem:[%s2 + $0x20] sm:$0xff]
    %v1614 = vld [vmem:[%s2 + $0x28] sm:$0xff]
    %v1615 = vld [vmem:[%s2 + $0x30] sm:$0xff]
    %v1616 = vld [vmem:[%s2 + $0x38] sm:$0xff]
    %v1618 = vsel %vm356, %v1597, 0
    %v1621 = vsel %vm356, %v1598, 0
    %v1624 = vsel %vm356, %v1599, 0
    %v1627 = vsel %vm356, %v1600, 0
    %v1630 = vsel %vm356, %v1601, 0
    %v1633 = vsel %vm356, %v1602, 0
    %v1636 = vsel %vm356, %v1603, 0
    %v1639 = vsel %vm356, %v1604, 0
    %v1642 = vsel %vm356, %v1605, 0
    %v1645 = vsel %vm356, %v1606, 0
    %v1648 = vsel %vm356, %v1607, 0
    %v1651 = vsel %vm356, %v1608, 0
    %v1654 = vsel %vm356, %v1609, 0
    %v1657 = vsel %vm356, %v1610, 0
    %v1660 = vsel %vm356, %v1611, 0
    %v1663 = vsel %vm356, %v1612, 0
    %1665 = vmatpush.msra.mxu0 0.0
    %1666 = vmatpush.msra.mxu0 0.0
    %1667 = vmatpush.msra.mxu0 0.0
    %1668 = vmatpush.msra.mxu0 0.0
    %1669 = vmatpush.msra.mxu0 0.0
    %1670 = vmatpush.msra.mxu0 0.0
    %1671 = vmatpush.msra.mxu0 0.0
    %1672 = vmatpush.msra.mxu0 0.0
    %1673 = vmatpush.msra.mxu0 0.0
    %1674 = vmatpush.msra.mxu0 0.0
    %1675 = vmatpush.msra.mxu0 0.0
    %1676 = vmatpush.msra.mxu0 0.0
    %1677 = vmatpush.msra.mxu0 %v1616
    %1678 = vmatpush.msra.mxu0 %v1615
    %1679 = vmatpush.msra.mxu0 %v1614
    %1680 = vmatpush.msra.mxu0 %v1613
    %1681 = vmatmul.f32.gmra.mxu0 %v1618
    %v1682 = vpop.f32.mrf.mxu0
    %v1683 = vadd.f32 0.0, %v1682
    %1684 = vmatmul.f32.gmra.mxu0 %v1621
    %v1685 = vpop.f32.mrf.mxu0
    %v1686 = vadd.f32 0.0, %v1685
    %1687 = vmatmul.f32.gmra.mxu0 %v1624
    %v1688 = vpop.f32.mrf.mxu0
    %v1689 = vadd.f32 0.0, %v1688
    %1690 = vmatmul.f32.gmra.mxu0 %v1627
    %v1691 = vpop.f32.mrf.mxu0
    %v1692 = vadd.f32 0.0, %v1691
    %1693 = vmatmul.f32.gmra.mxu0 %v1630
    %v1694 = vpop.f32.mrf.mxu0
    %v1695 = vadd.f32 0.0, %v1694
    %1696 = vmatmul.f32.gmra.mxu0 %v1633
    %v1697 = vpop.f32.mrf.mxu0
    %v1698 = vadd.f32 0.0, %v1697
    %1699 = vmatmul.f32.gmra.mxu0 %v1636
    %v1700 = vpop.f32.mrf.mxu0
    %v1701 = vadd.f32 0.0, %v1700
    %1702 = vmatmul.f32.gmra.mxu0 %v1639
    %v1703 = vpop.f32.mrf.mxu0
    %v1704 = vadd.f32 0.0, %v1703
    %1705 = vmatmul.f32.gmra.mxu0 %v1642
    %v1706 = vpop.f32.mrf.mxu0
    %v1707 = vadd.f32 0.0, %v1706
    %1708 = vmatmul.f32.gmra.mxu0 %v1645
    %v1709 = vpop.f32.mrf.mxu0
    %v1710 = vadd.f32 0.0, %v1709
    %1711 = vmatmul.f32.gmra.mxu0 %v1648
    %v1712 = vpop.f32.mrf.mxu0
    %v1713 = vadd.f32 0.0, %v1712
    %1714 = vmatmul.f32.gmra.mxu0 %v1651
    %v1715 = vpop.f32.mrf.mxu0
    %v1716 = vadd.f32 0.0, %v1715
    %1717 = vmatmul.f32.gmra.mxu0 %v1654
    %v1718 = vpop.f32.mrf.mxu0
    %v1719 = vadd.f32 0.0, %v1718
    %1720 = vmatmul.f32.gmra.mxu0 %v1657
    %v1721 = vpop.f32.mrf.mxu0
    %v1722 = vadd.f32 0.0, %v1721
    %1723 = vmatmul.f32.gmra.mxu0 %v1660
    %v1724 = vpop.f32.mrf.mxu0
    %v1725 = vadd.f32 0.0, %v1724
    %1726 = vmatmul.f32.gmra.mxu0 %v1663
    %v1727 = vpop.f32.mrf.mxu0
    %v1728 = vadd.f32 0.0, %v1727
    %1729 = vdwg.mxu0
    %v1731 = vsel %vm356, %v903, 0
    %v1734 = vsel %vm356, %v904, 0
    %v1737 = vsel %vm356, %v905, 0
    %v1740 = vsel %vm356, %v906, 0
    %v1743 = vsel %vm356, %v907, 0
    %v1746 = vsel %vm356, %v908, 0
    %v1749 = vsel %vm356, %v909, 0
    %v1752 = vsel %vm356, %v910, 0
    %v1755 = vsel %vm356, %v911, 0
    %v1758 = vsel %vm356, %v912, 0
    %v1761 = vsel %vm356, %v913, 0
    %v1764 = vsel %vm356, %v914, 0
    %v1767 = vsel %vm356, %v915, 0
    %v1770 = vsel %vm356, %v916, 0
    %v1773 = vsel %vm356, %v917, 0
    %v1776 = vsel %vm356, %v918, 0
    %1778 = vmatpush.msra.mxu0 0.0
    %1779 = vmatpush.msra.mxu0 0.0
    %1780 = vmatpush.msra.mxu0 0.0
    %1781 = vmatpush.msra.mxu0 0.0
    %1782 = vmatpush.msra.mxu0 0.0
    %1783 = vmatpush.msra.mxu0 0.0
    %1784 = vmatpush.msra.mxu0 0.0
    %1785 = vmatpush.msra.mxu0 0.0
    %1786 = vmatpush.msra.mxu0 0.0
    %1787 = vmatpush.msra.mxu0 0.0
    %1788 = vmatpush.msra.mxu0 0.0
    %1789 = vmatpush.msra.mxu0 0.0
    %1790 = vmatpush.msra.mxu0 %v922
    %1791 = vmatpush.msra.mxu0 %v921
    %1792 = vmatpush.msra.mxu0 %v920
    %1793 = vmatpush.msra.mxu0 %v919
    %1794 = vmatmul.f32.gmra.mxu0 %v1731
    %v1795 = vpop.f32.mrf.mxu0
    %v1796 = vadd.f32 %v1683, %v1795
    %1797 = vmatmul.f32.gmra.mxu0 %v1734
    %v1798 = vpop.f32.mrf.mxu0
    %v1799 = vadd.f32 %v1686, %v1798
    %1800 = vmatmul.f32.gmra.mxu0 %v1737
    %v1801 = vpop.f32.mrf.mxu0
    %v1802 = vadd.f32 %v1689, %v1801
    %1803 = vmatmul.f32.gmra.mxu0 %v1740
    %v1804 = vpop.f32.mrf.mxu0
    %v1805 = vadd.f32 %v1692, %v1804
    %1806 = vmatmul.f32.gmra.mxu0 %v1743
    %v1807 = vpop.f32.mrf.mxu0
    %v1808 = vadd.f32 %v1695, %v1807
    %1809 = vmatmul.f32.gmra.mxu0 %v1746
    %v1810 = vpop.f32.mrf.mxu0
    %v1811 = vadd.f32 %v1698, %v1810
    %1812 = vmatmul.f32.gmra.mxu0 %v1749
    %v1813 = vpop.f32.mrf.mxu0
    %v1814 = vadd.f32 %v1701, %v1813
    %1815 = vmatmul.f32.gmra.mxu0 %v1752
    %v1816 = vpop.f32.mrf.mxu0
    %v1817 = vadd.f32 %v1704, %v1816
    %1818 = vmatmul.f32.gmra.mxu0 %v1755
    %v1819 = vpop.f32.mrf.mxu0
    %v1820 = vadd.f32 %v1707, %v1819
    %1821 = vmatmul.f32.gmra.mxu0 %v1758
    %v1822 = vpop.f32.mrf.mxu0
    %v1823 = vadd.f32 %v1710, %v1822
    %1824 = vmatmul.f32.gmra.mxu0 %v1761
    %v1825 = vpop.f32.mrf.mxu0
    %v1826 = vadd.f32 %v1713, %v1825
    %1827 = vmatmul.f32.gmra.mxu0 %v1764
    %v1828 = vpop.f32.mrf.mxu0
    %v1829 = vadd.f32 %v1716, %v1828
    %1830 = vmatmul.f32.gmra.mxu0 %v1767
    %v1831 = vpop.f32.mrf.mxu0
    %v1832 = vadd.f32 %v1719, %v1831
    %1833 = vmatmul.f32.gmra.mxu0 %v1770
    %v1834 = vpop.f32.mrf.mxu0
    %v1835 = vadd.f32 %v1722, %v1834
    %1836 = vmatmul.f32.gmra.mxu0 %v1773
    %v1837 = vpop.f32.mrf.mxu0
    %v1838 = vadd.f32 %v1725, %v1837
    %1839 = vmatmul.f32.gmra.mxu0 %v1776
    %v1840 = vpop.f32.mrf.mxu0
    %v1841 = vadd.f32 %v1728, %v1840
    %1842 = vdwg.mxu0
    %v1843 = vmax.f32 %v1796, 0.0
    %v1844 = vmax.f32 %v1799, 0.0
    %v1845 = vmax.f32 %v1802, 0.0
    %v1846 = vmax.f32 %v1805, 0.0
    %v1847 = vmax.f32 %v1808, 0.0
    %v1848 = vmax.f32 %v1811, 0.0
    %v1849 = vmax.f32 %v1814, 0.0
    %v1850 = vmax.f32 %v1817, 0.0
    %v1851 = vmax.f32 %v1820, 0.0
    %v1852 = vmax.f32 %v1823, 0.0
    %v1853 = vmax.f32 %v1826, 0.0
    %v1854 = vmax.f32 %v1829, 0.0
    %v1855 = vmax.f32 %v1832, 0.0
    %v1856 = vmax.f32 %v1835, 0.0
    %v1857 = vmax.f32 %v1838, 0.0
    %v1858 = vmax.f32 %v1841, 0.0
    %v1859 = vld [vmem:[%s3] sm:$0xff]
    %v1860 = vld [vmem:[%s3 + $0x8] sm:$0xff]
    %v1861 = vld [vmem:[%s3 + $0x10] sm:$0xff]
    %v1862 = vld [vmem:[%s3 + $0x18] sm:$0xff]
    %v1863 = vld [vmem:[%s3 + $0x20] sm:$0xff]
    %v1864 = vld [vmem:[%s3 + $0x28] sm:$0xff]
    %v1865 = vld [vmem:[%s3 + $0x30] sm:$0xff]
    %v1866 = vld [vmem:[%s3 + $0x38] sm:$0xff]
    %vm1867 = vcmask 523264
    %v1869 = vsel %vm1867, %v1843, 0
    %v1872 = vsel %vm1867, %v1844, 0
    %v1875 = vsel %vm1867, %v1845, 0
    %v1878 = vsel %vm1867, %v1846, 0
    %v1881 = vsel %vm1867, %v1847, 0
    %v1884 = vsel %vm1867, %v1848, 0
    %v1887 = vsel %vm1867, %v1849, 0
    %v1890 = vsel %vm1867, %v1850, 0
    %v1893 = vsel %vm1867, %v1851, 0
    %v1896 = vsel %vm1867, %v1852, 0
    %v1899 = vsel %vm1867, %v1853, 0
    %v1902 = vsel %vm1867, %v1854, 0
    %v1905 = vsel %vm1867, %v1855, 0
    %v1908 = vsel %vm1867, %v1856, 0
    %v1911 = vsel %vm1867, %v1857, 0
    %v1914 = vsel %vm1867, %v1858, 0
    %1916 = vmatpush.msra.mxu0 0.0
    %1917 = vmatpush.msra.mxu0 0.0
    %1918 = vmatpush.msra.mxu0 0.0
    %1919 = vmatpush.msra.mxu0 0.0
    %1920 = vmatpush.msra.mxu0 0.0
    %1921 = vmatpush.msra.mxu0 0.0
    %1922 = vmatpush.msra.mxu0 0.0
    %1923 = vmatpush.msra.mxu0 0.0
    %1924 = vmatpush.msra.mxu0 %v1866
    %1925 = vmatpush.msra.mxu0 %v1865
    %1926 = vmatpush.msra.mxu0 %v1864
    %1927 = vmatpush.msra.mxu0 %v1863
    %1928 = vmatpush.msra.mxu0 %v1862
    %1929 = vmatpush.msra.mxu0 %v1861
    %1930 = vmatpush.msra.mxu0 %v1860
    %1931 = vmatpush.msra.mxu0 %v1859
    %1932 = vmatmul.f32.gmra.mxu0 %v1869
    %v1933 = vpop.f32.mrf.mxu0
    %v1934 = vadd.f32 0.0, %v1933
    %1935 = vmatmul.f32.gmra.mxu0 %v1872
    %v1936 = vpop.f32.mrf.mxu0
    %v1937 = vadd.f32 0.0, %v1936
    %1938 = vmatmul.f32.gmra.mxu0 %v1875
    %v1939 = vpop.f32.mrf.mxu0
    %v1940 = vadd.f32 0.0, %v1939
    %1941 = vmatmul.f32.gmra.mxu0 %v1878
    %v1942 = vpop.f32.mrf.mxu0
    %v1943 = vadd.f32 0.0, %v1942
    %1944 = vmatmul.f32.gmra.mxu0 %v1881
    %v1945 = vpop.f32.mrf.mxu0
    %v1946 = vadd.f32 0.0, %v1945
    %1947 = vmatmul.f32.gmra.mxu0 %v1884
    %v1948 = vpop.f32.mrf.mxu0
    %v1949 = vadd.f32 0.0, %v1948
    %1950 = vmatmul.f32.gmra.mxu0 %v1887
    %v1951 = vpop.f32.mrf.mxu0
    %v1952 = vadd.f32 0.0, %v1951
    %1953 = vmatmul.f32.gmra.mxu0 %v1890
    %v1954 = vpop.f32.mrf.mxu0
    %v1955 = vadd.f32 0.0, %v1954
    %1956 = vmatmul.f32.gmra.mxu0 %v1893
    %v1957 = vpop.f32.mrf.mxu0
    %v1958 = vadd.f32 0.0, %v1957
    %1959 = vmatmul.f32.gmra.mxu0 %v1896
    %v1960 = vpop.f32.mrf.mxu0
    %v1961 = vadd.f32 0.0, %v1960
    %1962 = vmatmul.f32.gmra.mxu0 %v1899
    %v1963 = vpop.f32.mrf.mxu0
    %v1964 = vadd.f32 0.0, %v1963
    %1965 = vmatmul.f32.gmra.mxu0 %v1902
    %v1966 = vpop.f32.mrf.mxu0
    %v1967 = vadd.f32 0.0, %v1966
    %1968 = vmatmul.f32.gmra.mxu0 %v1905
    %v1969 = vpop.f32.mrf.mxu0
    %v1970 = vadd.f32 0.0, %v1969
    %1971 = vmatmul.f32.gmra.mxu0 %v1908
    %v1972 = vpop.f32.mrf.mxu0
    %v1973 = vadd.f32 0.0, %v1972
    %1974 = vmatmul.f32.gmra.mxu0 %v1911
    %v1975 = vpop.f32.mrf.mxu0
    %v1976 = vadd.f32 0.0, %v1975
    %1977 = vmatmul.f32.gmra.mxu0 %v1914
    %v1978 = vpop.f32.mrf.mxu0
    %v1979 = vadd.f32 0.0, %v1978
    %1980 = vdwg.mxu0
    %v1981 = vmax.f32 %v1934, 0.0
    %v1982 = vmax.f32 %v1937, 0.0
    %v1983 = vmax.f32 %v1940, 0.0
    %v1984 = vmax.f32 %v1943, 0.0
    %v1985 = vmax.f32 %v1946, 0.0
    %v1986 = vmax.f32 %v1949, 0.0
    %v1987 = vmax.f32 %v1952, 0.0
    %v1988 = vmax.f32 %v1955, 0.0
    %v1989 = vmax.f32 %v1958, 0.0
    %v1990 = vmax.f32 %v1961, 0.0
    %v1991 = vmax.f32 %v1964, 0.0
    %v1992 = vmax.f32 %v1967, 0.0
    %v1993 = vmax.f32 %v1970, 0.0
    %v1994 = vmax.f32 %v1973, 0.0
    %v1995 = vmax.f32 %v1976, 0.0
    %v1996 = vmax.f32 %v1979, 0.0
    %v1997 = vld [vmem:[%s8] sm:$0xff]
    %v1998 = vld [vmem:[%s8 + $0x8] sm:$0xff]
    %v1999 = vld [vmem:[%s8 + $0x10] sm:$0xff]
    %v2000 = vld [vmem:[%s8 + $0x18] sm:$0xff]
    %v2001 = vld [vmem:[%s8 + $0x20] sm:$0xff]
    %v2002 = vld [vmem:[%s8 + $0x28] sm:$0xff]
    %v2003 = vld [vmem:[%s8 + $0x30] sm:$0xff]
    %v2004 = vld [vmem:[%s8 + $0x38] sm:$0xff]
    %v2005 = vld [vmem:[%s5] sm:$0x1]
    %v2006 = vld [vmem:[%s6] sm:$0x1]
    %v2007 = vld [vmem:[%s4] sm:$0xff]
    %v2008 = vld [vmem:[%s4 + $0x8] sm:$0x3]
    %v2010 = vsel %vm1867, %v2007, 0
    %v2013 = vsel %vm1867, %v2008, 0
    %v2016 = vsel %vm1867, %v1981, 0
    %v2019 = vsel %vm1867, %v1982, 0
    %v2022 = vsel %vm1867, %v1983, 0
    %v2025 = vsel %vm1867, %v1984, 0
    %v2028 = vsel %vm1867, %v1985, 0
    %v2031 = vsel %vm1867, %v1986, 0
    %v2034 = vsel %vm1867, %v1987, 0
    %v2037 = vsel %vm1867, %v1988, 0
    %2039 = vmatpush.xpose.msra.mxu0 0.0
    %2040 = vmatpush.xpose.msra.mxu0 0.0
    %2041 = vmatpush.xpose.msra.mxu0 0.0
    %2042 = vmatpush.xpose.msra.mxu0 0.0
    %2043 = vmatpush.xpose.msra.mxu0 0.0
    %2044 = vmatpush.xpose.msra.mxu0 0.0
    %2045 = vmatpush.xpose.msra.mxu0 0.0
    %2046 = vmatpush.xpose.msra.mxu0 0.0
    %2047 = vmatpush.xpose.msra.mxu0 %v2037
    %2048 = vmatpush.xpose.msra.mxu0 %v2034
    %2049 = vmatpush.xpose.msra.mxu0 %v2031
    %2050 = vmatpush.xpose.msra.mxu0 %v2028
    %2051 = vmatpush.xpose.msra.mxu0 %v2025
    %2052 = vmatpush.xpose.msra.mxu0 %v2022
    %2053 = vmatpush.xpose.msra.mxu0 %v2019
    %2054 = vmatpush.xpose.msra.mxu0 %v2016
    %2055 = vmatmul.f32.gmra.mxu0 %v2010
    %v2056 = vpop.f32.mrf.mxu0
    %v2057 = vadd.f32 %v49, %v2056
    %2058 = vmatmul.f32.gmra.mxu0 %v2013
    %v2059 = vpop.f32.mrf.mxu0
    %v2060 = vadd.f32 %v50, %v2059
    %2061 = vdwg.mxu0
    %v2062 = vsel %vm1867, %v2057, 0.0
    %2063 = vadd.xlane.f32.xlu0 %v2062
    %v2064 = vpop.xlane.xlu0 %2063
    %vm2065 = vcmask 517120
    %v2066 = vsel %vm2065, %v2060, 0.0
    %2067 = vadd.xlane.f32.xlu0 %v2066
    %v2068 = vpop.xlane.xlu0 %2067
    %v2069 = vrcp.pop 64.0
    %v2070 = vmul.f32 64.0, %v2069
    %v2071 = vsub.f32 1.0, %v2070
    %v2072 = vmul.f32 %v2069, %v2071
    %v2073 = vadd.f32 %v2069, %v2072
    %vm2074 = vweird.f32 %v2069
    %v2075 = vsel %vm2074, %v2069, %v2073
    %v2076 = vmul.f32 %v2064, %v2075
    %v2077 = vmul.f32 %v2068, %v2075
    %v2078 = vsub.f32 %v2057, %v2076
    %v2079 = vsub.f32 %v2060, %v2077
    %v2080 = vmul.f32 %v2078, %v2078
    %v2081 = vmul.f32 %v2079, %v2079
    %v2082 = vsel %vm1867, %v2080, 0.0
    %2083 = vadd.xlane.f32.xlu0 %v2082
    %v2084 = vpop.xlane.xlu0 %2083
    %v2085 = vsel %vm2065, %v2081, 0.0
    %2086 = vadd.xlane.f32.xlu0 %v2085
    %v2087 = vpop.xlane.xlu0 %2086
    %v2088 = vmul.f32 %v2084, %v2075
    %v2089 = vmul.f32 %v2087, %v2075
    %v2090 = vadd.f32 %v2088, 1e-05
    %v2091 = vadd.f32 %v2089, 1e-05
    %v2092 = vrsqrt.pop %v2090
    %v2093 = vmul.f32 %v2092, %v2090
    %v2094 = vmul.f32 %v2093, %v2092
    %v2095 = vmul.f32 0.5, %v2094
    %v2096 = vsub.f32 1.5, %v2095
    %v2097 = vmul.f32 %v2092, %v2096
    %vm2098 = vweird.f32 %v2090
    %vm2099 = vweird.f32 %v2092
    %vm2100 = vmor %vm2098, %vm2099
    %v2101 = vsel %vm2100, %v2092, %v2097
    %v2102 = vrsqrt.pop %v2091
    %v2103 = vmul.f32 %v2102, %v2091
    %v2104 = vmul.f32 %v2103, %v2102
    %v2105 = vmul.f32 0.5, %v2104
    %v2106 = vsub.f32 1.5, %v2105
    %v2107 = vmul.f32 %v2102, %v2106
    %vm2108 = vweird.f32 %v2091
    %vm2109 = vweird.f32 %v2102
    %vm2110 = vmor %vm2108, %vm2109
    %v2111 = vsel %vm2110, %v2102, %v2107
    %v2112 = vmul.f32 %v2078, %v2101
    %v2113 = vmul.f32 %v2079, %v2111
    %v2115 = vperm.slane %v2005, 0
    %v2117 = vmul.f32 %v2112, %v2115
    %v2118 = vmul.f32 %v2113, %v2115
    %v2120 = vperm.slane %v2006, 0
    %v2122 = vadd.f32 %v2117, %v2120
    %v2123 = vadd.f32 %v2118, %v2120
    %2124 = vst.msk [vmem:[#allocation2] sm:$0xff] %vm1867, %v2122
    %2125 = vst.msk [vmem:[#allocation2 + $0x8] sm:$0x3] %vm2065, %v2123
    %v2126 = vld [vmem:[#allocation2] sm:$0x1]
    %v2127 = vld [vmem:[#allocation3] sm:$0xff]
    %v2128 = vld [vmem:[#allocation3 + $0x8] sm:$0xff]
    %v2129 = vld [vmem:[#allocation3 + $0x10] sm:$0xff]
    %v2130 = vld [vmem:[#allocation3 + $0x18] sm:$0xff]
    %v2131 = vld [vmem:[#allocation3 + $0x20] sm:$0xff]
    %v2132 = vld [vmem:[#allocation3 + $0x28] sm:$0xff]
    %v2133 = vld [vmem:[#allocation3 + $0x30] sm:$0xff]
    %v2134 = vld [vmem:[#allocation3 + $0x38] sm:$0xff]
    %v2135 = vld [vmem:[#allocation2 + $0x1] sm:$0x1]
    %s2136 = scalar_lea.vmem [#allocation3], 64
    %v2137 = vld [vmem:[%s2136] sm:$0xff]
    %v2138 = vld [vmem:[%s2136 + $0x8] sm:$0xff]
    %v2139 = vld [vmem:[%s2136 + $0x10] sm:$0xff]
    %v2140 = vld [vmem:[%s2136 + $0x18] sm:$0xff]
    %v2141 = vld [vmem:[%s2136 + $0x20] sm:$0xff]
    %v2142 = vld [vmem:[%s2136 + $0x28] sm:$0xff]
    %v2143 = vld [vmem:[%s2136 + $0x30] sm:$0xff]
    %v2144 = vld [vmem:[%s2136 + $0x38] sm:$0xff]
    %v2146 = vsel %vm1867, %v2135, 0
    %2148 = vmatpush.msra.mxu0 0.0
    %2149 = vmatpush.msra.mxu0 0.0
    %2150 = vmatpush.msra.mxu0 0.0
    %2151 = vmatpush.msra.mxu0 0.0
    %2152 = vmatpush.msra.mxu0 0.0
    %2153 = vmatpush.msra.mxu0 0.0
    %2154 = vmatpush.msra.mxu0 0.0
    %2155 = vmatpush.msra.mxu0 0.0
    %2156 = vmatpush.msra.mxu0 %v2144
    %2157 = vmatpush.msra.mxu0 %v2143
    %2158 = vmatpush.msra.mxu0 %v2142
    %2159 = vmatpush.msra.mxu0 %v2141
    %2160 = vmatpush.msra.mxu0 %v2140
    %2161 = vmatpush.msra.mxu0 %v2139
    %2162 = vmatpush.msra.mxu0 %v2138
    %2163 = vmatpush.msra.mxu0 %v2137
    %2164 = vmatmul.f32.gmra.mxu0 %v2146
    %v2165 = vpop.f32.mrf.mxu0
    %v2166 = vadd.f32 0.0, %v2165
    %2167 = vdwg.mxu0
    %v2169 = vsel %vm1867, %v2126, 0
    %2171 = vmatpush.msra.mxu0 0.0
    %2172 = vmatpush.msra.mxu0 0.0
    %2173 = vmatpush.msra.mxu0 0.0
    %2174 = vmatpush.msra.mxu0 0.0
    %2175 = vmatpush.msra.mxu0 0.0
    %2176 = vmatpush.msra.mxu0 0.0
    %2177 = vmatpush.msra.mxu0 0.0
    %2178 = vmatpush.msra.mxu0 0.0
    %2179 = vmatpush.msra.mxu0 %v2134
    %2180 = vmatpush.msra.mxu0 %v2133
    %2181 = vmatpush.msra.mxu0 %v2132
    %2182 = vmatpush.msra.mxu0 %v2131
    %2183 = vmatpush.msra.mxu0 %v2130
    %2184 = vmatpush.msra.mxu0 %v2129
    %2185 = vmatpush.msra.mxu0 %v2128
    %2186 = vmatpush.msra.mxu0 %v2127
    %2187 = vmatmul.f32.gmra.mxu0 %v2169
    %v2188 = vpop.f32.mrf.mxu0
    %v2189 = vadd.f32 %v2166, %v2188
    %2190 = vdwg.mxu0
    %v2191 = vld [vmem:[#allocation2 + $0x2] sm:$0x1]
    %s2192 = scalar_lea.vmem [#allocation3], 128
    %v2193 = vld [vmem:[%s2192] sm:$0xff]
    %v2194 = vld [vmem:[%s2192 + $0x8] sm:$0xff]
    %v2195 = vld [vmem:[%s2192 + $0x10] sm:$0xff]
    %v2196 = vld [vmem:[%s2192 + $0x18] sm:$0xff]
    %v2197 = vld [vmem:[%s2192 + $0x20] sm:$0xff]
    %v2198 = vld [vmem:[%s2192 + $0x28] sm:$0xff]
    %v2199 = vld [vmem:[%s2192 + $0x30] sm:$0xff]
    %v2200 = vld [vmem:[%s2192 + $0x38] sm:$0xff]
    %v2202 = vsel %vm1867, %v2191, 0
    %2204 = vmatpush.msra.mxu0 0.0
    %2205 = vmatpush.msra.mxu0 0.0
    %2206 = vmatpush.msra.mxu0 0.0
    %2207 = vmatpush.msra.mxu0 0.0
    %2208 = vmatpush.msra.mxu0 0.0
    %2209 = vmatpush.msra.mxu0 0.0
    %2210 = vmatpush.msra.mxu0 0.0
    %2211 = vmatpush.msra.mxu0 0.0
    %2212 = vmatpush.msra.mxu0 %v2200
    %2213 = vmatpush.msra.mxu0 %v2199
    %2214 = vmatpush.msra.mxu0 %v2198
    %2215 = vmatpush.msra.mxu0 %v2197
    %2216 = vmatpush.msra.mxu0 %v2196
    %2217 = vmatpush.msra.mxu0 %v2195
    %2218 = vmatpush.msra.mxu0 %v2194
    %2219 = vmatpush.msra.mxu0 %v2193
    %2220 = vmatmul.f32.gmra.mxu0 %v2202
    %v2221 = vpop.f32.mrf.mxu0
    %v2222 = vadd.f32 0.0, %v2221
    %2223 = vdwg.mxu0
    %v2224 = vadd.f32 %v2189, %v2222
    %v2225 = vld [vmem:[#allocation2 + $0x3] sm:$0x1]
    %s2226 = scalar_lea.vmem [#allocation3], 192
    %v2227 = vld [vmem:[%s2226] sm:$0xff]
    %v2228 = vld [vmem:[%s2226 + $0x8] sm:$0xff]
    %v2229 = vld [vmem:[%s2226 + $0x10] sm:$0xff]
    %v2230 = vld [vmem:[%s2226 + $0x18] sm:$0xff]
    %v2231 = vld [vmem:[%s2226 + $0x20] sm:$0xff]
    %v2232 = vld [vmem:[%s2226 + $0x28] sm:$0xff]
    %v2233 = vld [vmem:[%s2226 + $0x30] sm:$0xff]
    %v2234 = vld [vmem:[%s2226 + $0x38] sm:$0xff]
    %v2236 = vsel %vm1867, %v2225, 0
    %2238 = vmatpush.msra.mxu0 0.0
    %2239 = vmatpush.msra.mxu0 0.0
    %2240 = vmatpush.msra.mxu0 0.0
    %2241 = vmatpush.msra.mxu0 0.0
    %2242 = vmatpush.msra.mxu0 0.0
    %2243 = vmatpush.msra.mxu0 0.0
    %2244 = vmatpush.msra.mxu0 0.0
    %2245 = vmatpush.msra.mxu0 0.0
    %2246 = vmatpush.msra.mxu0 %v2234
    %2247 = vmatpush.msra.mxu0 %v2233
    %2248 = vmatpush.msra.mxu0 %v2232
    %2249 = vmatpush.msra.mxu0 %v2231
    %2250 = vmatpush.msra.mxu0 %v2230
    %2251 = vmatpush.msra.mxu0 %v2229
    %2252 = vmatpush.msra.mxu0 %v2228
    %2253 = vmatpush.msra.mxu0 %v2227
    %2254 = vmatmul.f32.gmra.mxu0 %v2236
    %v2255 = vpop.f32.mrf.mxu0
    %v2256 = vadd.f32 0.0, %v2255
    %2257 = vdwg.mxu0
    %v2258 = vadd.f32 %v2224, %v2256
    %v2259 = vld [vmem:[#allocation2 + $0x4] sm:$0x1]
    %s2260 = scalar_lea.vmem [#allocation3], 256
    %v2261 = vld [vmem:[%s2260] sm:$0xff]
    %v2262 = vld [vmem:[%s2260 + $0x8] sm:$0xff]
    %v2263 = vld [vmem:[%s2260 + $0x10] sm:$0xff]
    %v2264 = vld [vmem:[%s2260 + $0x18] sm:$0xff]
    %v2265 = vld [vmem:[%s2260 + $0x20] sm:$0xff]
    %v2266 = vld [vmem:[%s2260 + $0x28] sm:$0xff]
    %v2267 = vld [vmem:[%s2260 + $0x30] sm:$0xff]
    %v2268 = vld [vmem:[%s2260 + $0x38] sm:$0xff]
    %v2270 = vsel %vm1867, %v2259, 0
    %2272 = vmatpush.msra.mxu0 0.0
    %2273 = vmatpush.msra.mxu0 0.0
    %2274 = vmatpush.msra.mxu0 0.0
    %2275 = vmatpush.msra.mxu0 0.0
    %2276 = vmatpush.msra.mxu0 0.0
    %2277 = vmatpush.msra.mxu0 0.0
    %2278 = vmatpush.msra.mxu0 0.0
    %2279 = vmatpush.msra.mxu0 0.0
    %2280 = vmatpush.msra.mxu0 %v2268
    %2281 = vmatpush.msra.mxu0 %v2267
    %2282 = vmatpush.msra.mxu0 %v2266
    %2283 = vmatpush.msra.mxu0 %v2265
    %2284 = vmatpush.msra.mxu0 %v2264
    %2285 = vmatpush.msra.mxu0 %v2263
    %2286 = vmatpush.msra.mxu0 %v2262
    %2287 = vmatpush.msra.mxu0 %v2261
    %2288 = vmatmul.f32.gmra.mxu0 %v2270
    %v2289 = vpop.f32.mrf.mxu0
    %v2290 = vadd.f32 0.0, %v2289
    %2291 = vdwg.mxu0
    %v2292 = vadd.f32 %v2258, %v2290
    %v2293 = vld [vmem:[#allocation2 + $0x5] sm:$0x1]
    %s2294 = scalar_lea.vmem [#allocation3], 320
    %v2295 = vld [vmem:[%s2294] sm:$0xff]
    %v2296 = vld [vmem:[%s2294 + $0x8] sm:$0xff]
    %v2297 = vld [vmem:[%s2294 + $0x10] sm:$0xff]
    %v2298 = vld [vmem:[%s2294 + $0x18] sm:$0xff]
    %v2299 = vld [vmem:[%s2294 + $0x20] sm:$0xff]
    %v2300 = vld [vmem:[%s2294 + $0x28] sm:$0xff]
    %v2301 = vld [vmem:[%s2294 + $0x30] sm:$0xff]
    %v2302 = vld [vmem:[%s2294 + $0x38] sm:$0xff]
    %v2304 = vsel %vm1867, %v2293, 0
    %2306 = vmatpush.msra.mxu0 0.0
    %2307 = vmatpush.msra.mxu0 0.0
    %2308 = vmatpush.msra.mxu0 0.0
    %2309 = vmatpush.msra.mxu0 0.0
    %2310 = vmatpush.msra.mxu0 0.0
    %2311 = vmatpush.msra.mxu0 0.0
    %2312 = vmatpush.msra.mxu0 0.0
    %2313 = vmatpush.msra.mxu0 0.0
    %2314 = vmatpush.msra.mxu0 %v2302
    %2315 = vmatpush.msra.mxu0 %v2301
    %2316 = vmatpush.msra.mxu0 %v2300
    %2317 = vmatpush.msra.mxu0 %v2299
    %2318 = vmatpush.msra.mxu0 %v2298
    %2319 = vmatpush.msra.mxu0 %v2297
    %2320 = vmatpush.msra.mxu0 %v2296
    %2321 = vmatpush.msra.mxu0 %v2295
    %2322 = vmatmul.f32.gmra.mxu0 %v2304
    %v2323 = vpop.f32.mrf.mxu0
    %v2324 = vadd.f32 0.0, %v2323
    %2325 = vdwg.mxu0
    %v2326 = vadd.f32 %v2292, %v2324
    %v2327 = vld [vmem:[#allocation2 + $0x6] sm:$0x1]
    %s2328 = scalar_lea.vmem [#allocation3], 384
    %v2329 = vld [vmem:[%s2328] sm:$0xff]
    %v2330 = vld [vmem:[%s2328 + $0x8] sm:$0xff]
    %v2331 = vld [vmem:[%s2328 + $0x10] sm:$0xff]
    %v2332 = vld [vmem:[%s2328 + $0x18] sm:$0xff]
    %v2333 = vld [vmem:[%s2328 + $0x20] sm:$0xff]
    %v2334 = vld [vmem:[%s2328 + $0x28] sm:$0xff]
    %v2335 = vld [vmem:[%s2328 + $0x30] sm:$0xff]
    %v2336 = vld [vmem:[%s2328 + $0x38] sm:$0xff]
    %v2338 = vsel %vm1867, %v2327, 0
    %2340 = vmatpush.msra.mxu0 0.0
    %2341 = vmatpush.msra.mxu0 0.0
    %2342 = vmatpush.msra.mxu0 0.0
    %2343 = vmatpush.msra.mxu0 0.0
    %2344 = vmatpush.msra.mxu0 0.0
    %2345 = vmatpush.msra.mxu0 0.0
    %2346 = vmatpush.msra.mxu0 0.0
    %2347 = vmatpush.msra.mxu0 0.0
    %2348 = vmatpush.msra.mxu0 %v2336
    %2349 = vmatpush.msra.mxu0 %v2335
    %2350 = vmatpush.msra.mxu0 %v2334
    %2351 = vmatpush.msra.mxu0 %v2333
    %2352 = vmatpush.msra.mxu0 %v2332
    %2353 = vmatpush.msra.mxu0 %v2331
    %2354 = vmatpush.msra.mxu0 %v2330
    %2355 = vmatpush.msra.mxu0 %v2329
    %2356 = vmatmul.f32.gmra.mxu0 %v2338
    %v2357 = vpop.f32.mrf.mxu0
    %v2358 = vadd.f32 0.0, %v2357
    %2359 = vdwg.mxu0
    %v2360 = vadd.f32 %v2326, %v2358
    %v2361 = vld [vmem:[#allocation2 + $0x7] sm:$0x1]
    %s2362 = scalar_lea.vmem [#allocation3], 448
    %v2363 = vld [vmem:[%s2362] sm:$0xff]
    %v2364 = vld [vmem:[%s2362 + $0x8] sm:$0xff]
    %v2365 = vld [vmem:[%s2362 + $0x10] sm:$0xff]
    %v2366 = vld [vmem:[%s2362 + $0x18] sm:$0xff]
    %v2367 = vld [vmem:[%s2362 + $0x20] sm:$0xff]
    %v2368 = vld [vmem:[%s2362 + $0x28] sm:$0xff]
    %v2369 = vld [vmem:[%s2362 + $0x30] sm:$0xff]
    %v2370 = vld [vmem:[%s2362 + $0x38] sm:$0xff]
    %v2372 = vsel %vm1867, %v2361, 0
    %2374 = vmatpush.msra.mxu0 0.0
    %2375 = vmatpush.msra.mxu0 0.0
    %2376 = vmatpush.msra.mxu0 0.0
    %2377 = vmatpush.msra.mxu0 0.0
    %2378 = vmatpush.msra.mxu0 0.0
    %2379 = vmatpush.msra.mxu0 0.0
    %2380 = vmatpush.msra.mxu0 0.0
    %2381 = vmatpush.msra.mxu0 0.0
    %2382 = vmatpush.msra.mxu0 %v2370
    %2383 = vmatpush.msra.mxu0 %v2369
    %2384 = vmatpush.msra.mxu0 %v2368
    %2385 = vmatpush.msra.mxu0 %v2367
    %2386 = vmatpush.msra.mxu0 %v2366
    %2387 = vmatpush.msra.mxu0 %v2365
    %2388 = vmatpush.msra.mxu0 %v2364
    %2389 = vmatpush.msra.mxu0 %v2363
    %2390 = vmatmul.f32.gmra.mxu0 %v2372
    %v2391 = vpop.f32.mrf.mxu0
    %v2392 = vadd.f32 0.0, %v2391
    %2393 = vdwg.mxu0
    %v2394 = vadd.f32 %v2360, %v2392
    %v2395 = vld [vmem:[#allocation2 + $0x8] sm:$0x1]
    %s2396 = scalar_lea.vmem [#allocation3], 512
    %v2397 = vld [vmem:[%s2396] sm:$0xff]
    %v2398 = vld [vmem:[%s2396 + $0x8] sm:$0xff]
    %v2399 = vld [vmem:[%s2396 + $0x10] sm:$0xff]
    %v2400 = vld [vmem:[%s2396 + $0x18] sm:$0xff]
    %v2401 = vld [vmem:[%s2396 + $0x20] sm:$0xff]
    %v2402 = vld [vmem:[%s2396 + $0x28] sm:$0xff]
    %v2403 = vld [vmem:[%s2396 + $0x30] sm:$0xff]
    %v2404 = vld [vmem:[%s2396 + $0x38] sm:$0xff]
    %v2406 = vsel %vm1867, %v2395, 0
    %2408 = vmatpush.msra.mxu0 0.0
    %2409 = vmatpush.msra.mxu0 0.0
    %2410 = vmatpush.msra.mxu0 0.0
    %2411 = vmatpush.msra.mxu0 0.0
    %2412 = vmatpush.msra.mxu0 0.0
    %2413 = vmatpush.msra.mxu0 0.0
    %2414 = vmatpush.msra.mxu0 0.0
    %2415 = vmatpush.msra.mxu0 0.0
    %2416 = vmatpush.msra.mxu0 %v2404
    %2417 = vmatpush.msra.mxu0 %v2403
    %2418 = vmatpush.msra.mxu0 %v2402
    %2419 = vmatpush.msra.mxu0 %v2401
    %2420 = vmatpush.msra.mxu0 %v2400
    %2421 = vmatpush.msra.mxu0 %v2399
    %2422 = vmatpush.msra.mxu0 %v2398
    %2423 = vmatpush.msra.mxu0 %v2397
    %2424 = vmatmul.f32.gmra.mxu0 %v2406
    %v2425 = vpop.f32.mrf.mxu0
    %v2426 = vadd.f32 0.0, %v2425
    %2427 = vdwg.mxu0
    %v2428 = vadd.f32 %v2394, %v2426
    %v2429 = vld [vmem:[#allocation2 + $0x9] sm:$0x1]
    %s2430 = scalar_lea.vmem [#allocation3], 576
    %v2431 = vld [vmem:[%s2430] sm:$0xff]
    %v2432 = vld [vmem:[%s2430 + $0x8] sm:$0xff]
    %v2433 = vld [vmem:[%s2430 + $0x10] sm:$0xff]
    %v2434 = vld [vmem:[%s2430 + $0x18] sm:$0xff]
    %v2435 = vld [vmem:[%s2430 + $0x20] sm:$0xff]
    %v2436 = vld [vmem:[%s2430 + $0x28] sm:$0xff]
    %v2437 = vld [vmem:[%s2430 + $0x30] sm:$0xff]
    %v2438 = vld [vmem:[%s2430 + $0x38] sm:$0xff]
    %v2440 = vsel %vm1867, %v2429, 0
    %2442 = vmatpush.msra.mxu0 0.0
    %2443 = vmatpush.msra.mxu0 0.0
    %2444 = vmatpush.msra.mxu0 0.0
    %2445 = vmatpush.msra.mxu0 0.0
    %2446 = vmatpush.msra.mxu0 0.0
    %2447 = vmatpush.msra.mxu0 0.0
    %2448 = vmatpush.msra.mxu0 0.0
    %2449 = vmatpush.msra.mxu0 0.0
    %2450 = vmatpush.msra.mxu0 %v2438
    %2451 = vmatpush.msra.mxu0 %v2437
    %2452 = vmatpush.msra.mxu0 %v2436
    %2453 = vmatpush.msra.mxu0 %v2435
    %2454 = vmatpush.msra.mxu0 %v2434
    %2455 = vmatpush.msra.mxu0 %v2433
    %2456 = vmatpush.msra.mxu0 %v2432
    %2457 = vmatpush.msra.mxu0 %v2431
    %2458 = vmatmul.f32.gmra.mxu0 %v2440
    %v2459 = vpop.f32.mrf.mxu0
    %v2460 = vadd.f32 0.0, %v2459
    %2461 = vdwg.mxu0
    %v2462 = vadd.f32 %v2428, %v2460
    %v2463 = vmax.f32 %v2462, 0.0
    %v2465 = vsel %vm1867, %v2463, 0
    %2467 = vmatpush.msra.mxu0 0.0
    %2468 = vmatpush.msra.mxu0 0.0
    %2469 = vmatpush.msra.mxu0 0.0
    %2470 = vmatpush.msra.mxu0 0.0
    %2471 = vmatpush.msra.mxu0 0.0
    %2472 = vmatpush.msra.mxu0 0.0
    %2473 = vmatpush.msra.mxu0 0.0
    %2474 = vmatpush.msra.mxu0 0.0
    %2475 = vmatpush.msra.mxu0 %v2004
    %2476 = vmatpush.msra.mxu0 %v2003
    %2477 = vmatpush.msra.mxu0 %v2002
    %2478 = vmatpush.msra.mxu0 %v2001
    %2479 = vmatpush.msra.mxu0 %v2000
    %2480 = vmatpush.msra.mxu0 %v1999
    %2481 = vmatpush.msra.mxu0 %v1998
    %2482 = vmatpush.msra.mxu0 %v1997
    %2483 = vmatmul.f32.gmra.mxu0 %v2465
    %v2484 = vpop.f32.mrf.mxu0
    %v2485 = vadd.f32 0.0, %v2484
    %2486 = vdwg.mxu0
    %vm2487 = vcmask 122880
    %2488 = vst.msk [vmem:[#allocation6] sm:$0x1] %vm2487, %v2485
    %v2489 = vld [vmem:[%s4] sm:$0xff]
    %v2490 = vld [vmem:[%s4 + $0x8] sm:$0x3]
    %v2491 = vld [vmem:[%s83] sm:$0xff]
    %v2492 = vld [vmem:[%s83 + $0x8] sm:$0x3]
    %v2494 = vsel %vm1867, %v2489, 0
    %v2497 = vsel %vm1867, %v2490, 0
    %v2500 = vsel %vm1867, %v1989, 0
    %v2503 = vsel %vm1867, %v1990, 0
    %v2506 = vsel %vm1867, %v1991, 0
    %v2509 = vsel %vm1867, %v1992, 0
    %v2512 = vsel %vm1867, %v1993, 0
    %v2515 = vsel %vm1867, %v1994, 0
    %v2518 = vsel %vm1867, %v1995, 0
    %v2521 = vsel %vm1867, %v1996, 0
    %2523 = vmatpush.xpose.msra.mxu0 0.0
    %2524 = vmatpush.xpose.msra.mxu0 0.0
    %2525 = vmatpush.xpose.msra.mxu0 0.0
    %2526 = vmatpush.xpose.msra.mxu0 0.0
    %2527 = vmatpush.xpose.msra.mxu0 0.0
    %2528 = vmatpush.xpose.msra.mxu0 0.0
    %2529 = vmatpush.xpose.msra.mxu0 0.0
    %2530 = vmatpush.xpose.msra.mxu0 0.0
    %2531 = vmatpush.xpose.msra.mxu0 %v2521
    %2532 = vmatpush.xpose.msra.mxu0 %v2518
    %2533 = vmatpush.xpose.msra.mxu0 %v2515
    %2534 = vmatpush.xpose.msra.mxu0 %v2512
    %2535 = vmatpush.xpose.msra.mxu0 %v2509
    %2536 = vmatpush.xpose.msra.mxu0 %v2506
    %2537 = vmatpush.xpose.msra.mxu0 %v2503
    %2538 = vmatpush.xpose.msra.mxu0 %v2500
    %2539 = vmatmul.f32.gmra.mxu0 %v2494
    %v2540 = vpop.f32.mrf.mxu0
    %v2541 = vadd.f32 %v2491, %v2540
    %2542 = vmatmul.f32.gmra.mxu0 %v2497
    %v2543 = vpop.f32.mrf.mxu0
    %v2544 = vadd.f32 %v2492, %v2543
    %2545 = vdwg.mxu0
    %v2546 = vsel %vm1867, %v2541, 0.0
    %2547 = vadd.xlane.f32.xlu0 %v2546
    %v2548 = vpop.xlane.xlu0 %2547
    %v2549 = vsel %vm2065, %v2544, 0.0
    %2550 = vadd.xlane.f32.xlu0 %v2549
    %v2551 = vpop.xlane.xlu0 %2550
    %v2552 = vmul.f32 %v2548, %v2075
    %v2553 = vmul.f32 %v2551, %v2075
    %v2554 = vsub.f32 %v2541, %v2552
    %v2555 = vsub.f32 %v2544, %v2553
    %v2556 = vmul.f32 %v2554, %v2554
    %v2557 = vmul.f32 %v2555, %v2555
    %v2558 = vsel %vm1867, %v2556, 0.0
    %2559 = vadd.xlane.f32.xlu0 %v2558
    %v2560 = vpop.xlane.xlu0 %2559
    %v2561 = vsel %vm2065, %v2557, 0.0
    %2562 = vadd.xlane.f32.xlu0 %v2561
    %v2563 = vpop.xlane.xlu0 %2562
    %v2564 = vmul.f32 %v2560, %v2075
    %v2565 = vmul.f32 %v2563, %v2075
    %v2566 = vadd.f32 %v2564, 1e-05
    %v2567 = vadd.f32 %v2565, 1e-05
    %v2568 = vrsqrt.pop %v2566
    %v2569 = vmul.f32 %v2568, %v2566
    %v2570 = vmul.f32 %v2569, %v2568
    %v2571 = vmul.f32 0.5, %v2570
    %v2572 = vsub.f32 1.5, %v2571
    %v2573 = vmul.f32 %v2568, %v2572
    %vm2574 = vweird.f32 %v2566
    %vm2575 = vweird.f32 %v2568
    %vm2576 = vmor %vm2574, %vm2575
    %v2577 = vsel %vm2576, %v2568, %v2573
    %v2578 = vrsqrt.pop %v2567
    %v2579 = vmul.f32 %v2578, %v2567
    %v2580 = vmul.f32 %v2579, %v2578
    %v2581 = vmul.f32 0.5, %v2580
    %v2582 = vsub.f32 1.5, %v2581
    %v2583 = vmul.f32 %v2578, %v2582
    %vm2584 = vweird.f32 %v2567
    %vm2585 = vweird.f32 %v2578
    %vm2586 = vmor %vm2584, %vm2585
    %v2587 = vsel %vm2586, %v2578, %v2583
    %v2588 = vmul.f32 %v2554, %v2577
    %v2589 = vmul.f32 %v2555, %v2587
    %v2590 = vmul.f32 %v2588, %v2115
    %v2591 = vmul.f32 %v2589, %v2115
    %v2592 = vadd.f32 %v2590, %v2120
    %v2593 = vadd.f32 %v2591, %v2120
    %2594 = vst.msk [vmem:[#allocation2] sm:$0xff] %vm1867, %v2592
    %2595 = vst.msk [vmem:[#allocation2 + $0x8] sm:$0x3] %vm2065, %v2593
    %v2596 = vld [vmem:[#allocation2] sm:$0x1]
    %v2597 = vld [vmem:[#allocation3] sm:$0xff]
    %v2598 = vld [vmem:[#allocation3 + $0x8] sm:$0xff]
    %v2599 = vld [vmem:[#allocation3 + $0x10] sm:$0xff]
    %v2600 = vld [vmem:[#allocation3 + $0x18] sm:$0xff]
    %v2601 = vld [vmem:[#allocation3 + $0x20] sm:$0xff]
    %v2602 = vld [vmem:[#allocation3 + $0x28] sm:$0xff]
    %v2603 = vld [vmem:[#allocation3 + $0x30] sm:$0xff]
    %v2604 = vld [vmem:[#allocation3 + $0x38] sm:$0xff]
    %v2605 = vld [vmem:[#allocation2 + $0x1] sm:$0x1]
    %v2606 = vld [vmem:[%s2136] sm:$0xff]
    %v2607 = vld [vmem:[%s2136 + $0x8] sm:$0xff]
    %v2608 = vld [vmem:[%s2136 + $0x10] sm:$0xff]
    %v2609 = vld [vmem:[%s2136 + $0x18] sm:$0xff]
    %v2610 = vld [vmem:[%s2136 + $0x20] sm:$0xff]
    %v2611 = vld [vmem:[%s2136 + $0x28] sm:$0xff]
    %v2612 = vld [vmem:[%s2136 + $0x30] sm:$0xff]
    %v2613 = vld [vmem:[%s2136 + $0x38] sm:$0xff]
    %v2615 = vsel %vm1867, %v2605, 0
    %2617 = vmatpush.msra.mxu0 0.0
    %2618 = vmatpush.msra.mxu0 0.0
    %2619 = vmatpush.msra.mxu0 0.0
    %2620 = vmatpush.msra.mxu0 0.0
    %2621 = vmatpush.msra.mxu0 0.0
    %2622 = vmatpush.msra.mxu0 0.0
    %2623 = vmatpush.msra.mxu0 0.0
    %2624 = vmatpush.msra.mxu0 0.0
    %2625 = vmatpush.msra.mxu0 %v2613
    %2626 = vmatpush.msra.mxu0 %v2612
    %2627 = vmatpush.msra.mxu0 %v2611
    %2628 = vmatpush.msra.mxu0 %v2610
    %2629 = vmatpush.msra.mxu0 %v2609
    %2630 = vmatpush.msra.mxu0 %v2608
    %2631 = vmatpush.msra.mxu0 %v2607
    %2632 = vmatpush.msra.mxu0 %v2606
    %2633 = vmatmul.f32.gmra.mxu0 %v2615
    %v2634 = vpop.f32.mrf.mxu0
    %v2635 = vadd.f32 0.0, %v2634
    %2636 = vdwg.mxu0
    %v2638 = vsel %vm1867, %v2596, 0
    %2640 = vmatpush.msra.mxu0 0.0
    %2641 = vmatpush.msra.mxu0 0.0
    %2642 = vmatpush.msra.mxu0 0.0
    %2643 = vmatpush.msra.mxu0 0.0
    %2644 = vmatpush.msra.mxu0 0.0
    %2645 = vmatpush.msra.mxu0 0.0
    %2646 = vmatpush.msra.mxu0 0.0
    %2647 = vmatpush.msra.mxu0 0.0
    %2648 = vmatpush.msra.mxu0 %v2604
    %2649 = vmatpush.msra.mxu0 %v2603
    %2650 = vmatpush.msra.mxu0 %v2602
    %2651 = vmatpush.msra.mxu0 %v2601
    %2652 = vmatpush.msra.mxu0 %v2600
    %2653 = vmatpush.msra.mxu0 %v2599
    %2654 = vmatpush.msra.mxu0 %v2598
    %2655 = vmatpush.msra.mxu0 %v2597
    %2656 = vmatmul.f32.gmra.mxu0 %v2638
    %v2657 = vpop.f32.mrf.mxu0
    %v2658 = vadd.f32 %v2635, %v2657
    %2659 = vdwg.mxu0
    %v2660 = vld [vmem:[#allocation2 + $0x2] sm:$0x1]
    %v2661 = vld [vmem:[%s2192] sm:$0xff]
    %v2662 = vld [vmem:[%s2192 + $0x8] sm:$0xff]
    %v2663 = vld [vmem:[%s2192 + $0x10] sm:$0xff]
    %v2664 = vld [vmem:[%s2192 + $0x18] sm:$0xff]
    %v2665 = vld [vmem:[%s2192 + $0x20] sm:$0xff]
    %v2666 = vld [vmem:[%s2192 + $0x28] sm:$0xff]
    %v2667 = vld [vmem:[%s2192 + $0x30] sm:$0xff]
    %v2668 = vld [vmem:[%s2192 + $0x38] sm:$0xff]
    %v2670 = vsel %vm1867, %v2660, 0
    %2672 = vmatpush.msra.mxu0 0.0
    %2673 = vmatpush.msra.mxu0 0.0
    %2674 = vmatpush.msra.mxu0 0.0
    %2675 = vmatpush.msra.mxu0 0.0
    %2676 = vmatpush.msra.mxu0 0.0
    %2677 = vmatpush.msra.mxu0 0.0
    %2678 = vmatpush.msra.mxu0 0.0
    %2679 = vmatpush.msra.mxu0 0.0
    %2680 = vmatpush.msra.mxu0 %v2668
    %2681 = vmatpush.msra.mxu0 %v2667
    %2682 = vmatpush.msra.mxu0 %v2666
    %2683 = vmatpush.msra.mxu0 %v2665
    %2684 = vmatpush.msra.mxu0 %v2664
    %2685 = vmatpush.msra.mxu0 %v2663
    %2686 = vmatpush.msra.mxu0 %v2662
    %2687 = vmatpush.msra.mxu0 %v2661
    %2688 = vmatmul.f32.gmra.mxu0 %v2670
    %v2689 = vpop.f32.mrf.mxu0
    %v2690 = vadd.f32 0.0, %v2689
    %2691 = vdwg.mxu0
    %v2692 = vadd.f32 %v2658, %v2690
    %v2693 = vld [vmem:[#allocation2 + $0x3] sm:$0x1]
    %v2694 = vld [vmem:[%s2226] sm:$0xff]
    %v2695 = vld [vmem:[%s2226 + $0x8] sm:$0xff]
    %v2696 = vld [vmem:[%s2226 + $0x10] sm:$0xff]
    %v2697 = vld [vmem:[%s2226 + $0x18] sm:$0xff]
    %v2698 = vld [vmem:[%s2226 + $0x20] sm:$0xff]
    %v2699 = vld [vmem:[%s2226 + $0x28] sm:$0xff]
    %v2700 = vld [vmem:[%s2226 + $0x30] sm:$0xff]
    %v2701 = vld [vmem:[%s2226 + $0x38] sm:$0xff]
    %v2703 = vsel %vm1867, %v2693, 0
    %2705 = vmatpush.msra.mxu0 0.0
    %2706 = vmatpush.msra.mxu0 0.0
    %2707 = vmatpush.msra.mxu0 0.0
    %2708 = vmatpush.msra.mxu0 0.0
    %2709 = vmatpush.msra.mxu0 0.0
    %2710 = vmatpush.msra.mxu0 0.0
    %2711 = vmatpush.msra.mxu0 0.0
    %2712 = vmatpush.msra.mxu0 0.0
    %2713 = vmatpush.msra.mxu0 %v2701
    %2714 = vmatpush.msra.mxu0 %v2700
    %2715 = vmatpush.msra.mxu0 %v2699
    %2716 = vmatpush.msra.mxu0 %v2698
    %2717 = vmatpush.msra.mxu0 %v2697
    %2718 = vmatpush.msra.mxu0 %v2696
    %2719 = vmatpush.msra.mxu0 %v2695
    %2720 = vmatpush.msra.mxu0 %v2694
    %2721 = vmatmul.f32.gmra.mxu0 %v2703
    %v2722 = vpop.f32.mrf.mxu0
    %v2723 = vadd.f32 0.0, %v2722
    %2724 = vdwg.mxu0
    %v2725 = vadd.f32 %v2692, %v2723
    %v2726 = vld [vmem:[#allocation2 + $0x4] sm:$0x1]
    %v2727 = vld [vmem:[%s2260] sm:$0xff]
    %v2728 = vld [vmem:[%s2260 + $0x8] sm:$0xff]
    %v2729 = vld [vmem:[%s2260 + $0x10] sm:$0xff]
    %v2730 = vld [vmem:[%s2260 + $0x18] sm:$0xff]
    %v2731 = vld [vmem:[%s2260 + $0x20] sm:$0xff]
    %v2732 = vld [vmem:[%s2260 + $0x28] sm:$0xff]
    %v2733 = vld [vmem:[%s2260 + $0x30] sm:$0xff]
    %v2734 = vld [vmem:[%s2260 + $0x38] sm:$0xff]
    %v2736 = vsel %vm1867, %v2726, 0
    %2738 = vmatpush.msra.mxu0 0.0
    %2739 = vmatpush.msra.mxu0 0.0
    %2740 = vmatpush.msra.mxu0 0.0
    %2741 = vmatpush.msra.mxu0 0.0
    %2742 = vmatpush.msra.mxu0 0.0
    %2743 = vmatpush.msra.mxu0 0.0
    %2744 = vmatpush.msra.mxu0 0.0
    %2745 = vmatpush.msra.mxu0 0.0
    %2746 = vmatpush.msra.mxu0 %v2734
    %2747 = vmatpush.msra.mxu0 %v2733
    %2748 = vmatpush.msra.mxu0 %v2732
    %2749 = vmatpush.msra.mxu0 %v2731
    %2750 = vmatpush.msra.mxu0 %v2730
    %2751 = vmatpush.msra.mxu0 %v2729
    %2752 = vmatpush.msra.mxu0 %v2728
    %2753 = vmatpush.msra.mxu0 %v2727
    %2754 = vmatmul.f32.gmra.mxu0 %v2736
    %v2755 = vpop.f32.mrf.mxu0
    %v2756 = vadd.f32 0.0, %v2755
    %2757 = vdwg.mxu0
    %v2758 = vadd.f32 %v2725, %v2756
    %v2759 = vld [vmem:[#allocation2 + $0x5] sm:$0x1]
    %v2760 = vld [vmem:[%s2294] sm:$0xff]
    %v2761 = vld [vmem:[%s2294 + $0x8] sm:$0xff]
    %v2762 = vld [vmem:[%s2294 + $0x10] sm:$0xff]
    %v2763 = vld [vmem:[%s2294 + $0x18] sm:$0xff]
    %v2764 = vld [vmem:[%s2294 + $0x20] sm:$0xff]
    %v2765 = vld [vmem:[%s2294 + $0x28] sm:$0xff]
    %v2766 = vld [vmem:[%s2294 + $0x30] sm:$0xff]
    %v2767 = vld [vmem:[%s2294 + $0x38] sm:$0xff]
    %v2769 = vsel %vm1867, %v2759, 0
    %2771 = vmatpush.msra.mxu0 0.0
    %2772 = vmatpush.msra.mxu0 0.0
    %2773 = vmatpush.msra.mxu0 0.0
    %2774 = vmatpush.msra.mxu0 0.0
    %2775 = vmatpush.msra.mxu0 0.0
    %2776 = vmatpush.msra.mxu0 0.0
    %2777 = vmatpush.msra.mxu0 0.0
    %2778 = vmatpush.msra.mxu0 0.0
    %2779 = vmatpush.msra.mxu0 %v2767
    %2780 = vmatpush.msra.mxu0 %v2766
    %2781 = vmatpush.msra.mxu0 %v2765
    %2782 = vmatpush.msra.mxu0 %v2764
    %2783 = vmatpush.msra.mxu0 %v2763
    %2784 = vmatpush.msra.mxu0 %v2762
    %2785 = vmatpush.msra.mxu0 %v2761
    %2786 = vmatpush.msra.mxu0 %v2760
    %2787 = vmatmul.f32.gmra.mxu0 %v2769
    %v2788 = vpop.f32.mrf.mxu0
    %v2789 = vadd.f32 0.0, %v2788
    %2790 = vdwg.mxu0
    %v2791 = vadd.f32 %v2758, %v2789
    %v2792 = vld [vmem:[#allocation2 + $0x6] sm:$0x1]
    %v2793 = vld [vmem:[%s2328] sm:$0xff]
    %v2794 = vld [vmem:[%s2328 + $0x8] sm:$0xff]
    %v2795 = vld [vmem:[%s2328 + $0x10] sm:$0xff]
    %v2796 = vld [vmem:[%s2328 + $0x18] sm:$0xff]
    %v2797 = vld [vmem:[%s2328 + $0x20] sm:$0xff]
    %v2798 = vld [vmem:[%s2328 + $0x28] sm:$0xff]
    %v2799 = vld [vmem:[%s2328 + $0x30] sm:$0xff]
    %v2800 = vld [vmem:[%s2328 + $0x38] sm:$0xff]
    %v2802 = vsel %vm1867, %v2792, 0
    %2804 = vmatpush.msra.mxu0 0.0
    %2805 = vmatpush.msra.mxu0 0.0
    %2806 = vmatpush.msra.mxu0 0.0
    %2807 = vmatpush.msra.mxu0 0.0
    %2808 = vmatpush.msra.mxu0 0.0
    %2809 = vmatpush.msra.mxu0 0.0
    %2810 = vmatpush.msra.mxu0 0.0
    %2811 = vmatpush.msra.mxu0 0.0
    %2812 = vmatpush.msra.mxu0 %v2800
    %2813 = vmatpush.msra.mxu0 %v2799
    %2814 = vmatpush.msra.mxu0 %v2798
    %2815 = vmatpush.msra.mxu0 %v2797
    %2816 = vmatpush.msra.mxu0 %v2796
    %2817 = vmatpush.msra.mxu0 %v2795
    %2818 = vmatpush.msra.mxu0 %v2794
    %2819 = vmatpush.msra.mxu0 %v2793
    %2820 = vmatmul.f32.gmra.mxu0 %v2802
    %v2821 = vpop.f32.mrf.mxu0
    %v2822 = vadd.f32 0.0, %v2821
    %2823 = vdwg.mxu0
    %v2824 = vadd.f32 %v2791, %v2822
    %v2825 = vld [vmem:[#allocation2 + $0x7] sm:$0x1]
    %v2826 = vld [vmem:[%s2362] sm:$0xff]
    %v2827 = vld [vmem:[%s2362 + $0x8] sm:$0xff]
    %v2828 = vld [vmem:[%s2362 + $0x10] sm:$0xff]
    %v2829 = vld [vmem:[%s2362 + $0x18] sm:$0xff]
    %v2830 = vld [vmem:[%s2362 + $0x20] sm:$0xff]
    %v2831 = vld [vmem:[%s2362 + $0x28] sm:$0xff]
    %v2832 = vld [vmem:[%s2362 + $0x30] sm:$0xff]
    %v2833 = vld [vmem:[%s2362 + $0x38] sm:$0xff]
    %v2835 = vsel %vm1867, %v2825, 0
    %2837 = vmatpush.msra.mxu0 0.0
    %2838 = vmatpush.msra.mxu0 0.0
    %2839 = vmatpush.msra.mxu0 0.0
    %2840 = vmatpush.msra.mxu0 0.0
    %2841 = vmatpush.msra.mxu0 0.0
    %2842 = vmatpush.msra.mxu0 0.0
    %2843 = vmatpush.msra.mxu0 0.0
    %2844 = vmatpush.msra.mxu0 0.0
    %2845 = vmatpush.msra.mxu0 %v2833
    %2846 = vmatpush.msra.mxu0 %v2832
    %2847 = vmatpush.msra.mxu0 %v2831
    %2848 = vmatpush.msra.mxu0 %v2830
    %2849 = vmatpush.msra.mxu0 %v2829
    %2850 = vmatpush.msra.mxu0 %v2828
    %2851 = vmatpush.msra.mxu0 %v2827
    %2852 = vmatpush.msra.mxu0 %v2826
    %2853 = vmatmul.f32.gmra.mxu0 %v2835
    %v2854 = vpop.f32.mrf.mxu0
    %v2855 = vadd.f32 0.0, %v2854
    %2856 = vdwg.mxu0
    %v2857 = vadd.f32 %v2824, %v2855
    %v2858 = vld [vmem:[#allocation2 + $0x8] sm:$0x1]
    %v2859 = vld [vmem:[%s2396] sm:$0xff]
    %v2860 = vld [vmem:[%s2396 + $0x8] sm:$0xff]
    %v2861 = vld [vmem:[%s2396 + $0x10] sm:$0xff]
    %v2862 = vld [vmem:[%s2396 + $0x18] sm:$0xff]
    %v2863 = vld [vmem:[%s2396 + $0x20] sm:$0xff]
    %v2864 = vld [vmem:[%s2396 + $0x28] sm:$0xff]
    %v2865 = vld [vmem:[%s2396 + $0x30] sm:$0xff]
    %v2866 = vld [vmem:[%s2396 + $0x38] sm:$0xff]
    %v2868 = vsel %vm1867, %v2858, 0
    %2870 = vmatpush.msra.mxu0 0.0
    %2871 = vmatpush.msra.mxu0 0.0
    %2872 = vmatpush.msra.mxu0 0.0
    %2873 = vmatpush.msra.mxu0 0.0
    %2874 = vmatpush.msra.mxu0 0.0
    %2875 = vmatpush.msra.mxu0 0.0
    %2876 = vmatpush.msra.mxu0 0.0
    %2877 = vmatpush.msra.mxu0 0.0
    %2878 = vmatpush.msra.mxu0 %v2866
    %2879 = vmatpush.msra.mxu0 %v2865
    %2880 = vmatpush.msra.mxu0 %v2864
    %2881 = vmatpush.msra.mxu0 %v2863
    %2882 = vmatpush.msra.mxu0 %v2862
    %2883 = vmatpush.msra.mxu0 %v2861
    %2884 = vmatpush.msra.mxu0 %v2860
    %2885 = vmatpush.msra.mxu0 %v2859
    %2886 = vmatmul.f32.gmra.mxu0 %v2868
    %v2887 = vpop.f32.mrf.mxu0
    %v2888 = vadd.f32 0.0, %v2887
    %2889 = vdwg.mxu0
    %v2890 = vadd.f32 %v2857, %v2888
    %v2891 = vld [vmem:[#allocation2 + $0x9] sm:$0x1]
    %v2892 = vld [vmem:[%s2430] sm:$0xff]
    %v2893 = vld [vmem:[%s2430 + $0x8] sm:$0xff]
    %v2894 = vld [vmem:[%s2430 + $0x10] sm:$0xff]
    %v2895 = vld [vmem:[%s2430 + $0x18] sm:$0xff]
    %v2896 = vld [vmem:[%s2430 + $0x20] sm:$0xff]
    %v2897 = vld [vmem:[%s2430 + $0x28] sm:$0xff]
    %v2898 = vld [vmem:[%s2430 + $0x30] sm:$0xff]
    %v2899 = vld [vmem:[%s2430 + $0x38] sm:$0xff]
    %v2901 = vsel %vm1867, %v2891, 0
    %2903 = vmatpush.msra.mxu0 0.0
    %2904 = vmatpush.msra.mxu0 0.0
    %2905 = vmatpush.msra.mxu0 0.0
    %2906 = vmatpush.msra.mxu0 0.0
    %2907 = vmatpush.msra.mxu0 0.0
    %2908 = vmatpush.msra.mxu0 0.0
    %2909 = vmatpush.msra.mxu0 0.0
    %2910 = vmatpush.msra.mxu0 0.0
    %2911 = vmatpush.msra.mxu0 %v2899
    %2912 = vmatpush.msra.mxu0 %v2898
    %2913 = vmatpush.msra.mxu0 %v2897
    %2914 = vmatpush.msra.mxu0 %v2896
    %2915 = vmatpush.msra.mxu0 %v2895
    %2916 = vmatpush.msra.mxu0 %v2894
    %2917 = vmatpush.msra.mxu0 %v2893
    %2918 = vmatpush.msra.mxu0 %v2892
    %2919 = vmatmul.f32.gmra.mxu0 %v2901
    %v2920 = vpop.f32.mrf.mxu0
    %v2921 = vadd.f32 0.0, %v2920
    %2922 = vdwg.mxu0
    %v2923 = vadd.f32 %v2890, %v2921
    %v2924 = vmax.f32 %v2923, 0.0
    %v2926 = vsel %vm1867, %v2924, 0
    %2928 = vmatpush.msra.mxu0 0.0
    %2929 = vmatpush.msra.mxu0 0.0
    %2930 = vmatpush.msra.mxu0 0.0
    %2931 = vmatpush.msra.mxu0 0.0
    %2932 = vmatpush.msra.mxu0 0.0
    %2933 = vmatpush.msra.mxu0 0.0
    %2934 = vmatpush.msra.mxu0 0.0
    %2935 = vmatpush.msra.mxu0 0.0
    %2936 = vmatpush.msra.mxu0 %v2004
    %2937 = vmatpush.msra.mxu0 %v2003
    %2938 = vmatpush.msra.mxu0 %v2002
    %2939 = vmatpush.msra.mxu0 %v2001
    %2940 = vmatpush.msra.mxu0 %v2000
    %2941 = vmatpush.msra.mxu0 %v1999
    %2942 = vmatpush.msra.mxu0 %v1998
    %2943 = vmatpush.msra.mxu0 %v1997
    %2944 = vmatmul.f32.gmra.mxu0 %v2926
    %v2945 = vpop.f32.mrf.mxu0
    %v2946 = vadd.f32 0.0, %v2945
    %2947 = vdwg.mxu0
    %2948 = vst.msk [vmem:[#allocation6 + $0x1] sm:$0x1] %vm2487, %v2946
    // Predicated region
    $region42: #{forward.1} parent=1 // pred_check
      _
    $region43: #{forward.1} parent=1 // pred_check_branch
      %2950 = sbr.rel (0) target = $region45
    $region44: #{forward.1} parent=1 // pred_region
      %2952 = vsyncadd [#allocation5], 0
      %s2954 = sshll.u32 [#allocation6], 4
      %s2955 = int_to_ptr.vmem [resolvable:$true] %s2954
      %s2956 = sshll.u32 %s9, 4
      %s2957 = int_to_ptr.hbm [resolvable:$true] %s2956
      %2959 = dma.vmem_to_hbm [thread:$0]  %s2955, 32, %s2957, [#allocation5]
    $region45: #{forward.1} parent=1 // pred_fallthru
      _
    // Predicated region
    $region46: #{forward.1} parent=1 // pred_check
      _
    $region47: #{forward.1} parent=1 // pred_check_branch
      %2961 = sbr.rel (0) target = $region49
    $region48: #{forward.1} parent=1 // pred_region
      %2963 = dma.done [#allocation5], 32
    $region49: #{forward.1} parent=1 // pred_fallthru
      _
    %2964 = vsyncpa [#allocation4], 1
    %2965 = vsyncpa [#allocation5], 1

</llo_original>
